<compile_context>
chip_gen: v7x
topology: tpu7x:2x2x1
jax: 0.10.0
libtpu: 0.0.40
codegen_flags: <defaults>
</compile_context>

<pallas_src>
import math

import jax
import jax.numpy as jnp
from jax.experimental import pallas as pl
from jax.experimental.pallas import tpu as pltpu

# ---------------- model dimensions (small, consistent with SCALOR) -----------
IMG_H = 16
IMG_W = 16
HW = IMG_H * IMG_W                                # 256
CHW = 3 * HW                                      # 768

K_OBJ = 4                                         # max objects per frame
Z_WHAT = 8
Z_WHERE = 4
Z_DEPTH = 1
Z_PRES = 1
Z_COORD = 2
Z_ALL = Z_WHAT + Z_WHERE + Z_DEPTH + Z_PRES + Z_COORD          # 16
LAT_PER_OBJ = 2 * Z_WHAT + 2 * Z_WHERE + 2 * Z_DEPTH + Z_PRES  # 27
LAT_PER_OBJ_PAD = 32
LAT_DIM = K_OBJ * LAT_PER_OBJ                     # 108
LAT_DIM_PAD = K_OBJ * LAT_PER_OBJ_PAD             # 128
NOISE_DIM = Z_WHAT + Z_WHERE + Z_DEPTH            # 13
BG_WHAT = 8
HIDDEN = 64
ACT_DIM = 4
PROP_IN = CHW + ACT_DIM + Z_ALL                   # 788
AZ_DIM = 32                                       # carry slab: [z_pool(16)|act(4)|pad(12)]

SIGMA = 0.1
Z_PRES_PRIOR = 0.01
Z_PRES_THRESHOLD = 0.7
EPS = 1e-15
LOG_P = math.log(Z_PRES_PRIOR + EPS)
LOG_1MP = math.log(1.0 - Z_PRES_PRIOR + EPS)
LL_CONST = -(math.log(SIGMA) + 0.5 * math.log(2.0 * math.pi))
NEG_HALF_INV_SIG2 = -0.5 / (SIGMA * SIGMA)


# ---------------- Pallas helpers ---------------------------------------------
def _full_spec(shape):
    n = len(shape)
    return pl.BlockSpec(shape, lambda i, _n=n: (0,) * _n)


def _softplus(x):
    # numerically-stable softplus from exp/log/where (lowering-safe)
    return jnp.where(x > 20.0, x, jnp.log(1.0 + jnp.exp(jnp.minimum(x, 20.0))))


# ---------------- fused full-sequence kernel (grid over time) -----------------
def _seq_step_kernel(x_ref, act_ref, noise_ref, bg_ref,
                     w1_ref, waz_ref, b1_ref, w2_ref, b2_ref, dw_ref, db_ref,
                     y_ref, stats_ref, az_ref):
    f32 = jnp.float32
    bf16 = jnp.bfloat16
    t = pl.program_id(0)

    @pl.when(t == 0)
    def _():
        az_ref[...] = jnp.zeros_like(az_ref)

    # stash the current action in the carry slab; lanes 0:16 hold the previous
    # step's presence-pooled z (zero at t == 0).
    az_ref[:, Z_ALL:Z_ALL + ACT_DIM] = act_ref[...]

    x = x_ref[...]                                   # [bp, CHW]
    az = az_ref[...]                                 # [bp, 32]
    noise = noise_ref[...]                           # [bp, K_OBJ*NOISE_DIM]
    bg = bg_ref[...]                                 # [bp, CHW]
    bpn = x.shape[0]

    # ---- encoder (t==0, discovery) / propagation (t>0) MLP ----
    # The weight set is selected by the BlockSpec index_map (slot 0 vs slot 1);
    # all matmuls are bf16-in / f32-accumulate on the MXU.
    h = (jnp.dot(x.astype(bf16), w1_ref[...], preferred_element_type=f32)
         + jnp.dot(az.astype(bf16), waz_ref[...], preferred_element_type=f32)
         + b1_ref[...])
    h = jnp.maximum(h, 0.0)
    lat = jnp.dot(h.astype(bf16), w2_ref[...], preferred_element_type=f32) + b2_ref[...]

    # slab-wide softplus/log (single wide EUP pass; only std lanes are read below)
    sp = _softplus(lat) + 1e-4
    lsp = jnp.log(sp)

    kl_what = jnp.zeros((bpn, 1), f32)
    kl_where = jnp.zeros((bpn, 1), f32)
    kl_depth = jnp.zeros((bpn, 1), f32)
    kl_pres = jnp.zeros((bpn, 1), f32)
    lengths = jnp.zeros((bpn, 1), f32)
    zp_what = jnp.zeros((bpn, Z_WHAT), f32)
    zp_where = jnp.zeros((bpn, Z_WHERE), f32)
    zp_depth = jnp.zeros((bpn, 1), f32)
    zp_pres = jnp.zeros((bpn, 1), f32)
    zw_list, pres_list, depth_list = [], [], []

    for o in range(K_OBJ):                           # unrolled, K_OBJ = 4
        base = o * LAT_PER_OBJ_PAD                   # 32-lane aligned per-object block
        wm = lat[:, base:base + 8]
        ws = sp[:, base + 8:base + 16]
        lws = lsp[:, base + 8:base + 16]
        whm = lat[:, base + 16:base + 20]
        whs = sp[:, base + 20:base + 24]
        lwhs = lsp[:, base + 20:base + 24]
        dm = lat[:, base + 24:base + 25]
        dsd = sp[:, base + 25:base + 26]
        lds = lsp[:, base + 25:base + 26]
        p_logit = lat[:, base + 26:base + 27]

        nb = o * NOISE_DIM
        z_what = wm + ws * noise[:, nb:nb + 8]
        z_where = whm + whs * noise[:, nb + 8:nb + 12]
        z_depth = dm + dsd * noise[:, nb + 12:nb + 13]
        # TODO(synk): relaxed-Bernoulli (Gumbel) sampling of z_pres omitted; mean prob used.
        z_pres = jax.nn.sigmoid(p_logit)

        # KL( N(m, s) || N(0, 1) ), summed over dims and objects
        kl_what = kl_what + jnp.sum(-lws + 0.5 * (ws * ws + wm * wm) - 0.5,
                                    axis=-1, keepdims=True)
        kl_where = kl_where + jnp.sum(-lwhs + 0.5 * (whs * whs + whm * whm) - 0.5,
                                      axis=-1, keepdims=True)
        kl_depth = kl_depth + jnp.sum(-lds + 0.5 * (dsd * dsd + dm * dm) - 0.5,
                                      axis=-1, keepdims=True)
        q = z_pres
        kl_pres = kl_pres + (q * (jnp.log(q + EPS) - LOG_P)
                             + (1.0 - q) * (jnp.log(1.0 - q + EPS) - LOG_1MP))

        # order-invariant presence-masked pooling (compute-relevant clean_z_all)
        mask = (z_pres > Z_PRES_THRESHOLD).astype(f32)
        lengths = lengths + mask
        zp_what = zp_what + z_what * mask
        zp_where = zp_where + z_where * mask
        zp_depth = zp_depth + z_depth * mask
        zp_pres = zp_pres + z_pres * mask

        zw_list.append(z_what)
        pres_list.append(z_pres)
        depth_list.append(z_depth)

    # carry the pooled z for the next timestep
    # TODO(synk): ids bookkeeping / data-dependent compaction of clean_z_all is not
    # materialized; the pooled sum is order-invariant so only the masked sum is carried.
    az_ref[:, 0:8] = zp_what
    az_ref[:, 8:12] = zp_where
    az_ref[:, 12:13] = zp_depth
    az_ref[:, 13:14] = zp_pres
    az_ref[:, 14:16] = zp_where[:, :Z_COORD]

    # ---- batched glimpse decode: all K_OBJ objects in one MXU call ----
    # TODO(synk): spatial-transformer (grid_sample) placement via z_where has no clean
    # Pallas equivalent; glimpses are decoded at full image resolution.
    zw_stack = jnp.concatenate(zw_list, axis=0)                       # [K_OBJ*bp, 8]
    dec_all = jax.nn.sigmoid(
        jnp.dot(zw_stack.astype(bf16), dw_ref[...], preferred_element_type=f32)
        + db_ref[...])                                                # [K_OBJ*bp, 4*HW]

    # ---- importance-weighted compositing (accumulate, no per-object lists) ----
    imp_sum = jnp.zeros((bpn, HW), f32)
    a_sum = jnp.zeros((bpn, HW), f32)
    fg = [jnp.zeros((bpn, HW), f32) for _ in range(3)]
    for o in range(K_OBJ):
        dec_o = dec_all[o * bpn:(o + 1) * bpn]
        ap = dec_o[:, 3 * HW:4 * HW] * pres_list[o]
        imp = ap * jax.nn.sigmoid(-depth_list[o])
        imp_sum = imp_sum + imp
        a_sum = a_sum + ap
        for c in range(3):
            fg[c] = fg[c] + dec_o[:, c * HW:(c + 1) * HW] * imp

    inv = pl.reciprocal(imp_sum + EPS, approx=True)                   # EUP, frees VALU
    one_minus_a = 1.0 - jnp.minimum(a_sum, 1.0)

    sq = jnp.zeros((bpn, 1), f32)
    for c in range(3):                                                # 256-lane aligned stores
        y_c = fg[c] * inv + one_minus_a * bg[:, c * HW:(c + 1) * HW]
        y_ref[:, c * HW:(c + 1) * HW] = y_c
        diff = x[:, c * HW:(c + 1) * HW] - y_c
        sq = sq + jnp.sum(diff * diff, axis=-1, keepdims=True)

    ll = sq * NEG_HALF_INV_SIG2 + CHW * LL_CONST                      # Normal(y,sigma).log_prob(x).sum(-1)

    # single lane-dense stats slab:
    # cols 0..5 = kl_what, kl_where, kl_depth, kl_pres, log_like, num_present_objects
    col = jax.lax.broadcasted_iota(jnp.int32, (bpn, 128), 1)
    stats_ref[...] = (jnp.where(col == 0, kl_what, 0.0)
                      + jnp.where(col == 1, kl_where, 0.0)
                      + jnp.where(col == 2, kl_depth, 0.0)
                      + jnp.where(col == 3, kl_pres, 0.0)
                      + jnp.where(col == 4, ll, 0.0)
                      + jnp.where(col == 5, lengths, 0.0))


def pallas_scalor_sequence(x_seq, act_seq, noise_seq, bg_p,
                           w1_stack, waz_stack, b1_stack, w2_stack, b2_stack, dw, db):
    seq_len, bp, _ = x_seq.shape

    def tmap(t):            # per-timestep blocks
        return (t, 0, 0)

    def wmap(t):            # weight set: slot 0 = discovery (t==0), slot 1 = propagation
        return (jnp.minimum(t, 1), 0, 0)

    def cmap2(t):           # resident (fetched once)
        return (0, 0)

    # TODO(synk): when batch grows beyond one 8-row tile, add a leading batch-tile grid
    # axis marked "parallel" (keep time "arbitrary") to use both v7x TensorCores.
    return pl.pallas_call(
        _seq_step_kernel,
        grid=(seq_len,),
        in_specs=[
            pl.BlockSpec((None, bp, CHW), tmap),                   # x_t
            pl.BlockSpec((None, bp, ACT_DIM), tmap),               # act_{t-1}
            pl.BlockSpec((None, bp, K_OBJ * NOISE_DIM), tmap),     # reparam noise
            pl.BlockSpec((bp, CHW), cmap2),                        # bg (VMEM resident)
            pl.BlockSpec((None, CHW, HIDDEN), wmap),               # w1  (disc | prop)
            pl.BlockSpec((None, AZ_DIM, HIDDEN), wmap),            # waz (zeros | prop)
            pl.BlockSpec((None, 1, HIDDEN), wmap),                 # b1
            pl.BlockSpec((None, HIDDEN, LAT_DIM_PAD), wmap),       # w2 (padded lat head)
            pl.BlockSpec((None, 1, LAT_DIM_PAD), wmap),            # b2
            pl.BlockSpec((Z_WHAT, 4 * HW), cmap2),                 # glimpse dec W (resident)
            pl.BlockSpec((1, 4 * HW), cmap2),                      # glimpse dec b (resident)
        ],
        out_specs=(pl.BlockSpec((None, bp, CHW), tmap),
                   pl.BlockSpec((None, bp, 128), tmap)),
        out_shape=(jax.ShapeDtypeStruct((seq_len, bp, CHW), jnp.float32),
                   jax.ShapeDtypeStruct((seq_len, bp, 128), jnp.float32)),
        scratch_shapes=[pltpu.VMEM((bp, AZ_DIM), jnp.float32)],    # [z_pool | act] carry
        compiler_params=pltpu.CompilerParams(dimension_semantics=("arbitrary",)),
    )(x_seq, act_seq, noise_seq, bg_p,
      w1_stack, waz_stack, b1_stack, w2_stack, b2_stack, dw, db)


# ---------------- background decoder kernel (runs once per forward) -----------
def _bg_dec_kernel(z_ref, w_ref, b_ref, o_ref):
    y = jnp.dot(z_ref[...].astype(jnp.bfloat16), w_ref[...],
                preferred_element_type=jnp.float32) + b_ref[...]
    o_ref[...] = jax.nn.sigmoid(y)


def pallas_bg_decode(z_p, w_bf16, b2d):
    bp, d = z_p.shape
    n = w_bf16.shape[1]
    return pl.pallas_call(
        _bg_dec_kernel,
        grid=(1,),
        in_specs=[_full_spec((bp, d)), _full_spec((d, n)), _full_spec((1, n))],
        out_specs=_full_spec((bp, n)),
        out_shape=jax.ShapeDtypeStruct((bp, n), jnp.float32),
        compiler_params=pltpu.CompilerParams(dimension_semantics=("arbitrary",)),
    )(z_p, w_bf16, b2d)


# ---------------- parameters (deterministic synthetic init) -------------------
def init_params(key):
    ks = jax.random.split(key, 6)

    def w(k, shape):
        return (0.05 * jax.random.normal(k, shape)).astype(jnp.float32)

    return {
        "bg_dec_w": w(ks[0], (BG_WHAT, CHW)),
        "bg_dec_b": jnp.zeros((CHW,), jnp.float32),
        "enc_w": w(ks[1], (CHW, HIDDEN)),
        "enc_b": jnp.zeros((HIDDEN,), jnp.float32),
        "lat_w": w(ks[2], (HIDDEN, LAT_DIM)),
        "lat_b": jnp.zeros((LAT_DIM,), jnp.float32),
        "prop_w": w(ks[3], (PROP_IN, HIDDEN)),
        "prop_b": jnp.zeros((HIDDEN,), jnp.float32),
        "prop_lat_w": w(ks[4], (HIDDEN, LAT_DIM)),
        "prop_lat_b": jnp.zeros((LAT_DIM,), jnp.float32),
        "dec_w": w(ks[5], (Z_WHAT, 4 * HW)),
        "dec_b": jnp.zeros((4 * HW,), jnp.float32),
    }


# ---------------- SCALOR forward (fully jittable, one kernel for the sequence) -
def scalor_forward(params, seq, actions, key):
    bs, seq_len = seq.shape[0], seq.shape[1]
    bp = max(8, ((bs + 7) // 8) * 8)          # pad batch (matmul M) to >= 8 sublanes

    # ---- one-time weight prep (bf16 MXU operands, f32 accumulation in-kernel) ----
    w1_stack = jnp.stack([params["enc_w"], params["prop_w"][:CHW]],
                         axis=0).astype(jnp.bfloat16)                         # [2,768,64]
    waz_prop = jnp.zeros((AZ_DIM, HIDDEN), jnp.float32)
    waz_prop = waz_prop.at[0:Z_ALL].set(params["prop_w"][CHW + ACT_DIM:])
    waz_prop = waz_prop.at[Z_ALL:Z_ALL + ACT_DIM].set(params["prop_w"][CHW:CHW + ACT_DIM])
    waz_stack = jnp.stack([jnp.zeros_like(waz_prop), waz_prop],
                          axis=0).astype(jnp.bfloat16)                        # [2,32,64]
    b1_stack = jnp.stack([params["enc_b"], params["prop_b"]], axis=0).reshape(2, 1, HIDDEN)

    def pad_lat_w(wmat):   # [HIDDEN,108] -> [HIDDEN,128], 32-lane aligned per object
        w3 = wmat.reshape(HIDDEN, K_OBJ, LAT_PER_OBJ)
        w3 = jnp.pad(w3, ((0, 0), (0, 0), (0, LAT_PER_OBJ_PAD - LAT_PER_OBJ)))
        return w3.reshape(HIDDEN, LAT_DIM_PAD)

    def pad_lat_b(bvec):
        b2 = bvec.reshape(K_OBJ, LAT_PER_OBJ)
        b2 = jnp.pad(b2, ((0, 0), (0, LAT_PER_OBJ_PAD - LAT_PER_OBJ)))
        return b2.reshape(LAT_DIM_PAD)

    w2_stack = jnp.stack([pad_lat_w(params["lat_w"]),
                          pad_lat_w(params["prop_lat_w"])], axis=0).astype(jnp.bfloat16)
    b2_stack = jnp.stack([pad_lat_b(params["lat_b"]),
                          pad_lat_b(params["prop_lat_b"])], axis=0).reshape(2, 1, LAT_DIM_PAD)
    dw = params["dec_w"].astype(jnp.bfloat16)
    db = params["dec_b"].reshape(1, 4 * HW)
    bg_w = params["bg_dec_w"].astype(jnp.bfloat16)
    bg_b = params["bg_dec_b"].reshape(1, CHW)

    kbg, knoise = jax.random.split(key)

    # ---- background branch: q_bg = N(0, softplus(1)); bg = BgDecoder(z_bg) ----
    z_bg_std = jax.nn.softplus(jnp.ones((bs, BG_WHAT), jnp.float32))
    z_bg = z_bg_std * jax.random.normal(kbg, (bs, BG_WHAT), dtype=jnp.float32)
    z_bg_p = jnp.pad(z_bg, ((0, bp - bs), (0, 0)))
    bg_p = pallas_bg_decode(z_bg_p, bg_w, bg_b)                               # [bp, CHW]

    # ---- one-time sequence layout: [T, bp, ...], actions shifted by one step ----
    x_seq = jnp.pad(jnp.transpose(seq.reshape(bs, seq_len, CHW), (1, 0, 2)),
                    ((0, 0), (0, bp - bs), (0, 0)))
    act_shift = jnp.concatenate([jnp.zeros((bs, 1, ACT_DIM), jnp.float32),
                                 actions[:, :seq_len - 1]], axis=1)
    act_seq = jnp.pad(jnp.transpose(act_shift, (1, 0, 2)),
                      ((0, 0), (0, bp - bs), (0, 0)))
    noise_seq = jax.random.normal(knoise, (seq_len, bp, K_OBJ * NOISE_DIM),
                                  dtype=jnp.float32)

    # ---- ONE fused kernel for the whole sequence ----
    y_out, stats_out = pallas_scalor_sequence(
        x_seq, act_seq, noise_seq, bg_p,
        w1_stack, waz_stack, b1_stack, w2_stack, b2_stack, dw, db)

    y_seq = jnp.transpose(y_out[:, :bs], (1, 0, 2)).reshape(bs, seq_len, 3, IMG_H, IMG_W)
    kl_what_all = stats_out[:, :bs, 0].T
    kl_where_all = stats_out[:, :bs, 1].T
    kl_depth_all = stats_out[:, :bs, 2].T
    kl_pres_all = stats_out[:, :bs, 3].T
    ll_all = stats_out[:, :bs, 4].T
    counting = stats_out[:, :bs, 5].T
    # kl_z_bg stays zero, matching the reference module (never written in its loop)
    kl_z_bg = jnp.zeros((bs, seq_len), jnp.float32)
    # TODO(synk): edge-type GNN of the propagation tracker not modeled; kl_edge is zero.
    kl_edge_all = jnp.zeros((bs, seq_len), jnp.float32)

    # TODO(synk): per-step discovery/propagation log dicts are minimal stand-ins.
    log_list = [{"log_like": ll_all[:, i]} for i in range(seq_len)]
    log_disc_list = log_list[:1] * seq_len
    log_prop_list = log_list[1:2] + log_list[1:]
    scalor_log_list = [{} for _ in range(seq_len)]

    return (y_seq,
            ll_all.mean(axis=1),
            kl_what_all.mean(axis=1),
            kl_where_all.mean(axis=1),
            kl_depth_all.mean(axis=1),
            kl_pres_all.mean(axis=1),
            kl_z_bg.mean(axis=1),
            kl_edge_all.mean(axis=1),
            counting,
            log_disc_list,
            log_prop_list,
            scalor_log_list)


# ---------------- main ---------------------------------------------------------
if __name__ == "__main__":
    key = jax.random.PRNGKey(0)
    kp, kx, ka, kf = jax.random.split(key, 4)

    params = init_params(kp)
    bs, seq_len = 2, 4
    seq = jax.random.uniform(kx, (bs, seq_len, 3, IMG_H, IMG_W), dtype=jnp.float32)
    actions = jax.random.normal(ka, (bs, seq_len, ACT_DIM), dtype=jnp.float32)

    fwd = jax.jit(scalor_forward)
    out = fwd(params, seq, actions, kf)

    jax.block_until_ready(out[0])
    for o in out[1:9]:
        jax.block_until_ready(o)

    assert out[0].shape == (bs, seq_len, 3, IMG_H, IMG_W)
    assert out[1].shape == (bs,)
    assert out[8].shape == (bs, seq_len)
    print("KERNEL_OK")
</pallas_src>

<mosaic_0001>
module attributes {stable_mosaic.version = 11 : i64} {
  func.func @_bg_dec_kernel(%arg0: i32, %arg1: memref<8x8xf32, #tpu.memory_space<vmem>>, %arg2: memref<8x768xbf16, #tpu.memory_space<vmem>>, %arg3: memref<1x768xf32, #tpu.memory_space<vmem>>, %arg4: memref<8x768xf32, #tpu.memory_space<vmem>>) attributes {dimension_semantics = [#tpu.dimension_semantics<arbitrary>], iteration_bounds = array<i64: 1>, scalar_prefetch = 0 : i64, scratch_operands = 0 : i64, tpu.core_type = #tpu.core_type<tc>, window_params = [{pipeline_mode = #tpu.pipeline_mode<synchronous>, transform_indices = @transform_0, window_bounds = array<i64: 8, 8>}, {pipeline_mode = #tpu.pipeline_mode<synchronous>, transform_indices = @transform_1, window_bounds = array<i64: 8, 768>}, {pipeline_mode = #tpu.pipeline_mode<synchronous>, transform_indices = @transform_2, window_bounds = array<i64: 1, 768>}, {pipeline_mode = #tpu.pipeline_mode<synchronous>, transform_indices = @transform_3, window_bounds = array<i64: 8, 768>}]} {
    %c0 = arith.constant 0 : index
    %c0_0 = arith.constant 0 : index
    %0 = vector.load %arg1[%c0, %c0_0] : memref<8x8xf32, #tpu.memory_space<vmem>>, vector<8x8xf32>
    %1 = arith.truncf %0 : vector<8x8xf32> to vector<8x8xbf16>
    %c0_1 = arith.constant 0 : index
    %c0_2 = arith.constant 0 : index
    %2 = vector.load %arg2[%c0_1, %c0_2] : memref<8x768xbf16, #tpu.memory_space<vmem>>, vector<8x768xbf16>
    %cst = arith.constant dense<0.000000e+00> : vector<8x768xf32>
    %3 = tpu.matmul %1, %2, %cst {dimension_numbers = #tpu.dot_dimension_numbers<[1], [0], [0], [1], [0, 0, 1, 1], [], []>} : vector<8x8xbf16>, vector<8x768xbf16>, vector<8x768xf32> -> vector<8x768xf32>
    %c0_3 = arith.constant 0 : index
    %c0_4 = arith.constant 0 : index
    %4 = vector.load %arg3[%c0_3, %c0_4] : memref<1x768xf32, #tpu.memory_space<vmem>>, vector<1x768xf32>
    %5 = vector.broadcast %4 : vector<1x768xf32> to vector<8x768xf32>
    %6 = arith.addf %3, %5 : vector<8x768xf32>
    %7 = arith.negf %6 : vector<8x768xf32>
    %8 = math.exp %7 : vector<8x768xf32>
    %cst_5 = arith.constant 1.000000e+00 : f32
    %9 = vector.broadcast %cst_5 : f32 to vector<8x768xf32>
    %10 = arith.addf %9, %8 : vector<8x768xf32>
    %11 = arith.divf %9, %10 : vector<8x768xf32>
    %c0_6 = arith.constant 0 : index
    %c0_7 = arith.constant 0 : index
    %12 = vector.load %arg4[%c0_6, %c0_7] : memref<8x768xf32, #tpu.memory_space<vmem>>, vector<8x768xf32>
    tpu.vector_store %arg4[%c0_6, %c0_7], %11 {strides = array<i32>} : memref<8x768xf32, #tpu.memory_space<vmem>>, vector<8x768xf32>,
    return
  }
  func.func @transform_0(%arg0: i32) -> (i32, i32) {
    %c0_i32 = arith.constant 0 : i32
    %c0_i32_0 = arith.constant 0 : i32
    %c0_i32_1 = arith.constant 0 : i32
    return %c0_i32, %c0_i32_0 : i32, i32
  }
  func.func @transform_1(%arg0: i32) -> (i32, i32) {
    %c0_i32 = arith.constant 0 : i32
    %c0_i32_0 = arith.constant 0 : i32
    %c0_i32_1 = arith.constant 0 : i32
    return %c0_i32, %c0_i32_0 : i32, i32
  }
  func.func @transform_2(%arg0: i32) -> (i32, i32) {
    %c0_i32 = arith.constant 0 : i32
    %c0_i32_0 = arith.constant 0 : i32
    %c0_i32_1 = arith.constant 0 : i32
    return %c0_i32, %c0_i32_0 : i32, i32
  }
  func.func @transform_3(%arg0: i32) -> (i32, i32) {
    %c0_i32 = arith.constant 0 : i32
    %c0_i32_0 = arith.constant 0 : i32
    %c0_i32_1 = arith.constant 0 : i32
    return %c0_i32, %c0_i32_0 : i32, i32
  }
}

module attributes {stable_mosaic.version = 11 : i64} {
  func.func @_seq_step_kernel(%arg0: i32, %arg1: memref<1x8x768xf32, #tpu.memory_space<vmem>>, %arg2: memref<1x8x4xf32, #tpu.memory_space<vmem>>, %arg3: memref<1x8x52xf32, #tpu.memory_space<vmem>>, %arg4: memref<8x768xf32, #tpu.memory_space<vmem>>, %arg5: memref<1x768x64xbf16, #tpu.memory_space<vmem>>, %arg6: memref<1x32x64xbf16, #tpu.memory_space<vmem>>, %arg7: memref<1x1x64xf32, #tpu.memory_space<vmem>>, %arg8: memref<1x64x128xbf16, #tpu.memory_space<vmem>>, %arg9: memref<1x1x128xf32, #tpu.memory_space<vmem>>, %arg10: memref<8x1024xbf16, #tpu.memory_space<vmem>>, %arg11: memref<1x1024xf32, #tpu.memory_space<vmem>>, %arg12: memref<1x8x768xf32, #tpu.memory_space<vmem>>, %arg13: memref<1x8x128xf32, #tpu.memory_space<vmem>>, %arg14: memref<8x32xf32, #tpu.memory_space<vmem>>) attributes {dimension_semantics = [#tpu.dimension_semantics<arbitrary>], iteration_bounds = array<i64: 4>, scalar_prefetch = 0 : i64, scratch_operands = 1 : i64, tpu.core_type = #tpu.core_type<tc>, window_params = [{transform_indices = @transform_0, window_bounds = array<i64: 1, 8, 768>}, {transform_indices = @transform_1, window_bounds = array<i64: 1, 8, 4>}, {transform_indices = @transform_2, window_bounds = array<i64: 1, 8, 52>}, {pipeline_mode = #tpu.pipeline_mode<synchronous>, transform_indices = @transform_3, window_bounds = array<i64: 8, 768>}, {transform_indices = @transform_4, window_bounds = array<i64: 1, 768, 64>}, {transform_indices = @transform_5, window_bounds = array<i64: 1, 32, 64>}, {transform_indices = @transform_6, window_bounds = array<i64: 1, 1, 64>}, {transform_indices = @transform_7, window_bounds = array<i64: 1, 64, 128>}, {transform_indices = @transform_8, window_bounds = array<i64: 1, 1, 128>}, {pipeline_mode = #tpu.pipeline_mode<synchronous>, transform_indices = @transform_9, window_bounds = array<i64: 8, 1024>}, {pipeline_mode = #tpu.pipeline_mode<synchronous>, transform_indices = @transform_10, window_bounds = array<i64: 1, 1024>}, {transform_indices = @transform_11, window_bounds = array<i64: 1, 8, 768>}, {transform_indices = @transform_12, window_bounds = array<i64: 1, 8, 128>}]} {
    %c0_i32 = arith.constant 0 : i32
    %0 = arith.cmpi eq, %arg0, %c0_i32 : i32
    %1 = arith.extui %0 : i1 to i32
    %c0_i32_0 = arith.constant 0 : i32
    %2 = arith.cmpi ne, %1, %c0_i32_0 : i32
    scf.if %2 {
      %cst_176 = arith.constant 0.000000e+00 : f32
      %655 = vector.broadcast %cst_176 : f32 to vector<8x32xf32>
      %c0_177 = arith.constant 0 : index
      %c0_178 = arith.constant 0 : index
      %656 = vector.load %arg14[%c0_177, %c0_178] : memref<8x32xf32, #tpu.memory_space<vmem>>, vector<8x32xf32>
      tpu.vector_store %arg14[%c0_177, %c0_178], %655 {strides = array<i32>} : memref<8x32xf32, #tpu.memory_space<vmem>>, vector<8x32xf32>,
    } else {
    }
    %c0 = arith.constant 0 : index
    %c0_1 = arith.constant 0 : index
    %c0_2 = arith.constant 0 : index
    %3 = vector.load %arg2[%c0, %c0_1, %c0_2] : memref<1x8x4xf32, #tpu.memory_space<vmem>>, vector<1x8x4xf32>
    %4 = vector.shape_cast %3 : vector<1x8x4xf32> to vector<8x4xf32>
    %c0_3 = arith.constant 0 : index
    %c16 = arith.constant 16 : index
    %5 = vector.load %arg14[%c0_3, %c16] : memref<8x32xf32, #tpu.memory_space<vmem>>, vector<8x4xf32>
    tpu.vector_store %arg14[%c0_3, %c16], %4 {strides = array<i32>} : memref<8x32xf32, #tpu.memory_space<vmem>>, vector<8x4xf32>,
    %c0_4 = arith.constant 0 : index
    %c0_5 = arith.constant 0 : index
    %c0_6 = arith.constant 0 : index
    %6 = vector.load %arg1[%c0_4, %c0_5, %c0_6] : memref<1x8x768xf32, #tpu.memory_space<vmem>>, vector<1x8x768xf32>
    %7 = vector.shape_cast %6 : vector<1x8x768xf32> to vector<8x768xf32>
    %c0_7 = arith.constant 0 : index
    %c0_8 = arith.constant 0 : index
    %8 = vector.load %arg14[%c0_7, %c0_8] : memref<8x32xf32, #tpu.memory_space<vmem>>, vector<8x32xf32>
    %c0_9 = arith.constant 0 : index
    %c0_10 = arith.constant 0 : index
    %c0_11 = arith.constant 0 : index
    %9 = vector.load %arg3[%c0_9, %c0_10, %c0_11] : memref<1x8x52xf32, #tpu.memory_space<vmem>>, vector<1x8x52xf32>
    %10 = vector.shape_cast %9 : vector<1x8x52xf32> to vector<8x52xf32>
    %c0_12 = arith.constant 0 : index
    %c0_13 = arith.constant 0 : index
    %11 = vector.load %arg4[%c0_12, %c0_13] : memref<8x768xf32, #tpu.memory_space<vmem>>, vector<8x768xf32>
    %12 = arith.truncf %7 : vector<8x768xf32> to vector<8x768xbf16>
    %c0_14 = arith.constant 0 : index
    %c0_15 = arith.constant 0 : index
    %c0_16 = arith.constant 0 : index
    %13 = vector.load %arg5[%c0_14, %c0_15, %c0_16] : memref<1x768x64xbf16, #tpu.memory_space<vmem>>, vector<1x768x64xbf16>
    %14 = vector.shape_cast %13 : vector<1x768x64xbf16> to vector<768x64xbf16>
    %cst = arith.constant dense<0.000000e+00> : vector<8x64xf32>
    %15 = tpu.matmul %12, %14, %cst {dimension_numbers = #tpu.dot_dimension_numbers<[1], [0], [0], [1], [0, 0, 1, 1], [], []>} : vector<8x768xbf16>, vector<768x64xbf16>, vector<8x64xf32> -> vector<8x64xf32>
    %16 = arith.truncf %8 : vector<8x32xf32> to vector<8x32xbf16>
    %c0_17 = arith.constant 0 : index
    %c0_18 = arith.constant 0 : index
    %c0_19 = arith.constant 0 : index
    %17 = vector.load %arg6[%c0_17, %c0_18, %c0_19] : memref<1x32x64xbf16, #tpu.memory_space<vmem>>, vector<1x32x64xbf16>
    %18 = vector.shape_cast %17 : vector<1x32x64xbf16> to vector<32x64xbf16>
    %cst_20 = arith.constant dense<0.000000e+00> : vector<8x64xf32>
    %19 = tpu.matmul %16, %18, %cst_20 {dimension_numbers = #tpu.dot_dimension_numbers<[1], [0], [0], [1], [0, 0, 1, 1], [], []>} : vector<8x32xbf16>, vector<32x64xbf16>, vector<8x64xf32> -> vector<8x64xf32>
    %20 = arith.addf %15, %19 : vector<8x64xf32>
    %c0_21 = arith.constant 0 : index
    %c0_22 = arith.constant 0 : index
    %c0_23 = arith.constant 0 : index
    %21 = vector.load %arg7[%c0_21, %c0_22, %c0_23] : memref<1x1x64xf32, #tpu.memory_space<vmem>>, vector<1x1x64xf32>
    %22 = vector.shape_cast %21 : vector<1x1x64xf32> to vector<1x64xf32>
    %23 = vector.broadcast %22 : vector<1x64xf32> to vector<8x64xf32>
    %24 = arith.addf %20, %23 : vector<8x64xf32>
    %cst_24 = arith.constant 0.000000e+00 : f32
    %25 = vector.broadcast %cst_24 : f32 to vector<8x64xf32>
    %26 = arith.maximumf %24, %25 : vector<8x64xf32>
    %27 = arith.truncf %26 : vector<8x64xf32> to vector<8x64xbf16>
    %c0_25 = arith.constant 0 : index
    %c0_26 = arith.constant 0 : index
    %c0_27 = arith.constant 0 : index
    %28 = vector.load %arg8[%c0_25, %c0_26, %c0_27] : memref<1x64x128xbf16, #tpu.memory_space<vmem>>, vector<1x64x128xbf16>
    %29 = vector.shape_cast %28 : vector<1x64x128xbf16> to vector<64x128xbf16>
    %cst_28 = arith.constant dense<0.000000e+00> : vector<8x128xf32>
    %30 = tpu.matmul %27, %29, %cst_28 {dimension_numbers = #tpu.dot_dimension_numbers<[1], [0], [0], [1], [0, 0, 1, 1], [], []>} : vector<8x64xbf16>, vector<64x128xbf16>, vector<8x128xf32> -> vector<8x128xf32>
    %c0_29 = arith.constant 0 : index
    %c0_30 = arith.constant 0 : index
    %c0_31 = arith.constant 0 : index
    %31 = vector.load %arg9[%c0_29, %c0_30, %c0_31] : memref<1x1x128xf32, #tpu.memory_space<vmem>>, vector<1x1x128xf32>
    %32 = vector.shape_cast %31 : vector<1x1x128xf32> to vector<1x128xf32>
    %33 = vector.broadcast %32 : vector<1x128xf32> to vector<8x128xf32>
    %34 = arith.addf %30, %33 : vector<8x128xf32>
    %cst_32 = arith.constant 2.000000e+01 : f32
    %35 = vector.broadcast %cst_32 : f32 to vector<8x128xf32>
    %36 = arith.cmpf ogt, %34, %35 : vector<8x128xf32>
    %cst_33 = arith.constant 2.000000e+01 : f32
    %37 = vector.broadcast %cst_33 : f32 to vector<8x128xf32>
    %38 = arith.minimumf %34, %37 : vector<8x128xf32>
    %39 = math.exp %38 : vector<8x128xf32>
    %cst_34 = arith.constant 1.000000e+00 : f32
    %40 = vector.broadcast %cst_34 : f32 to vector<8x128xf32>
    %41 = arith.addf %40, %39 : vector<8x128xf32>
    %42 = math.log %41 : vector<8x128xf32>
    %43 = arith.select %36, %34, %42 : vector<8x128xi1>, vector<8x128xf32>
    %cst_35 = arith.constant 9.99999974E-5 : f32
    %44 = vector.broadcast %cst_35 : f32 to vector<8x128xf32>
    %45 = arith.addf %43, %44 : vector<8x128xf32>
    %46 = math.log %45 : vector<8x128xf32>
    %cst_36 = arith.constant 0.000000e+00 : f32
    %47 = vector.broadcast %cst_36 : f32 to vector<8x1xf32>
    %cst_37 = arith.constant 0.000000e+00 : f32
    %48 = vector.broadcast %cst_37 : f32 to vector<8x1xf32>
    %cst_38 = arith.constant 0.000000e+00 : f32
    %49 = vector.broadcast %cst_38 : f32 to vector<8x1xf32>
    %cst_39 = arith.constant 0.000000e+00 : f32
    %50 = vector.broadcast %cst_39 : f32 to vector<8x1xf32>
    %cst_40 = arith.constant 0.000000e+00 : f32
    %51 = vector.broadcast %cst_40 : f32 to vector<8x1xf32>
    %cst_41 = arith.constant 0.000000e+00 : f32
    %52 = vector.broadcast %cst_41 : f32 to vector<8x8xf32>
    %cst_42 = arith.constant 0.000000e+00 : f32
    %53 = vector.broadcast %cst_42 : f32 to vector<8x4xf32>
    %cst_43 = arith.constant 0.000000e+00 : f32
    %54 = vector.broadcast %cst_43 : f32 to vector<8x1xf32>
    %cst_44 = arith.constant 0.000000e+00 : f32
    %55 = vector.broadcast %cst_44 : f32 to vector<8x1xf32>
    %56 = vector.extract_strided_slice %34 {offsets = [0, 0], sizes = [8, 8], strides = [1, 1]} : vector<8x128xf32> to vector<8x8xf32>
    %57 = vector.extract_strided_slice %45 {offsets = [0, 8], sizes = [8, 8], strides = [1, 1]} : vector<8x128xf32> to vector<8x8xf32>
    %58 = vector.extract_strided_slice %46 {offsets = [0, 8], sizes = [8, 8], strides = [1, 1]} : vector<8x128xf32> to vector<8x8xf32>
    %59 = vector.extract_strided_slice %34 {offsets = [0, 16], sizes = [8, 4], strides = [1, 1]} : vector<8x128xf32> to vector<8x4xf32>
    %60 = vector.extract_strided_slice %45 {offsets = [0, 20], sizes = [8, 4], strides = [1, 1]} : vector<8x128xf32> to vector<8x4xf32>
    %61 = vector.extract_strided_slice %46 {offsets = [0, 20], sizes = [8, 4], strides = [1, 1]} : vector<8x128xf32> to vector<8x4xf32>
    %62 = vector.extract_strided_slice %34 {offsets = [0, 24], sizes = [8, 1], strides = [1, 1]} : vector<8x128xf32> to vector<8x1xf32>
    %63 = vector.extract_strided_slice %45 {offsets = [0, 25], sizes = [8, 1], strides = [1, 1]} : vector<8x128xf32> to vector<8x1xf32>
    %64 = vector.extract_strided_slice %46 {offsets = [0, 25], sizes = [8, 1], strides = [1, 1]} : vector<8x128xf32> to vector<8x1xf32>
    %65 = vector.extract_strided_slice %34 {offsets = [0, 26], sizes = [8, 1], strides = [1, 1]} : vector<8x128xf32> to vector<8x1xf32>
    %66 = vector.extract_strided_slice %10 {offsets = [0, 0], sizes = [8, 8], strides = [1, 1]} : vector<8x52xf32> to vector<8x8xf32>
    %67 = arith.mulf %57, %66 : vector<8x8xf32>
    %68 = arith.addf %56, %67 : vector<8x8xf32>
    %69 = vector.extract_strided_slice %10 {offsets = [0, 8], sizes = [8, 4], strides = [1, 1]} : vector<8x52xf32> to vector<8x4xf32>
    %70 = arith.mulf %60, %69 : vector<8x4xf32>
    %71 = arith.addf %59, %70 : vector<8x4xf32>
    %72 = vector.extract_strided_slice %10 {offsets = [0, 12], sizes = [8, 1], strides = [1, 1]} : vector<8x52xf32> to vector<8x1xf32>
    %73 = arith.mulf %63, %72 : vector<8x1xf32>
    %74 = arith.addf %62, %73 : vector<8x1xf32>
    %75 = arith.negf %65 : vector<8x1xf32>
    %76 = math.exp %75 : vector<8x1xf32>
    %cst_45 = arith.constant 1.000000e+00 : f32
    %77 = vector.broadcast %cst_45 : f32 to vector<8x1xf32>
    %78 = arith.addf %77, %76 : vector<8x1xf32>
    %79 = arith.divf %77, %78 : vector<8x1xf32>
    %cst_46 = arith.constant 0.000000e+00 : f32
    %80 = vector.broadcast %cst_46 : f32 to vector<8x8xf32>
    %81 = arith.subf %80, %58 : vector<8x8xf32>
    %82 = arith.mulf %57, %57 : vector<8x8xf32>
    %83 = arith.mulf %56, %56 : vector<8x8xf32>
    %84 = arith.addf %82, %83 : vector<8x8xf32>
    %cst_47 = arith.constant 5.000000e-01 : f32
    %85 = vector.broadcast %cst_47 : f32 to vector<8x8xf32>
    %86 = arith.mulf %85, %84 : vector<8x8xf32>
    %87 = arith.addf %81, %86 : vector<8x8xf32>
    %cst_48 = arith.constant 5.000000e-01 : f32
    %88 = vector.broadcast %cst_48 : f32 to vector<8x8xf32>
    %89 = arith.subf %87, %88 : vector<8x8xf32>
    %cst_49 = arith.constant dense<0.000000e+00> : vector<8xf32>
    %90 = vector.multi_reduction <add>, %89, %cst_49 [1] : vector<8x8xf32> to vector<8xf32>
    %91 = vector.shape_cast %90 : vector<8xf32> to vector<8x1xf32>
    %92 = arith.addf %47, %91 : vector<8x1xf32>
    %cst_50 = arith.constant 0.000000e+00 : f32
    %93 = vector.broadcast %cst_50 : f32 to vector<8x4xf32>
    %94 = arith.subf %93, %61 : vector<8x4xf32>
    %95 = arith.mulf %60, %60 : vector<8x4xf32>
    %96 = arith.mulf %59, %59 : vector<8x4xf32>
    %97 = arith.addf %95, %96 : vector<8x4xf32>
    %cst_51 = arith.constant 5.000000e-01 : f32
    %98 = vector.broadcast %cst_51 : f32 to vector<8x4xf32>
    %99 = arith.mulf %98, %97 : vector<8x4xf32>
    %100 = arith.addf %94, %99 : vector<8x4xf32>
    %cst_52 = arith.constant 5.000000e-01 : f32
    %101 = vector.broadcast %cst_52 : f32 to vector<8x4xf32>
    %102 = arith.subf %100, %101 : vector<8x4xf32>
    %cst_53 = arith.constant dense<0.000000e+00> : vector<8xf32>
    %103 = vector.multi_reduction <add>, %102, %cst_53 [1] : vector<8x4xf32> to vector<8xf32>
    %104 = vector.shape_cast %103 : vector<8xf32> to vector<8x1xf32>
    %105 = arith.addf %48, %104 : vector<8x1xf32>
    %cst_54 = arith.constant 0.000000e+00 : f32
    %106 = vector.broadcast %cst_54 : f32 to vector<8x1xf32>
    %107 = arith.subf %106, %64 : vector<8x1xf32>
    %108 = arith.mulf %63, %63 : vector<8x1xf32>
    %109 = arith.mulf %62, %62 : vector<8x1xf32>
    %110 = arith.addf %108, %109 : vector<8x1xf32>
    %cst_55 = arith.constant 5.000000e-01 : f32
    %111 = vector.broadcast %cst_55 : f32 to vector<8x1xf32>
    %112 = arith.mulf %111, %110 : vector<8x1xf32>
    %113 = arith.addf %107, %112 : vector<8x1xf32>
    %cst_56 = arith.constant 5.000000e-01 : f32
    %114 = vector.broadcast %cst_56 : f32 to vector<8x1xf32>
    %115 = arith.subf %113, %114 : vector<8x1xf32>
    %cst_57 = arith.constant dense<0.000000e+00> : vector<8xf32>
    %116 = vector.multi_reduction <add>, %115, %cst_57 [1] : vector<8x1xf32> to vector<8xf32>
    %117 = vector.shape_cast %116 : vector<8xf32> to vector<8x1xf32>
    %118 = arith.addf %49, %117 : vector<8x1xf32>
    %cst_58 = arith.constant 1.000000e-15 : f32
    %119 = vector.broadcast %cst_58 : f32 to vector<8x1xf32>
    %120 = arith.addf %79, %119 : vector<8x1xf32>
    %121 = math.log %120 : vector<8x1xf32>
    %cst_59 = arith.constant -4.60517025 : f32
    %122 = vector.broadcast %cst_59 : f32 to vector<8x1xf32>
    %123 = arith.subf %121, %122 : vector<8x1xf32>
    %124 = arith.mulf %79, %123 : vector<8x1xf32>
    %cst_60 = arith.constant 1.000000e+00 : f32
    %125 = vector.broadcast %cst_60 : f32 to vector<8x1xf32>
    %126 = arith.subf %125, %79 : vector<8x1xf32>
    %cst_61 = arith.constant 1.000000e+00 : f32
    %127 = vector.broadcast %cst_61 : f32 to vector<8x1xf32>
    %128 = arith.subf %127, %79 : vector<8x1xf32>
    %cst_62 = arith.constant 1.000000e-15 : f32
    %129 = vector.broadcast %cst_62 : f32 to vector<8x1xf32>
    %130 = arith.addf %128, %129 : vector<8x1xf32>
    %131 = math.log %130 : vector<8x1xf32>
    %cst_63 = arith.constant -0.0100503359 : f32
    %132 = vector.broadcast %cst_63 : f32 to vector<8x1xf32>
    %133 = arith.subf %131, %132 : vector<8x1xf32>
    %134 = arith.mulf %126, %133 : vector<8x1xf32>
    %135 = arith.addf %124, %134 : vector<8x1xf32>
    %136 = arith.addf %50, %135 : vector<8x1xf32>
    %cst_64 = arith.constant 0.699999988 : f32
    %137 = vector.broadcast %cst_64 : f32 to vector<8x1xf32>
    %138 = arith.cmpf ogt, %79, %137 : vector<8x1xf32>
    %139 = arith.extui %138 : vector<8x1xi1> to vector<8x1xi32>
    %140 = arith.sitofp %139 : vector<8x1xi32> to vector<8x1xf32>
    %141 = arith.addf %51, %140 : vector<8x1xf32>
    %142 = vector.broadcast %140 : vector<8x1xf32> to vector<8x8xf32>
    %143 = arith.mulf %68, %142 : vector<8x8xf32>
    %144 = arith.addf %52, %143 : vector<8x8xf32>
    %145 = vector.broadcast %140 : vector<8x1xf32> to vector<8x4xf32>
    %146 = arith.mulf %71, %145 : vector<8x4xf32>
    %147 = arith.addf %53, %146 : vector<8x4xf32>
    %148 = arith.mulf %74, %140 : vector<8x1xf32>
    %149 = arith.addf %54, %148 : vector<8x1xf32>
    %150 = arith.mulf %79, %140 : vector<8x1xf32>
    %151 = arith.addf %55, %150 : vector<8x1xf32>
    %152 = vector.extract_strided_slice %34 {offsets = [0, 32], sizes = [8, 8], strides = [1, 1]} : vector<8x128xf32> to vector<8x8xf32>
    %153 = vector.extract_strided_slice %45 {offsets = [0, 40], sizes = [8, 8], strides = [1, 1]} : vector<8x128xf32> to vector<8x8xf32>
    %154 = vector.extract_strided_slice %46 {offsets = [0, 40], sizes = [8, 8], strides = [1, 1]} : vector<8x128xf32> to vector<8x8xf32>
    %155 = vector.extract_strided_slice %34 {offsets = [0, 48], sizes = [8, 4], strides = [1, 1]} : vector<8x128xf32> to vector<8x4xf32>
    %156 = vector.extract_strided_slice %45 {offsets = [0, 52], sizes = [8, 4], strides = [1, 1]} : vector<8x128xf32> to vector<8x4xf32>
    %157 = vector.extract_strided_slice %46 {offsets = [0, 52], sizes = [8, 4], strides = [1, 1]} : vector<8x128xf32> to vector<8x4xf32>
    %158 = vector.extract_strided_slice %34 {offsets = [0, 56], sizes = [8, 1], strides = [1, 1]} : vector<8x128xf32> to vector<8x1xf32>
    %159 = vector.extract_strided_slice %45 {offsets = [0, 57], sizes = [8, 1], strides = [1, 1]} : vector<8x128xf32> to vector<8x1xf32>
    %160 = vector.extract_strided_slice %46 {offsets = [0, 57], sizes = [8, 1], strides = [1, 1]} : vector<8x128xf32> to vector<8x1xf32>
    %161 = vector.extract_strided_slice %34 {offsets = [0, 58], sizes = [8, 1], strides = [1, 1]} : vector<8x128xf32> to vector<8x1xf32>
    %162 = vector.extract_strided_slice %10 {offsets = [0, 13], sizes = [8, 8], strides = [1, 1]} : vector<8x52xf32> to vector<8x8xf32>
    %163 = arith.mulf %153, %162 : vector<8x8xf32>
    %164 = arith.addf %152, %163 : vector<8x8xf32>
    %165 = vector.extract_strided_slice %10 {offsets = [0, 21], sizes = [8, 4], strides = [1, 1]} : vector<8x52xf32> to vector<8x4xf32>
    %166 = arith.mulf %156, %165 : vector<8x4xf32>
    %167 = arith.addf %155, %166 : vector<8x4xf32>
    %168 = vector.extract_strided_slice %10 {offsets = [0, 25], sizes = [8, 1], strides = [1, 1]} : vector<8x52xf32> to vector<8x1xf32>
    %169 = arith.mulf %159, %168 : vector<8x1xf32>
    %170 = arith.addf %158, %169 : vector<8x1xf32>
    %171 = arith.negf %161 : vector<8x1xf32>
    %172 = math.exp %171 : vector<8x1xf32>
    %cst_65 = arith.constant 1.000000e+00 : f32
    %173 = vector.broadcast %cst_65 : f32 to vector<8x1xf32>
    %174 = arith.addf %173, %172 : vector<8x1xf32>
    %175 = arith.divf %173, %174 : vector<8x1xf32>
    %cst_66 = arith.constant 0.000000e+00 : f32
    %176 = vector.broadcast %cst_66 : f32 to vector<8x8xf32>
    %177 = arith.subf %176, %154 : vector<8x8xf32>
    %178 = arith.mulf %153, %153 : vector<8x8xf32>
    %179 = arith.mulf %152, %152 : vector<8x8xf32>
    %180 = arith.addf %178, %179 : vector<8x8xf32>
    %cst_67 = arith.constant 5.000000e-01 : f32
    %181 = vector.broadcast %cst_67 : f32 to vector<8x8xf32>
    %182 = arith.mulf %181, %180 : vector<8x8xf32>
    %183 = arith.addf %177, %182 : vector<8x8xf32>
    %cst_68 = arith.constant 5.000000e-01 : f32
    %184 = vector.broadcast %cst_68 : f32 to vector<8x8xf32>
    %185 = arith.subf %183, %184 : vector<8x8xf32>
    %cst_69 = arith.constant dense<0.000000e+00> : vector<8xf32>
    %186 = vector.multi_reduction <add>, %185, %cst_69 [1] : vector<8x8xf32> to vector<8xf32>
    %187 = vector.shape_cast %186 : vector<8xf32> to vector<8x1xf32>
    %188 = arith.addf %92, %187 : vector<8x1xf32>
    %cst_70 = arith.constant 0.000000e+00 : f32
    %189 = vector.broadcast %cst_70 : f32 to vector<8x4xf32>
    %190 = arith.subf %189, %157 : vector<8x4xf32>
    %191 = arith.mulf %156, %156 : vector<8x4xf32>
    %192 = arith.mulf %155, %155 : vector<8x4xf32>
    %193 = arith.addf %191, %192 : vector<8x4xf32>
    %cst_71 = arith.constant 5.000000e-01 : f32
    %194 = vector.broadcast %cst_71 : f32 to vector<8x4xf32>
    %195 = arith.mulf %194, %193 : vector<8x4xf32>
    %196 = arith.addf %190, %195 : vector<8x4xf32>
    %cst_72 = arith.constant 5.000000e-01 : f32
    %197 = vector.broadcast %cst_72 : f32 to vector<8x4xf32>
    %198 = arith.subf %196, %197 : vector<8x4xf32>
    %cst_73 = arith.constant dense<0.000000e+00> : vector<8xf32>
    %199 = vector.multi_reduction <add>, %198, %cst_73 [1] : vector<8x4xf32> to vector<8xf32>
    %200 = vector.shape_cast %199 : vector<8xf32> to vector<8x1xf32>
    %201 = arith.addf %105, %200 : vector<8x1xf32>
    %cst_74 = arith.constant 0.000000e+00 : f32
    %202 = vector.broadcast %cst_74 : f32 to vector<8x1xf32>
    %203 = arith.subf %202, %160 : vector<8x1xf32>
    %204 = arith.mulf %159, %159 : vector<8x1xf32>
    %205 = arith.mulf %158, %158 : vector<8x1xf32>
    %206 = arith.addf %204, %205 : vector<8x1xf32>
    %cst_75 = arith.constant 5.000000e-01 : f32
    %207 = vector.broadcast %cst_75 : f32 to vector<8x1xf32>
    %208 = arith.mulf %207, %206 : vector<8x1xf32>
    %209 = arith.addf %203, %208 : vector<8x1xf32>
    %cst_76 = arith.constant 5.000000e-01 : f32
    %210 = vector.broadcast %cst_76 : f32 to vector<8x1xf32>
    %211 = arith.subf %209, %210 : vector<8x1xf32>
    %cst_77 = arith.constant dense<0.000000e+00> : vector<8xf32>
    %212 = vector.multi_reduction <add>, %211, %cst_77 [1] : vector<8x1xf32> to vector<8xf32>
    %213 = vector.shape_cast %212 : vector<8xf32> to vector<8x1xf32>
    %214 = arith.addf %118, %213 : vector<8x1xf32>
    %cst_78 = arith.constant 1.000000e-15 : f32
    %215 = vector.broadcast %cst_78 : f32 to vector<8x1xf32>
    %216 = arith.addf %175, %215 : vector<8x1xf32>
    %217 = math.log %216 : vector<8x1xf32>
    %cst_79 = arith.constant -4.60517025 : f32
    %218 = vector.broadcast %cst_79 : f32 to vector<8x1xf32>
    %219 = arith.subf %217, %218 : vector<8x1xf32>
    %220 = arith.mulf %175, %219 : vector<8x1xf32>
    %cst_80 = arith.constant 1.000000e+00 : f32
    %221 = vector.broadcast %cst_80 : f32 to vector<8x1xf32>
    %222 = arith.subf %221, %175 : vector<8x1xf32>
    %cst_81 = arith.constant 1.000000e+00 : f32
    %223 = vector.broadcast %cst_81 : f32 to vector<8x1xf32>
    %224 = arith.subf %223, %175 : vector<8x1xf32>
    %cst_82 = arith.constant 1.000000e-15 : f32
    %225 = vector.broadcast %cst_82 : f32 to vector<8x1xf32>
    %226 = arith.addf %224, %225 : vector<8x1xf32>
    %227 = math.log %226 : vector<8x1xf32>
    %cst_83 = arith.constant -0.0100503359 : f32
    %228 = vector.broadcast %cst_83 : f32 to vector<8x1xf32>
    %229 = arith.subf %227, %228 : vector<8x1xf32>
    %230 = arith.mulf %222, %229 : vector<8x1xf32>
    %231 = arith.addf %220, %230 : vector<8x1xf32>
    %232 = arith.addf %136, %231 : vector<8x1xf32>
    %cst_84 = arith.constant 0.699999988 : f32
    %233 = vector.broadcast %cst_84 : f32 to vector<8x1xf32>
    %234 = arith.cmpf ogt, %175, %233 : vector<8x1xf32>
    %235 = arith.extui %234 : vector<8x1xi1> to vector<8x1xi32>
    %236 = arith.sitofp %235 : vector<8x1xi32> to vector<8x1xf32>
    %237 = arith.addf %141, %236 : vector<8x1xf32>
    %238 = vector.broadcast %236 : vector<8x1xf32> to vector<8x8xf32>
    %239 = arith.mulf %164, %238 : vector<8x8xf32>
    %240 = arith.addf %144, %239 : vector<8x8xf32>
    %241 = vector.broadcast %236 : vector<8x1xf32> to vector<8x4xf32>
    %242 = arith.mulf %167, %241 : vector<8x4xf32>
    %243 = arith.addf %147, %242 : vector<8x4xf32>
    %244 = arith.mulf %170, %236 : vector<8x1xf32>
    %245 = arith.addf %149, %244 : vector<8x1xf32>
    %246 = arith.mulf %175, %236 : vector<8x1xf32>
    %247 = arith.addf %151, %246 : vector<8x1xf32>
    %248 = vector.extract_strided_slice %34 {offsets = [0, 64], sizes = [8, 8], strides = [1, 1]} : vector<8x128xf32> to vector<8x8xf32>
    %249 = vector.extract_strided_slice %45 {offsets = [0, 72], sizes = [8, 8], strides = [1, 1]} : vector<8x128xf32> to vector<8x8xf32>
    %250 = vector.extract_strided_slice %46 {offsets = [0, 72], sizes = [8, 8], strides = [1, 1]} : vector<8x128xf32> to vector<8x8xf32>
    %251 = vector.extract_strided_slice %34 {offsets = [0, 80], sizes = [8, 4], strides = [1, 1]} : vector<8x128xf32> to vector<8x4xf32>
    %252 = vector.extract_strided_slice %45 {offsets = [0, 84], sizes = [8, 4], strides = [1, 1]} : vector<8x128xf32> to vector<8x4xf32>
    %253 = vector.extract_strided_slice %46 {offsets = [0, 84], sizes = [8, 4], strides = [1, 1]} : vector<8x128xf32> to vector<8x4xf32>
    %254 = vector.extract_strided_slice %34 {offsets = [0, 88], sizes = [8, 1], strides = [1, 1]} : vector<8x128xf32> to vector<8x1xf32>
    %255 = vector.extract_strided_slice %45 {offsets = [0, 89], sizes = [8, 1], strides = [1, 1]} : vector<8x128xf32> to vector<8x1xf32>
    %256 = vector.extract_strided_slice %46 {offsets = [0, 89], sizes = [8, 1], strides = [1, 1]} : vector<8x128xf32> to vector<8x1xf32>
    %257 = vector.extract_strided_slice %34 {offsets = [0, 90], sizes = [8, 1], strides = [1, 1]} : vector<8x128xf32> to vector<8x1xf32>
    %258 = vector.extract_strided_slice %10 {offsets = [0, 26], sizes = [8, 8], strides = [1, 1]} : vector<8x52xf32> to vector<8x8xf32>
    %259 = arith.mulf %249, %258 : vector<8x8xf32>
    %260 = arith.addf %248, %259 : vector<8x8xf32>
    %261 = vector.extract_strided_slice %10 {offsets = [0, 34], sizes = [8, 4], strides = [1, 1]} : vector<8x52xf32> to vector<8x4xf32>
    %262 = arith.mulf %252, %261 : vector<8x4xf32>
    %263 = arith.addf %251, %262 : vector<8x4xf32>
    %264 = vector.extract_strided_slice %10 {offsets = [0, 38], sizes = [8, 1], strides = [1, 1]} : vector<8x52xf32> to vector<8x1xf32>
    %265 = arith.mulf %255, %264 : vector<8x1xf32>
    %266 = arith.addf %254, %265 : vector<8x1xf32>
    %267 = arith.negf %257 : vector<8x1xf32>
    %268 = math.exp %267 : vector<8x1xf32>
    %cst_85 = arith.constant 1.000000e+00 : f32
    %269 = vector.broadcast %cst_85 : f32 to vector<8x1xf32>
    %270 = arith.addf %269, %268 : vector<8x1xf32>
    %271 = arith.divf %269, %270 : vector<8x1xf32>
    %cst_86 = arith.constant 0.000000e+00 : f32
    %272 = vector.broadcast %cst_86 : f32 to vector<8x8xf32>
    %273 = arith.subf %272, %250 : vector<8x8xf32>
    %274 = arith.mulf %249, %249 : vector<8x8xf32>
    %275 = arith.mulf %248, %248 : vector<8x8xf32>
    %276 = arith.addf %274, %275 : vector<8x8xf32>
    %cst_87 = arith.constant 5.000000e-01 : f32
    %277 = vector.broadcast %cst_87 : f32 to vector<8x8xf32>
    %278 = arith.mulf %277, %276 : vector<8x8xf32>
    %279 = arith.addf %273, %278 : vector<8x8xf32>
    %cst_88 = arith.constant 5.000000e-01 : f32
    %280 = vector.broadcast %cst_88 : f32 to vector<8x8xf32>
    %281 = arith.subf %279, %280 : vector<8x8xf32>
    %cst_89 = arith.constant dense<0.000000e+00> : vector<8xf32>
    %282 = vector.multi_reduction <add>, %281, %cst_89 [1] : vector<8x8xf32> to vector<8xf32>
    %283 = vector.shape_cast %282 : vector<8xf32> to vector<8x1xf32>
    %284 = arith.addf %188, %283 : vector<8x1xf32>
    %cst_90 = arith.constant 0.000000e+00 : f32
    %285 = vector.broadcast %cst_90 : f32 to vector<8x4xf32>
    %286 = arith.subf %285, %253 : vector<8x4xf32>
    %287 = arith.mulf %252, %252 : vector<8x4xf32>
    %288 = arith.mulf %251, %251 : vector<8x4xf32>
    %289 = arith.addf %287, %288 : vector<8x4xf32>
    %cst_91 = arith.constant 5.000000e-01 : f32
    %290 = vector.broadcast %cst_91 : f32 to vector<8x4xf32>
    %291 = arith.mulf %290, %289 : vector<8x4xf32>
    %292 = arith.addf %286, %291 : vector<8x4xf32>
    %cst_92 = arith.constant 5.000000e-01 : f32
    %293 = vector.broadcast %cst_92 : f32 to vector<8x4xf32>
    %294 = arith.subf %292, %293 : vector<8x4xf32>
    %cst_93 = arith.constant dense<0.000000e+00> : vector<8xf32>
    %295 = vector.multi_reduction <add>, %294, %cst_93 [1] : vector<8x4xf32> to vector<8xf32>
    %296 = vector.shape_cast %295 : vector<8xf32> to vector<8x1xf32>
    %297 = arith.addf %201, %296 : vector<8x1xf32>
    %cst_94 = arith.constant 0.000000e+00 : f32
    %298 = vector.broadcast %cst_94 : f32 to vector<8x1xf32>
    %299 = arith.subf %298, %256 : vector<8x1xf32>
    %300 = arith.mulf %255, %255 : vector<8x1xf32>
    %301 = arith.mulf %254, %254 : vector<8x1xf32>
    %302 = arith.addf %300, %301 : vector<8x1xf32>
    %cst_95 = arith.constant 5.000000e-01 : f32
    %303 = vector.broadcast %cst_95 : f32 to vector<8x1xf32>
    %304 = arith.mulf %303, %302 : vector<8x1xf32>
    %305 = arith.addf %299, %304 : vector<8x1xf32>
    %cst_96 = arith.constant 5.000000e-01 : f32
    %306 = vector.broadcast %cst_96 : f32 to vector<8x1xf32>
    %307 = arith.subf %305, %306 : vector<8x1xf32>
    %cst_97 = arith.constant dense<0.000000e+00> : vector<8xf32>
    %308 = vector.multi_reduction <add>, %307, %cst_97 [1] : vector<8x1xf32> to vector<8xf32>
    %309 = vector.shape_cast %308 : vector<8xf32> to vector<8x1xf32>
    %310 = arith.addf %214, %309 : vector<8x1xf32>
    %cst_98 = arith.constant 1.000000e-15 : f32
    %311 = vector.broadcast %cst_98 : f32 to vector<8x1xf32>
    %312 = arith.addf %271, %311 : vector<8x1xf32>
    %313 = math.log %312 : vector<8x1xf32>
    %cst_99 = arith.constant -4.60517025 : f32
    %314 = vector.broadcast %cst_99 : f32 to vector<8x1xf32>
    %315 = arith.subf %313, %314 : vector<8x1xf32>
    %316 = arith.mulf %271, %315 : vector<8x1xf32>
    %cst_100 = arith.constant 1.000000e+00 : f32
    %317 = vector.broadcast %cst_100 : f32 to vector<8x1xf32>
    %318 = arith.subf %317, %271 : vector<8x1xf32>
    %cst_101 = arith.constant 1.000000e+00 : f32
    %319 = vector.broadcast %cst_101 : f32 to vector<8x1xf32>
    %320 = arith.subf %319, %271 : vector<8x1xf32>
    %cst_102 = arith.constant 1.000000e-15 : f32
    %321 = vector.broadcast %cst_102 : f32 to vector<8x1xf32>
    %322 = arith.addf %320, %321 : vector<8x1xf32>
    %323 = math.log %322 : vector<8x1xf32>
    %cst_103 = arith.constant -0.0100503359 : f32
    %324 = vector.broadcast %cst_103 : f32 to vector<8x1xf32>
    %325 = arith.subf %323, %324 : vector<8x1xf32>
    %326 = arith.mulf %318, %325 : vector<8x1xf32>
    %327 = arith.addf %316, %326 : vector<8x1xf32>
    %328 = arith.addf %232, %327 : vector<8x1xf32>
    %cst_104 = arith.constant 0.699999988 : f32
    %329 = vector.broadcast %cst_104 : f32 to vector<8x1xf32>
    %330 = arith.cmpf ogt, %271, %329 : vector<8x1xf32>
    %331 = arith.extui %330 : vector<8x1xi1> to vector<8x1xi32>
    %332 = arith.sitofp %331 : vector<8x1xi32> to vector<8x1xf32>
    %333 = arith.addf %237, %332 : vector<8x1xf32>
    %334 = vector.broadcast %332 : vector<8x1xf32> to vector<8x8xf32>
    %335 = arith.mulf %260, %334 : vector<8x8xf32>
    %336 = arith.addf %240, %335 : vector<8x8xf32>
    %337 = vector.broadcast %332 : vector<8x1xf32> to vector<8x4xf32>
    %338 = arith.mulf %263, %337 : vector<8x4xf32>
    %339 = arith.addf %243, %338 : vector<8x4xf32>
    %340 = arith.mulf %266, %332 : vector<8x1xf32>
    %341 = arith.addf %245, %340 : vector<8x1xf32>
    %342 = arith.mulf %271, %332 : vector<8x1xf32>
    %343 = arith.addf %247, %342 : vector<8x1xf32>
    %344 = vector.extract_strided_slice %34 {offsets = [0, 96], sizes = [8, 8], strides = [1, 1]} : vector<8x128xf32> to vector<8x8xf32>
    %345 = vector.extract_strided_slice %45 {offsets = [0, 104], sizes = [8, 8], strides = [1, 1]} : vector<8x128xf32> to vector<8x8xf32>
    %346 = vector.extract_strided_slice %46 {offsets = [0, 104], sizes = [8, 8], strides = [1, 1]} : vector<8x128xf32> to vector<8x8xf32>
    %347 = vector.extract_strided_slice %34 {offsets = [0, 112], sizes = [8, 4], strides = [1, 1]} : vector<8x128xf32> to vector<8x4xf32>
    %348 = vector.extract_strided_slice %45 {offsets = [0, 116], sizes = [8, 4], strides = [1, 1]} : vector<8x128xf32> to vector<8x4xf32>
    %349 = vector.extract_strided_slice %46 {offsets = [0, 116], sizes = [8, 4], strides = [1, 1]} : vector<8x128xf32> to vector<8x4xf32>
    %350 = vector.extract_strided_slice %34 {offsets = [0, 120], sizes = [8, 1], strides = [1, 1]} : vector<8x128xf32> to vector<8x1xf32>
    %351 = vector.extract_strided_slice %45 {offsets = [0, 121], sizes = [8, 1], strides = [1, 1]} : vector<8x128xf32> to vector<8x1xf32>
    %352 = vector.extract_strided_slice %46 {offsets = [0, 121], sizes = [8, 1], strides = [1, 1]} : vector<8x128xf32> to vector<8x1xf32>
    %353 = vector.extract_strided_slice %34 {offsets = [0, 122], sizes = [8, 1], strides = [1, 1]} : vector<8x128xf32> to vector<8x1xf32>
    %354 = vector.extract_strided_slice %10 {offsets = [0, 39], sizes = [8, 8], strides = [1, 1]} : vector<8x52xf32> to vector<8x8xf32>
    %355 = arith.mulf %345, %354 : vector<8x8xf32>
    %356 = arith.addf %344, %355 : vector<8x8xf32>
    %357 = vector.extract_strided_slice %10 {offsets = [0, 47], sizes = [8, 4], strides = [1, 1]} : vector<8x52xf32> to vector<8x4xf32>
    %358 = arith.mulf %348, %357 : vector<8x4xf32>
    %359 = arith.addf %347, %358 : vector<8x4xf32>
    %360 = vector.extract_strided_slice %10 {offsets = [0, 51], sizes = [8, 1], strides = [1, 1]} : vector<8x52xf32> to vector<8x1xf32>
    %361 = arith.mulf %351, %360 : vector<8x1xf32>
    %362 = arith.addf %350, %361 : vector<8x1xf32>
    %363 = arith.negf %353 : vector<8x1xf32>
    %364 = math.exp %363 : vector<8x1xf32>
    %cst_105 = arith.constant 1.000000e+00 : f32
    %365 = vector.broadcast %cst_105 : f32 to vector<8x1xf32>
    %366 = arith.addf %365, %364 : vector<8x1xf32>
    %367 = arith.divf %365, %366 : vector<8x1xf32>
    %cst_106 = arith.constant 0.000000e+00 : f32
    %368 = vector.broadcast %cst_106 : f32 to vector<8x8xf32>
    %369 = arith.subf %368, %346 : vector<8x8xf32>
    %370 = arith.mulf %345, %345 : vector<8x8xf32>
    %371 = arith.mulf %344, %344 : vector<8x8xf32>
    %372 = arith.addf %370, %371 : vector<8x8xf32>
    %cst_107 = arith.constant 5.000000e-01 : f32
    %373 = vector.broadcast %cst_107 : f32 to vector<8x8xf32>
    %374 = arith.mulf %373, %372 : vector<8x8xf32>
    %375 = arith.addf %369, %374 : vector<8x8xf32>
    %cst_108 = arith.constant 5.000000e-01 : f32
    %376 = vector.broadcast %cst_108 : f32 to vector<8x8xf32>
    %377 = arith.subf %375, %376 : vector<8x8xf32>
    %cst_109 = arith.constant dense<0.000000e+00> : vector<8xf32>
    %378 = vector.multi_reduction <add>, %377, %cst_109 [1] : vector<8x8xf32> to vector<8xf32>
    %379 = vector.shape_cast %378 : vector<8xf32> to vector<8x1xf32>
    %380 = arith.addf %284, %379 : vector<8x1xf32>
    %cst_110 = arith.constant 0.000000e+00 : f32
    %381 = vector.broadcast %cst_110 : f32 to vector<8x4xf32>
    %382 = arith.subf %381, %349 : vector<8x4xf32>
    %383 = arith.mulf %348, %348 : vector<8x4xf32>
    %384 = arith.mulf %347, %347 : vector<8x4xf32>
    %385 = arith.addf %383, %384 : vector<8x4xf32>
    %cst_111 = arith.constant 5.000000e-01 : f32
    %386 = vector.broadcast %cst_111 : f32 to vector<8x4xf32>
    %387 = arith.mulf %386, %385 : vector<8x4xf32>
    %388 = arith.addf %382, %387 : vector<8x4xf32>
    %cst_112 = arith.constant 5.000000e-01 : f32
    %389 = vector.broadcast %cst_112 : f32 to vector<8x4xf32>
    %390 = arith.subf %388, %389 : vector<8x4xf32>
    %cst_113 = arith.constant dense<0.000000e+00> : vector<8xf32>
    %391 = vector.multi_reduction <add>, %390, %cst_113 [1] : vector<8x4xf32> to vector<8xf32>
    %392 = vector.shape_cast %391 : vector<8xf32> to vector<8x1xf32>
    %393 = arith.addf %297, %392 : vector<8x1xf32>
    %cst_114 = arith.constant 0.000000e+00 : f32
    %394 = vector.broadcast %cst_114 : f32 to vector<8x1xf32>
    %395 = arith.subf %394, %352 : vector<8x1xf32>
    %396 = arith.mulf %351, %351 : vector<8x1xf32>
    %397 = arith.mulf %350, %350 : vector<8x1xf32>
    %398 = arith.addf %396, %397 : vector<8x1xf32>
    %cst_115 = arith.constant 5.000000e-01 : f32
    %399 = vector.broadcast %cst_115 : f32 to vector<8x1xf32>
    %400 = arith.mulf %399, %398 : vector<8x1xf32>
    %401 = arith.addf %395, %400 : vector<8x1xf32>
    %cst_116 = arith.constant 5.000000e-01 : f32
    %402 = vector.broadcast %cst_116 : f32 to vector<8x1xf32>
    %403 = arith.subf %401, %402 : vector<8x1xf32>
    %cst_117 = arith.constant dense<0.000000e+00> : vector<8xf32>
    %404 = vector.multi_reduction <add>, %403, %cst_117 [1] : vector<8x1xf32> to vector<8xf32>
    %405 = vector.shape_cast %404 : vector<8xf32> to vector<8x1xf32>
    %406 = arith.addf %310, %405 : vector<8x1xf32>
    %cst_118 = arith.constant 1.000000e-15 : f32
    %407 = vector.broadcast %cst_118 : f32 to vector<8x1xf32>
    %408 = arith.addf %367, %407 : vector<8x1xf32>
    %409 = math.log %408 : vector<8x1xf32>
    %cst_119 = arith.constant -4.60517025 : f32
    %410 = vector.broadcast %cst_119 : f32 to vector<8x1xf32>
    %411 = arith.subf %409, %410 : vector<8x1xf32>
    %412 = arith.mulf %367, %411 : vector<8x1xf32>
    %cst_120 = arith.constant 1.000000e+00 : f32
    %413 = vector.broadcast %cst_120 : f32 to vector<8x1xf32>
    %414 = arith.subf %413, %367 : vector<8x1xf32>
    %cst_121 = arith.constant 1.000000e+00 : f32
    %415 = vector.broadcast %cst_121 : f32 to vector<8x1xf32>
    %416 = arith.subf %415, %367 : vector<8x1xf32>
    %cst_122 = arith.constant 1.000000e-15 : f32
    %417 = vector.broadcast %cst_122 : f32 to vector<8x1xf32>
    %418 = arith.addf %416, %417 : vector<8x1xf32>
    %419 = math.log %418 : vector<8x1xf32>
    %cst_123 = arith.constant -0.0100503359 : f32
    %420 = vector.broadcast %cst_123 : f32 to vector<8x1xf32>
    %421 = arith.subf %419, %420 : vector<8x1xf32>
    %422 = arith.mulf %414, %421 : vector<8x1xf32>
    %423 = arith.addf %412, %422 : vector<8x1xf32>
    %424 = arith.addf %328, %423 : vector<8x1xf32>
    %cst_124 = arith.constant 0.699999988 : f32
    %425 = vector.broadcast %cst_124 : f32 to vector<8x1xf32>
    %426 = arith.cmpf ogt, %367, %425 : vector<8x1xf32>
    %427 = arith.extui %426 : vector<8x1xi1> to vector<8x1xi32>
    %428 = arith.sitofp %427 : vector<8x1xi32> to vector<8x1xf32>
    %429 = arith.addf %333, %428 : vector<8x1xf32>
    %430 = vector.broadcast %428 : vector<8x1xf32> to vector<8x8xf32>
    %431 = arith.mulf %356, %430 : vector<8x8xf32>
    %432 = arith.addf %336, %431 : vector<8x8xf32>
    %433 = vector.broadcast %428 : vector<8x1xf32> to vector<8x4xf32>
    %434 = arith.mulf %359, %433 : vector<8x4xf32>
    %435 = arith.addf %339, %434 : vector<8x4xf32>
    %436 = arith.mulf %362, %428 : vector<8x1xf32>
    %437 = arith.addf %341, %436 : vector<8x1xf32>
    %438 = arith.mulf %367, %428 : vector<8x1xf32>
    %439 = arith.addf %343, %438 : vector<8x1xf32>
    %c0_125 = arith.constant 0 : index
    %c0_126 = arith.constant 0 : index
    %440 = vector.load %arg14[%c0_125, %c0_126] : memref<8x32xf32, #tpu.memory_space<vmem>>, vector<8x8xf32>
    tpu.vector_store %arg14[%c0_125, %c0_126], %432 {strides = array<i32>} : memref<8x32xf32, #tpu.memory_space<vmem>>, vector<8x8xf32>,
    %c0_127 = arith.constant 0 : index
    %c8 = arith.constant 8 : index
    %441 = vector.load %arg14[%c0_127, %c8] : memref<8x32xf32, #tpu.memory_space<vmem>>, vector<8x4xf32>
    tpu.vector_store %arg14[%c0_127, %c8], %435 {strides = array<i32>} : memref<8x32xf32, #tpu.memory_space<vmem>>, vector<8x4xf32>,
    %c0_128 = arith.constant 0 : index
    %c12 = arith.constant 12 : index
    %442 = vector.load %arg14[%c0_128, %c12] : memref<8x32xf32, #tpu.memory_space<vmem>>, vector<8x1xf32>
    tpu.vector_store %arg14[%c0_128, %c12], %437 {strides = array<i32>} : memref<8x32xf32, #tpu.memory_space<vmem>>, vector<8x1xf32>,
    %c0_129 = arith.constant 0 : index
    %c13 = arith.constant 13 : index
    %443 = vector.load %arg14[%c0_129, %c13] : memref<8x32xf32, #tpu.memory_space<vmem>>, vector<8x1xf32>
    tpu.vector_store %arg14[%c0_129, %c13], %439 {strides = array<i32>} : memref<8x32xf32, #tpu.memory_space<vmem>>, vector<8x1xf32>,
    %444 = vector.extract_strided_slice %435 {offsets = [0, 0], sizes = [8, 2], strides = [1, 1]} : vector<8x4xf32> to vector<8x2xf32>
    %c0_130 = arith.constant 0 : index
    %c14 = arith.constant 14 : index
    %445 = vector.load %arg14[%c0_130, %c14] : memref<8x32xf32, #tpu.memory_space<vmem>>, vector<8x2xf32>
    tpu.vector_store %arg14[%c0_130, %c14], %444 {strides = array<i32>} : memref<8x32xf32, #tpu.memory_space<vmem>>, vector<8x2xf32>,
    %446 = tpu.concatenate %68, %164, %260, %356 in 0 : vector<8x8xf32>, vector<8x8xf32>, vector<8x8xf32>, vector<8x8xf32> -> vector<32x8xf32>
    %447 = arith.truncf %446 : vector<32x8xf32> to vector<32x8xbf16>
    %c0_131 = arith.constant 0 : index
    %c0_132 = arith.constant 0 : index
    %448 = vector.load %arg10[%c0_131, %c0_132] : memref<8x1024xbf16, #tpu.memory_space<vmem>>, vector<8x1024xbf16>
    %cst_133 = arith.constant dense<0.000000e+00> : vector<32x1024xf32>
    %449 = tpu.matmul %447, %448, %cst_133 {dimension_numbers = #tpu.dot_dimension_numbers<[1], [0], [0], [1], [0, 0, 1, 1], [], []>} : vector<32x8xbf16>, vector<8x1024xbf16>, vector<32x1024xf32> -> vector<32x1024xf32>
    %c0_134 = arith.constant 0 : index
    %c0_135 = arith.constant 0 : index
    %450 = vector.load %arg11[%c0_134, %c0_135] : memref<1x1024xf32, #tpu.memory_space<vmem>>, vector<1x1024xf32>
    %451 = vector.broadcast %450 : vector<1x1024xf32> to vector<32x1024xf32>
    %452 = arith.addf %449, %451 : vector<32x1024xf32>
    %453 = arith.negf %452 : vector<32x1024xf32>
    %454 = math.exp %453 : vector<32x1024xf32>
    %cst_136 = arith.constant 1.000000e+00 : f32
    %455 = vector.broadcast %cst_136 : f32 to vector<32x1024xf32>
    %456 = arith.addf %455, %454 : vector<32x1024xf32>
    %457 = arith.divf %455, %456 : vector<32x1024xf32>
    %cst_137 = arith.constant 0.000000e+00 : f32
    %458 = vector.broadcast %cst_137 : f32 to vector<8x256xf32>
    %cst_138 = arith.constant 0.000000e+00 : f32
    %459 = vector.broadcast %cst_138 : f32 to vector<8x256xf32>
    %cst_139 = arith.constant 0.000000e+00 : f32
    %460 = vector.broadcast %cst_139 : f32 to vector<8x256xf32>
    %cst_140 = arith.constant 0.000000e+00 : f32
    %461 = vector.broadcast %cst_140 : f32 to vector<8x256xf32>
    %cst_141 = arith.constant 0.000000e+00 : f32
    %462 = vector.broadcast %cst_141 : f32 to vector<8x256xf32>
    %463 = vector.extract_strided_slice %457 {offsets = [0, 0], sizes = [8, 1024], strides = [1, 1]} : vector<32x1024xf32> to vector<8x1024xf32>
    %464 = vector.extract_strided_slice %463 {offsets = [0, 768], sizes = [8, 256], strides = [1, 1]} : vector<8x1024xf32> to vector<8x256xf32>
    %465 = vector.broadcast %79 : vector<8x1xf32> to vector<8x256xf32>
    %466 = arith.mulf %464, %465 : vector<8x256xf32>
    %cst_142 = arith.constant 0.000000e+00 : f32
    %467 = vector.broadcast %cst_142 : f32 to vector<8x1xf32>
    %468 = arith.subf %467, %74 : vector<8x1xf32>
    %469 = arith.negf %468 : vector<8x1xf32>
    %470 = math.exp %469 : vector<8x1xf32>
    %cst_143 = arith.constant 1.000000e+00 : f32
    %471 = vector.broadcast %cst_143 : f32 to vector<8x1xf32>
    %472 = arith.addf %471, %470 : vector<8x1xf32>
    %473 = arith.divf %471, %472 : vector<8x1xf32>
    %474 = vector.broadcast %473 : vector<8x1xf32> to vector<8x256xf32>
    %475 = arith.mulf %466, %474 : vector<8x256xf32>
    %476 = arith.addf %458, %475 : vector<8x256xf32>
    %477 = arith.addf %459, %466 : vector<8x256xf32>
    %478 = vector.extract_strided_slice %463 {offsets = [0, 0], sizes = [8, 256], strides = [1, 1]} : vector<8x1024xf32> to vector<8x256xf32>
    %479 = arith.mulf %478, %475 : vector<8x256xf32>
    %480 = arith.addf %460, %479 : vector<8x256xf32>
    %481 = vector.extract_strided_slice %463 {offsets = [0, 256], sizes = [8, 256], strides = [1, 1]} : vector<8x1024xf32> to vector<8x256xf32>
    %482 = arith.mulf %481, %475 : vector<8x256xf32>
    %483 = arith.addf %461, %482 : vector<8x256xf32>
    %484 = vector.extract_strided_slice %463 {offsets = [0, 512], sizes = [8, 256], strides = [1, 1]} : vector<8x1024xf32> to vector<8x256xf32>
    %485 = arith.mulf %484, %475 : vector<8x256xf32>
    %486 = arith.addf %462, %485 : vector<8x256xf32>
    %487 = vector.extract_strided_slice %457 {offsets = [8, 0], sizes = [8, 1024], strides = [1, 1]} : vector<32x1024xf32> to vector<8x1024xf32>
    %488 = vector.extract_strided_slice %487 {offsets = [0, 768], sizes = [8, 256], strides = [1, 1]} : vector<8x1024xf32> to vector<8x256xf32>
    %489 = vector.broadcast %175 : vector<8x1xf32> to vector<8x256xf32>
    %490 = arith.mulf %488, %489 : vector<8x256xf32>
    %cst_144 = arith.constant 0.000000e+00 : f32
    %491 = vector.broadcast %cst_144 : f32 to vector<8x1xf32>
    %492 = arith.subf %491, %170 : vector<8x1xf32>
    %493 = arith.negf %492 : vector<8x1xf32>
    %494 = math.exp %493 : vector<8x1xf32>
    %cst_145 = arith.constant 1.000000e+00 : f32
    %495 = vector.broadcast %cst_145 : f32 to vector<8x1xf32>
    %496 = arith.addf %495, %494 : vector<8x1xf32>
    %497 = arith.divf %495, %496 : vector<8x1xf32>
    %498 = vector.broadcast %497 : vector<8x1xf32> to vector<8x256xf32>
    %499 = arith.mulf %490, %498 : vector<8x256xf32>
    %500 = arith.addf %476, %499 : vector<8x256xf32>
    %501 = arith.addf %477, %490 : vector<8x256xf32>
    %502 = vector.extract_strided_slice %487 {offsets = [0, 0], sizes = [8, 256], strides = [1, 1]} : vector<8x1024xf32> to vector<8x256xf32>
    %503 = arith.mulf %502, %499 : vector<8x256xf32>
    %504 = arith.addf %480, %503 : vector<8x256xf32>
    %505 = vector.extract_strided_slice %487 {offsets = [0, 256], sizes = [8, 256], strides = [1, 1]} : vector<8x1024xf32> to vector<8x256xf32>
    %506 = arith.mulf %505, %499 : vector<8x256xf32>
    %507 = arith.addf %483, %506 : vector<8x256xf32>
    %508 = vector.extract_strided_slice %487 {offsets = [0, 512], sizes = [8, 256], strides = [1, 1]} : vector<8x1024xf32> to vector<8x256xf32>
    %509 = arith.mulf %508, %499 : vector<8x256xf32>
    %510 = arith.addf %486, %509 : vector<8x256xf32>
    %511 = vector.extract_strided_slice %457 {offsets = [16, 0], sizes = [8, 1024], strides = [1, 1]} : vector<32x1024xf32> to vector<8x1024xf32>
    %512 = vector.extract_strided_slice %511 {offsets = [0, 768], sizes = [8, 256], strides = [1, 1]} : vector<8x1024xf32> to vector<8x256xf32>
    %513 = vector.broadcast %271 : vector<8x1xf32> to vector<8x256xf32>
    %514 = arith.mulf %512, %513 : vector<8x256xf32>
    %cst_146 = arith.constant 0.000000e+00 : f32
    %515 = vector.broadcast %cst_146 : f32 to vector<8x1xf32>
    %516 = arith.subf %515, %266 : vector<8x1xf32>
    %517 = arith.negf %516 : vector<8x1xf32>
    %518 = math.exp %517 : vector<8x1xf32>
    %cst_147 = arith.constant 1.000000e+00 : f32
    %519 = vector.broadcast %cst_147 : f32 to vector<8x1xf32>
    %520 = arith.addf %519, %518 : vector<8x1xf32>
    %521 = arith.divf %519, %520 : vector<8x1xf32>
    %522 = vector.broadcast %521 : vector<8x1xf32> to vector<8x256xf32>
    %523 = arith.mulf %514, %522 : vector<8x256xf32>
    %524 = arith.addf %500, %523 : vector<8x256xf32>
    %525 = arith.addf %501, %514 : vector<8x256xf32>
    %526 = vector.extract_strided_slice %511 {offsets = [0, 0], sizes = [8, 256], strides = [1, 1]} : vector<8x1024xf32> to vector<8x256xf32>
    %527 = arith.mulf %526, %523 : vector<8x256xf32>
    %528 = arith.addf %504, %527 : vector<8x256xf32>
    %529 = vector.extract_strided_slice %511 {offsets = [0, 256], sizes = [8, 256], strides = [1, 1]} : vector<8x1024xf32> to vector<8x256xf32>
    %530 = arith.mulf %529, %523 : vector<8x256xf32>
    %531 = arith.addf %507, %530 : vector<8x256xf32>
    %532 = vector.extract_strided_slice %511 {offsets = [0, 512], sizes = [8, 256], strides = [1, 1]} : vector<8x1024xf32> to vector<8x256xf32>
    %533 = arith.mulf %532, %523 : vector<8x256xf32>
    %534 = arith.addf %510, %533 : vector<8x256xf32>
    %535 = vector.extract_strided_slice %457 {offsets = [24, 0], sizes = [8, 1024], strides = [1, 1]} : vector<32x1024xf32> to vector<8x1024xf32>
    %536 = vector.extract_strided_slice %535 {offsets = [0, 768], sizes = [8, 256], strides = [1, 1]} : vector<8x1024xf32> to vector<8x256xf32>
    %537 = vector.broadcast %367 : vector<8x1xf32> to vector<8x256xf32>
    %538 = arith.mulf %536, %537 : vector<8x256xf32>
    %cst_148 = arith.constant 0.000000e+00 : f32
    %539 = vector.broadcast %cst_148 : f32 to vector<8x1xf32>
    %540 = arith.subf %539, %362 : vector<8x1xf32>
    %541 = arith.negf %540 : vector<8x1xf32>
    %542 = math.exp %541 : vector<8x1xf32>
    %cst_149 = arith.constant 1.000000e+00 : f32
    %543 = vector.broadcast %cst_149 : f32 to vector<8x1xf32>
    %544 = arith.addf %543, %542 : vector<8x1xf32>
    %545 = arith.divf %543, %544 : vector<8x1xf32>
    %546 = vector.broadcast %545 : vector<8x1xf32> to vector<8x256xf32>
    %547 = arith.mulf %538, %546 : vector<8x256xf32>
    %548 = arith.addf %524, %547 : vector<8x256xf32>
    %549 = arith.addf %525, %538 : vector<8x256xf32>
    %550 = vector.extract_strided_slice %535 {offsets = [0, 0], sizes = [8, 256], strides = [1, 1]} : vector<8x1024xf32> to vector<8x256xf32>
    %551 = arith.mulf %550, %547 : vector<8x256xf32>
    %552 = arith.addf %528, %551 : vector<8x256xf32>
    %553 = vector.extract_strided_slice %535 {offsets = [0, 256], sizes = [8, 256], strides = [1, 1]} : vector<8x1024xf32> to vector<8x256xf32>
    %554 = arith.mulf %553, %547 : vector<8x256xf32>
    %555 = arith.addf %531, %554 : vector<8x256xf32>
    %556 = vector.extract_strided_slice %535 {offsets = [0, 512], sizes = [8, 256], strides = [1, 1]} : vector<8x1024xf32> to vector<8x256xf32>
    %557 = arith.mulf %556, %547 : vector<8x256xf32>
    %558 = arith.addf %534, %557 : vector<8x256xf32>
    %cst_150 = arith.constant 1.000000e-15 : f32
    %559 = vector.broadcast %cst_150 : f32 to vector<8x256xf32>
    %560 = arith.addf %548, %559 : vector<8x256xf32>
    %561 = tpu.reciprocal %560 {approx = true} : vector<8x256xf32> -> vector<8x256xf32>
    %cst_151 = arith.constant 1.000000e+00 : f32
    %562 = vector.broadcast %cst_151 : f32 to vector<8x256xf32>
    %563 = arith.minimumf %549, %562 : vector<8x256xf32>
    %cst_152 = arith.constant 1.000000e+00 : f32
    %564 = vector.broadcast %cst_152 : f32 to vector<8x256xf32>
    %565 = arith.subf %564, %563 : vector<8x256xf32>
    %cst_153 = arith.constant 0.000000e+00 : f32
    %566 = vector.broadcast %cst_153 : f32 to vector<8x1xf32>
    %567 = arith.mulf %552, %561 : vector<8x256xf32>
    %568 = vector.extract_strided_slice %11 {offsets = [0, 0], sizes = [8, 256], strides = [1, 1]} : vector<8x768xf32> to vector<8x256xf32>
    %569 = arith.mulf %565, %568 : vector<8x256xf32>
    %570 = arith.addf %567, %569 : vector<8x256xf32>
    %c0_154 = arith.constant 0 : index
    %c0_155 = arith.constant 0 : index
    %c0_156 = arith.constant 0 : index
    %571 = vector.load %arg12[%c0_154, %c0_155, %c0_156] : memref<1x8x768xf32, #tpu.memory_space<vmem>>, vector<1x8x256xf32>
    %572 = vector.shape_cast %571 : vector<1x8x256xf32> to vector<8x256xf32>
    %573 = vector.shape_cast %570 : vector<8x256xf32> to vector<1x8x256xf32>
    tpu.vector_store %arg12[%c0_154, %c0_155, %c0_156], %573 {strides = array<i32>} : memref<1x8x768xf32, #tpu.memory_space<vmem>>, vector<1x8x256xf32>,
    %574 = vector.extract_strided_slice %7 {offsets = [0, 0], sizes = [8, 256], strides = [1, 1]} : vector<8x768xf32> to vector<8x256xf32>
    %575 = arith.subf %574, %570 : vector<8x256xf32>
    %576 = arith.mulf %575, %575 : vector<8x256xf32>
    %cst_157 = arith.constant dense<0.000000e+00> : vector<8xf32>
    %577 = vector.multi_reduction <add>, %576, %cst_157 [1] : vector<8x256xf32> to vector<8xf32>
    %578 = vector.shape_cast %577 : vector<8xf32> to vector<8x1xf32>
    %579 = arith.addf %566, %578 : vector<8x1xf32>
    %580 = arith.mulf %555, %561 : vector<8x256xf32>
    %581 = vector.extract_strided_slice %11 {offsets = [0, 256], sizes = [8, 256], strides = [1, 1]} : vector<8x768xf32> to vector<8x256xf32>
    %582 = arith.mulf %565, %581 : vector<8x256xf32>
    %583 = arith.addf %580, %582 : vector<8x256xf32>
    %c0_158 = arith.constant 0 : index
    %c0_159 = arith.constant 0 : index
    %c256 = arith.constant 256 : index
    %584 = vector.load %arg12[%c0_158, %c0_159, %c256] : memref<1x8x768xf32, #tpu.memory_space<vmem>>, vector<1x8x256xf32>
    %585 = vector.shape_cast %584 : vector<1x8x256xf32> to vector<8x256xf32>
    %586 = vector.shape_cast %583 : vector<8x256xf32> to vector<1x8x256xf32>
    tpu.vector_store %arg12[%c0_158, %c0_159, %c256], %586 {strides = array<i32>} : memref<1x8x768xf32, #tpu.memory_space<vmem>>, vector<1x8x256xf32>,
    %587 = vector.extract_strided_slice %7 {offsets = [0, 256], sizes = [8, 256], strides = [1, 1]} : vector<8x768xf32> to vector<8x256xf32>
    %588 = arith.subf %587, %583 : vector<8x256xf32>
    %589 = arith.mulf %588, %588 : vector<8x256xf32>
    %cst_160 = arith.constant dense<0.000000e+00> : vector<8xf32>
    %590 = vector.multi_reduction <add>, %589, %cst_160 [1] : vector<8x256xf32> to vector<8xf32>
    %591 = vector.shape_cast %590 : vector<8xf32> to vector<8x1xf32>
    %592 = arith.addf %579, %591 : vector<8x1xf32>
    %593 = arith.mulf %558, %561 : vector<8x256xf32>
    %594 = vector.extract_strided_slice %11 {offsets = [0, 512], sizes = [8, 256], strides = [1, 1]} : vector<8x768xf32> to vector<8x256xf32>
    %595 = arith.mulf %565, %594 : vector<8x256xf32>
    %596 = arith.addf %593, %595 : vector<8x256xf32>
    %c0_161 = arith.constant 0 : index
    %c0_162 = arith.constant 0 : index
    %c512 = arith.constant 512 : index
    %597 = vector.load %arg12[%c0_161, %c0_162, %c512] : memref<1x8x768xf32, #tpu.memory_space<vmem>>, vector<1x8x256xf32>
    %598 = vector.shape_cast %597 : vector<1x8x256xf32> to vector<8x256xf32>
    %599 = vector.shape_cast %596 : vector<8x256xf32> to vector<1x8x256xf32>
    tpu.vector_store %arg12[%c0_161, %c0_162, %c512], %599 {strides = array<i32>} : memref<1x8x768xf32, #tpu.memory_space<vmem>>, vector<1x8x256xf32>,
    %600 = vector.extract_strided_slice %7 {offsets = [0, 512], sizes = [8, 256], strides = [1, 1]} : vector<8x768xf32> to vector<8x256xf32>
    %601 = arith.subf %600, %596 : vector<8x256xf32>
    %602 = arith.mulf %601, %601 : vector<8x256xf32>
    %cst_163 = arith.constant dense<0.000000e+00> : vector<8xf32>
    %603 = vector.multi_reduction <add>, %602, %cst_163 [1] : vector<8x256xf32> to vector<8xf32>
    %604 = vector.shape_cast %603 : vector<8xf32> to vector<8x1xf32>
    %605 = arith.addf %592, %604 : vector<8x1xf32>
    %cst_164 = arith.constant -5.000000e+01 : f32
    %606 = vector.broadcast %cst_164 : f32 to vector<8x1xf32>
    %607 = arith.mulf %605, %606 : vector<8x1xf32>
    %cst_165 = arith.constant 1062.6405 : f32
    %608 = vector.broadcast %cst_165 : f32 to vector<8x1xf32>
    %609 = arith.addf %607, %608 : vector<8x1xf32>
    %610 = tpu.iota {dimensions = array<i32: 1>} : vector<8x128xi32>
    %c0_i32_166 = arith.constant 0 : i32
    %611 = vector.broadcast %c0_i32_166 : i32 to vector<8x128xi32>
    %612 = arith.cmpi eq, %610, %611 : vector<8x128xi32>
    %cst_167 = arith.constant 0.000000e+00 : f32
    %613 = vector.shape_cast %380 : vector<8x1xf32> to vector<8x1xf32>
    %614 = vector.broadcast %613 : vector<8x1xf32> to vector<8x128xf32>
    %615 = vector.broadcast %cst_167 : f32 to vector<8x128xf32>
    %616 = arith.select %612, %614, %615 : vector<8x128xi1>, vector<8x128xf32>
    %c1_i32 = arith.constant 1 : i32
    %617 = vector.broadcast %c1_i32 : i32 to vector<8x128xi32>
    %618 = arith.cmpi eq, %610, %617 : vector<8x128xi32>
    %cst_168 = arith.constant 0.000000e+00 : f32
    %619 = vector.shape_cast %393 : vector<8x1xf32> to vector<8x1xf32>
    %620 = vector.broadcast %619 : vector<8x1xf32> to vector<8x128xf32>
    %621 = vector.broadcast %cst_168 : f32 to vector<8x128xf32>
    %622 = arith.select %618, %620, %621 : vector<8x128xi1>, vector<8x128xf32>
    %623 = arith.addf %616, %622 : vector<8x128xf32>
    %c2_i32 = arith.constant 2 : i32
    %624 = vector.broadcast %c2_i32 : i32 to vector<8x128xi32>
    %625 = arith.cmpi eq, %610, %624 : vector<8x128xi32>
    %cst_169 = arith.constant 0.000000e+00 : f32
    %626 = vector.shape_cast %406 : vector<8x1xf32> to vector<8x1xf32>
    %627 = vector.broadcast %626 : vector<8x1xf32> to vector<8x128xf32>
    %628 = vector.broadcast %cst_169 : f32 to vector<8x128xf32>
    %629 = arith.select %625, %627, %628 : vector<8x128xi1>, vector<8x128xf32>
    %630 = arith.addf %623, %629 : vector<8x128xf32>
    %c3_i32 = arith.constant 3 : i32
    %631 = vector.broadcast %c3_i32 : i32 to vector<8x128xi32>
    %632 = arith.cmpi eq, %610, %631 : vector<8x128xi32>
    %cst_170 = arith.constant 0.000000e+00 : f32
    %633 = vector.shape_cast %424 : vector<8x1xf32> to vector<8x1xf32>
    %634 = vector.broadcast %633 : vector<8x1xf32> to vector<8x128xf32>
    %635 = vector.broadcast %cst_170 : f32 to vector<8x128xf32>
    %636 = arith.select %632, %634, %635 : vector<8x128xi1>, vector<8x128xf32>
    %637 = arith.addf %630, %636 : vector<8x128xf32>
    %c4_i32 = arith.constant 4 : i32
    %638 = vector.broadcast %c4_i32 : i32 to vector<8x128xi32>
    %639 = arith.cmpi eq, %610, %638 : vector<8x128xi32>
    %cst_171 = arith.constant 0.000000e+00 : f32
    %640 = vector.shape_cast %609 : vector<8x1xf32> to vector<8x1xf32>
    %641 = vector.broadcast %640 : vector<8x1xf32> to vector<8x128xf32>
    %642 = vector.broadcast %cst_171 : f32 to vector<8x128xf32>
    %643 = arith.select %639, %641, %642 : vector<8x128xi1>, vector<8x128xf32>
    %644 = arith.addf %637, %643 : vector<8x128xf32>
    %c5_i32 = arith.constant 5 : i32
    %645 = vector.broadcast %c5_i32 : i32 to vector<8x128xi32>
    %646 = arith.cmpi eq, %610, %645 : vector<8x128xi32>
    %cst_172 = arith.constant 0.000000e+00 : f32
    %647 = vector.shape_cast %429 : vector<8x1xf32> to vector<8x1xf32>
    %648 = vector.broadcast %647 : vector<8x1xf32> to vector<8x128xf32>
    %649 = vector.broadcast %cst_172 : f32 to vector<8x128xf32>
    %650 = arith.select %646, %648, %649 : vector<8x128xi1>, vector<8x128xf32>
    %651 = arith.addf %644, %650 : vector<8x128xf32>
    %c0_173 = arith.constant 0 : index
    %c0_174 = arith.constant 0 : index
    %c0_175 = arith.constant 0 : index
    %652 = vector.load %arg13[%c0_173, %c0_174, %c0_175] : memref<1x8x128xf32, #tpu.memory_space<vmem>>, vector<1x8x128xf32>
    %653 = vector.shape_cast %652 : vector<1x8x128xf32> to vector<8x128xf32>
    %654 = vector.shape_cast %651 : vector<8x128xf32> to vector<1x8x128xf32>
    tpu.vector_store %arg13[%c0_173, %c0_174, %c0_175], %654 {strides = array<i32>} : memref<1x8x128xf32, #tpu.memory_space<vmem>>, vector<1x8x128xf32>,
    return
  }
  func.func @transform_0(%arg0: i32) -> (i32, i32, i32) {
    %c0_i32 = arith.constant 0 : i32
    %c0_i32_0 = arith.constant 0 : i32
    %c0_i32_1 = arith.constant 0 : i32
    return %arg0, %c0_i32, %c0_i32_0 : i32, i32, i32
  }
  func.func @transform_1(%arg0: i32) -> (i32, i32, i32) {
    %c0_i32 = arith.constant 0 : i32
    %c0_i32_0 = arith.constant 0 : i32
    %c0_i32_1 = arith.constant 0 : i32
    return %arg0, %c0_i32, %c0_i32_0 : i32, i32, i32
  }
  func.func @transform_2(%arg0: i32) -> (i32, i32, i32) {
    %c0_i32 = arith.constant 0 : i32
    %c0_i32_0 = arith.constant 0 : i32
    %c0_i32_1 = arith.constant 0 : i32
    return %arg0, %c0_i32, %c0_i32_0 : i32, i32, i32
  }
  func.func @transform_3(%arg0: i32) -> (i32, i32) {
    %c0_i32 = arith.constant 0 : i32
    %c0_i32_0 = arith.constant 0 : i32
    %c0_i32_1 = arith.constant 0 : i32
    return %c0_i32, %c0_i32_0 : i32, i32
  }
  func.func @transform_4(%arg0: i32) -> (i32, i32, i32) {
    %c1_i32 = arith.constant 1 : i32
    %0 = arith.minsi %arg0, %c1_i32 : i32
    %c0_i32 = arith.constant 0 : i32
    %c0_i32_0 = arith.constant 0 : i32
    %c0_i32_1 = arith.constant 0 : i32
    return %0, %c0_i32, %c0_i32_0 : i32, i32, i32
  }
  func.func @transform_5(%arg0: i32) -> (i32, i32, i32) {
    %c1_i32 = arith.constant 1 : i32
    %0 = arith.minsi %arg0, %c1_i32 : i32
    %c0_i32 = arith.constant 0 : i32
    %c0_i32_0 = arith.constant 0 : i32
    %c0_i32_1 = arith.constant 0 : i32
    return %0, %c0_i32, %c0_i32_0 : i32, i32, i32
  }
  func.func @transform_6(%arg0: i32) -> (i32, i32, i32) {
    %c1_i32 = arith.constant 1 : i32
    %0 = arith.minsi %arg0, %c1_i32 : i32
    %c0_i32 = arith.constant 0 : i32
    %c0_i32_0 = arith.constant 0 : i32
    %c0_i32_1 = arith.constant 0 : i32
    return %0, %c0_i32, %c0_i32_0 : i32, i32, i32
  }
  func.func @transform_7(%arg0: i32) -> (i32, i32, i32) {
    %c1_i32 = arith.constant 1 : i32
    %0 = arith.minsi %arg0, %c1_i32 : i32
    %c0_i32 = arith.constant 0 : i32
    %c0_i32_0 = arith.constant 0 : i32
    %c0_i32_1 = arith.constant 0 : i32
    return %0, %c0_i32, %c0_i32_0 : i32, i32, i32
  }
  func.func @transform_8(%arg0: i32) -> (i32, i32, i32) {
    %c1_i32 = arith.constant 1 : i32
    %0 = arith.minsi %arg0, %c1_i32 : i32
    %c0_i32 = arith.constant 0 : i32
    %c0_i32_0 = arith.constant 0 : i32
    %c0_i32_1 = arith.constant 0 : i32
    return %0, %c0_i32, %c0_i32_0 : i32, i32, i32
  }
  func.func @transform_9(%arg0: i32) -> (i32, i32) {
    %c0_i32 = arith.constant 0 : i32
    %c0_i32_0 = arith.constant 0 : i32
    %c0_i32_1 = arith.constant 0 : i32
    return %c0_i32, %c0_i32_0 : i32, i32
  }
  func.func @transform_10(%arg0: i32) -> (i32, i32) {
    %c0_i32 = arith.constant 0 : i32
    %c0_i32_0 = arith.constant 0 : i32
    %c0_i32_1 = arith.constant 0 : i32
    return %c0_i32, %c0_i32_0 : i32, i32
  }
  func.func @transform_11(%arg0: i32) -> (i32, i32, i32) {
    %c0_i32 = arith.constant 0 : i32
    %c0_i32_0 = arith.constant 0 : i32
    %c0_i32_1 = arith.constant 0 : i32
    return %arg0, %c0_i32, %c0_i32_0 : i32, i32, i32
  }
  func.func @transform_12(%arg0: i32) -> (i32, i32, i32) {
    %c0_i32 = arith.constant 0 : i32
    %c0_i32_0 = arith.constant 0 : i32
    %c0_i32_1 = arith.constant 0 : i32
    return %arg0, %c0_i32, %c0_i32_0 : i32, i32, i32
  }
}

</mosaic_0001>

<llo_original>
// kernel: scalor_forward.4
$region0: #{scalor_forward.4}
  #allocation0 [shape = 'u32[]', space=smem, size = 0x4, offset = 0x4, fixed_abs, tag = 'smem constant byte address 0x4 - core index']
  #allocation1 [shape = 'u32[144,128]{1,0:T(1,128)}', space=vmem, size = 0x12000, scoped, tag = 'internal scratch']
  %s0 = inlined_call_operand.vmem [shape: f32[8,8], index: 0, kind: input, shape index: {}]
  %s1 = inlined_call_operand.vmem [shape: bf16[8,768], index: 1, kind: input, shape index: {}]
  %s2 = inlined_call_operand.vmem [shape: f32[1,768], index: 2, kind: input, shape index: {}]
  %s3 = inlined_call_operand.vmem [shape: f32[8,768], index: 3, kind: output, shape index: {}]
  %s4 = sld [smem:[#allocation0]]
  $region22: #{scalor_forward.4} parent=0
    _
  %s6 = ssub.s32 1, %s4
  %s7 = scalar_select 0, %s6, %s4
  // Predicated region
  $region2: #{scalor_forward.4} parent=0 // pred_check
    _
  $region3: #{scalor_forward.4} parent=0 // pred_check_branch
    %9 = sbr.rel (0) target = $region5
  $region4: #{scalor_forward.4} parent=0 // pred_region
    _
  $region5: #{scalor_forward.4} parent=0 // pred_fallthru
    _
  // Predicated region
  $region6: #{scalor_forward.4} parent=0 // pred_check
    _
  $region7: #{scalor_forward.4} parent=0 // pred_check_branch
    %11 = sbr.rel (0) target = $region9
  $region8: #{scalor_forward.4} parent=0 // pred_region
    _
  $region9: #{scalor_forward.4} parent=0 // pred_fallthru
    _
  // Predicated region
  $region10: #{scalor_forward.4} parent=0 // pred_check
    _
  $region11: #{scalor_forward.4} parent=0 // pred_check_branch
    %13 = sbr.rel (0) target = $region13
  $region12: #{scalor_forward.4} parent=0 // pred_region
    _
  $region13: #{scalor_forward.4} parent=0 // pred_fallthru
    _
  %v15 = vld [vmem:[%s0] sm:$0xff]
  %v16 = vpack.c.bf16 %v15, %v15
  %v17 = vld [vmem:[%s1] sm:$0xff]
  %v18 = vld [vmem:[%s1 + $0x8] sm:$0xff]
  %v19 = vld [vmem:[%s1 + $0x10] sm:$0xff]
  %v20 = vld [vmem:[%s2] sm:$0x3f]
  %v22 = vlaneseq
  %v23 = vshrl.u32 %v22, 7
  %v24 = vsub.s32 0, %v23
  %v25 = vrot.slane %v20, %v24
  %v26 = vlaneseq
  %v27 = vshrl.u32 %v26, 7
  %v28 = vsub.s32 1, %v27
  %v29 = vrot.slane %v20, %v28
  %v30 = vlaneseq
  %v31 = vshrl.u32 %v30, 7
  %v32 = vsub.s32 2, %v31
  %v33 = vrot.slane %v20, %v32
  %v34 = vlaneseq
  %v35 = vshrl.u32 %v34, 7
  %v36 = vsub.s32 3, %v35
  %v37 = vrot.slane %v20, %v36
  %v38 = vlaneseq
  %v39 = vshrl.u32 %v38, 7
  %v40 = vsub.s32 4, %v39
  %v41 = vrot.slane %v20, %v40
  %v42 = vlaneseq
  %v43 = vshrl.u32 %v42, 7
  %v44 = vsub.s32 5, %v43
  %v45 = vrot.slane %v20, %v44
  %v55 = vunpack.c.l.b16 %v17
  %v56 = vunpack.c.h.b16 %v17
  %v57 = vunpack.c.l.b16 %v18
  %v58 = vunpack.c.h.b16 %v18
  %v59 = vunpack.c.l.b16 %v19
  %v60 = vunpack.c.h.b16 %v19
  %v61 = vpack.c.b16 %v55, %v55
  %v62 = vpack.c.b16 %v56, %v56
  %v63 = vpack.c.b16 %v57, %v57
  %v64 = vpack.c.b16 %v58, %v58
  %v65 = vpack.c.b16 %v59, %v59
  %v66 = vpack.c.b16 %v60, %v60
  %vm67 = vcmask 64512
  %v69 = vsel %vm67, %v16, 0
  %vm71 = vcmask 1043456
  %v73 = vsel %vm71, %v61, 0
  %v76 = vsel %vm71, %v62, 0
  %v79 = vsel %vm71, %v63, 0
  %v82 = vsel %vm71, %v64, 0
  %v85 = vsel %vm71, %v65, 0
  %v88 = vsel %vm71, %v66, 0
  %90 = vmatprep.subr.bf16.mxu0 %v76
  %91 = vmatpush1.bf16.msra.mxu0 %v73
  %92 = vmatprep.subr.bf16.mxu0 0
  %93 = vmatpush1.bf16.msra.mxu0 0
  %94 = vmatprep.subr.bf16.mxu0 0
  %95 = vmatpush1.bf16.msra.mxu0 0
  %96 = vmatprep.subr.bf16.mxu0 0
  %97 = vmatpush1.bf16.msra.mxu0 0
  %98 = vmatprep.subr.bf16.mxu0 0
  %99 = vmatpush1.bf16.msra.mxu0 0
  %100 = vmatprep.subr.bf16.mxu0 0
  %101 = vmatpush1.bf16.msra.mxu0 0
  %102 = vmatprep.subr.bf16.mxu0 0
  %103 = vmatpush1.bf16.msra.mxu0 0
  %104 = vmatprep.subr.bf16.mxu0 0
  %105 = vmatpush1.bf16.msra.mxu0 0
  %106 = vmatprep.subr.bf16.mxu0 0
  %107 = vmatpush1.bf16.msra.mxu0 0
  %108 = vmatprep.subr.bf16.mxu0 0
  %109 = vmatpush1.bf16.msra.mxu0 0
  %110 = vmatprep.subr.bf16.mxu0 0
  %111 = vmatpush1.bf16.msra.mxu0 0
  %112 = vmatprep.subr.bf16.mxu0 0
  %113 = vmatpush1.bf16.msra.mxu0 0
  %114 = vmatprep.subr.bf16.mxu0 0
  %115 = vmatpush1.bf16.msra.mxu0 0
  %116 = vmatprep.subr.bf16.mxu0 0
  %117 = vmatpush1.bf16.msra.mxu0 0
  %118 = vmatprep.subr.bf16.mxu0 0
  %119 = vmatpush1.bf16.msra.mxu0 0
  %120 = vmatprep.subr.bf16.mxu0 0
  %121 = vmatpush1.bf16.msra.mxu0 0
  %122 = vmatprep.mubr.bf16.mxu0 0
  %123 = vmatmul.mubr.bf16.gmra.mrb[0].mxu0 %v69
  %v124 = vpop.f32.mrb[0].mxu0
  %v125 = vadd.f32 %v25, %v124
  %v126 = vpop.f32.mrb[0].mxu0
  %v127 = vadd.f32 %v29, %v126
  %v128 = vpop.f32.mrb[0].mxu0
  %v129 = vpop.f32.mrb[0].mxu0
  %130 = vdwg.mxu0
  %131 = vmatprep.subr.bf16.mxu0 %v82
  %132 = vmatpush1.bf16.msra.mxu0 %v79
  %133 = vmatprep.subr.bf16.mxu0 0
  %134 = vmatpush1.bf16.msra.mxu0 0
  %135 = vmatprep.subr.bf16.mxu0 0
  %136 = vmatpush1.bf16.msra.mxu0 0
  %137 = vmatprep.subr.bf16.mxu0 0
  %138 = vmatpush1.bf16.msra.mxu0 0
  %139 = vmatprep.subr.bf16.mxu0 0
  %140 = vmatpush1.bf16.msra.mxu0 0
  %141 = vmatprep.subr.bf16.mxu0 0
  %142 = vmatpush1.bf16.msra.mxu0 0
  %143 = vmatprep.subr.bf16.mxu0 0
  %144 = vmatpush1.bf16.msra.mxu0 0
  %145 = vmatprep.subr.bf16.mxu0 0
  %146 = vmatpush1.bf16.msra.mxu0 0
  %147 = vmatprep.subr.bf16.mxu0 0
  %148 = vmatpush1.bf16.msra.mxu0 0
  %149 = vmatprep.subr.bf16.mxu0 0
  %150 = vmatpush1.bf16.msra.mxu0 0
  %151 = vmatprep.subr.bf16.mxu0 0
  %152 = vmatpush1.bf16.msra.mxu0 0
  %153 = vmatprep.subr.bf16.mxu0 0
  %154 = vmatpush1.bf16.msra.mxu0 0
  %155 = vmatprep.subr.bf16.mxu0 0
  %156 = vmatpush1.bf16.msra.mxu0 0
  %157 = vmatprep.subr.bf16.mxu0 0
  %158 = vmatpush1.bf16.msra.mxu0 0
  %159 = vmatprep.subr.bf16.mxu0 0
  %160 = vmatpush1.bf16.msra.mxu0 0
  %161 = vmatprep.subr.bf16.mxu0 0
  %162 = vmatpush1.bf16.msra.mxu0 0
  %163 = vmatprep.mubr.bf16.mxu0 0
  %164 = vmatmul.mubr.bf16.gmra.mrb[0].mxu0 %v69
  %v165 = vpop.f32.mrb[0].mxu0
  %v166 = vadd.f32 %v33, %v165
  %v167 = vpop.f32.mrb[0].mxu0
  %v168 = vadd.f32 %v37, %v167
  %v169 = vpop.f32.mrb[0].mxu0
  %v170 = vpop.f32.mrb[0].mxu0
  %171 = vdwg.mxu0
  %172 = vmatprep.subr.bf16.mxu0 %v88
  %173 = vmatpush1.bf16.msra.mxu0 %v85
  %174 = vmatprep.subr.bf16.mxu0 0
  %175 = vmatpush1.bf16.msra.mxu0 0
  %176 = vmatprep.subr.bf16.mxu0 0
  %177 = vmatpush1.bf16.msra.mxu0 0
  %178 = vmatprep.subr.bf16.mxu0 0
  %179 = vmatpush1.bf16.msra.mxu0 0
  %180 = vmatprep.subr.bf16.mxu0 0
  %181 = vmatpush1.bf16.msra.mxu0 0
  %182 = vmatprep.subr.bf16.mxu0 0
  %183 = vmatpush1.bf16.msra.mxu0 0
  %184 = vmatprep.subr.bf16.mxu0 0
  %185 = vmatpush1.bf16.msra.mxu0 0
  %186 = vmatprep.subr.bf16.mxu0 0
  %187 = vmatpush1.bf16.msra.mxu0 0
  %188 = vmatprep.subr.bf16.mxu0 0
  %189 = vmatpush1.bf16.msra.mxu0 0
  %190 = vmatprep.subr.bf16.mxu0 0
  %191 = vmatpush1.bf16.msra.mxu0 0
  %192 = vmatprep.subr.bf16.mxu0 0
  %193 = vmatpush1.bf16.msra.mxu0 0
  %194 = vmatprep.subr.bf16.mxu0 0
  %195 = vmatpush1.bf16.msra.mxu0 0
  %196 = vmatprep.subr.bf16.mxu0 0
  %197 = vmatpush1.bf16.msra.mxu0 0
  %198 = vmatprep.subr.bf16.mxu0 0
  %199 = vmatpush1.bf16.msra.mxu0 0
  %200 = vmatprep.subr.bf16.mxu0 0
  %201 = vmatpush1.bf16.msra.mxu0 0
  %202 = vmatprep.subr.bf16.mxu0 0
  %203 = vmatpush1.bf16.msra.mxu0 0
  %204 = vmatprep.mubr.bf16.mxu0 0
  %205 = vmatmul.mubr.bf16.gmra.mrb[0].mxu0 %v69
  %v206 = vpop.f32.mrb[0].mxu0
  %v207 = vadd.f32 %v41, %v206
  %v208 = vpop.f32.mrb[0].mxu0
  %v209 = vadd.f32 %v45, %v208
  %v210 = vpop.f32.mrb[0].mxu0
  %v211 = vpop.f32.mrb[0].mxu0
  %212 = vdwg.mxu0
  %v213 = vxor.u32 %v125, 2147483648
  %v214 = vxor.u32 %v127, 2147483648
  %v215 = vxor.u32 %v166, 2147483648
  %v216 = vxor.u32 %v168, 2147483648
  %v217 = vxor.u32 %v207, 2147483648
  %v218 = vxor.u32 %v209, 2147483648
  %v219 = vmul.f32 %v213, 1.442695
  %v220 = vpow.pop %v219
  %v221 = vmul.f32 %v214, 1.442695
  %v222 = vpow.pop %v221
  %v223 = vmul.f32 %v215, 1.442695
  %v224 = vpow.pop %v223
  %v225 = vmul.f32 %v216, 1.442695
  %v226 = vpow.pop %v225
  %v227 = vmul.f32 %v217, 1.442695
  %v228 = vpow.pop %v227
  %v229 = vmul.f32 %v218, 1.442695
  %v230 = vpow.pop %v229
  %v231 = vadd.f32 %v220, 1.0
  %v232 = vadd.f32 %v222, 1.0
  %v233 = vadd.f32 %v224, 1.0
  %v234 = vadd.f32 %v226, 1.0
  %v235 = vadd.f32 %v228, 1.0
  %v236 = vadd.f32 %v230, 1.0
  %v237 = vrcp.pop %v231
  %v238 = vmul.f32 1.0, %v237
  %v239 = vrcp.pop %v232
  %v240 = vmul.f32 1.0, %v239
  %v241 = vrcp.pop %v233
  %v242 = vmul.f32 1.0, %v241
  %v243 = vrcp.pop %v234
  %v244 = vmul.f32 1.0, %v243
  %v245 = vrcp.pop %v235
  %v246 = vmul.f32 1.0, %v245
  %v247 = vrcp.pop %v236
  %v248 = vmul.f32 1.0, %v247
  %249 = vst [vmem:[%s3] sm:$0xff] %v238
  %250 = vst [vmem:[%s3 + $0x8] sm:$0xff] %v240
  %251 = vst [vmem:[%s3 + $0x10] sm:$0xff] %v242
  %252 = vst [vmem:[%s3 + $0x18] sm:$0xff] %v244
  %253 = vst [vmem:[%s3 + $0x20] sm:$0xff] %v246
  %254 = vst [vmem:[%s3 + $0x28] sm:$0xff] %v248
  // Predicated region
  $region14: #{scalor_forward.4} parent=0 // pred_check
    _
  $region15: #{scalor_forward.4} parent=0 // pred_check_branch
    %256 = sbr.rel (0) target = $region17
  $region16: #{scalor_forward.4} parent=0 // pred_region
    _
  $region17: #{scalor_forward.4} parent=0 // pred_fallthru
    _
  // Predicated region
  $region18: #{scalor_forward.4} parent=0 // pred_check
    _
  $region19: #{scalor_forward.4} parent=0 // pred_check_branch
    %258 = sbr.rel (0) target = $region21
  $region20: #{scalor_forward.4} parent=0 // pred_region
    _
  $region21: #{scalor_forward.4} parent=0 // pred_fallthru
    _

// kernel: scalor_forward.5
$region0: #{scalor_forward.5}
  #allocation0 [shape = 'u32[]', space=smem, size = 0x4, offset = 0x4, fixed_abs, tag = 'smem constant byte address 0x4 - core index']
  #allocation1 [shape = 'u32[144,128]{1,0:T(1,128)}', space=vmem, size = 0x12000, scoped, tag = 'internal scratch']
  #allocation2 [shape = 'f32[8,32]{1,0:T(8,128)}', space=vmem, size = 0x1000, scoped, tag = 'scratch operand']
  %s0 = inlined_call_operand.vmem [shape: f32[4,8,768], index: 0, kind: input, shape index: {}]
  %s1 = inlined_call_operand.vmem [shape: f32[4,8,4], index: 1, kind: input, shape index: {}]
  %s2 = inlined_call_operand.vmem [shape: f32[4,8,52], index: 2, kind: input, shape index: {}]
  %s3 = inlined_call_operand.vmem [shape: f32[8,768], index: 3, kind: input, shape index: {}]
  %s4 = inlined_call_operand.vmem [shape: bf16[2,768,64], index: 4, kind: input, shape index: {}]
  %s5 = inlined_call_operand.vmem [shape: bf16[2,32,64], index: 5, kind: input, shape index: {}]
  %s6 = inlined_call_operand.vmem [shape: f32[2,1,64], index: 6, kind: input, shape index: {}]
  %s7 = inlined_call_operand.vmem [shape: bf16[2,64,128], index: 7, kind: input, shape index: {}]
  %s8 = inlined_call_operand.vmem [shape: f32[2,1,128], index: 8, kind: input, shape index: {}]
  %s9 = inlined_call_operand.vmem [shape: bf16[8,1024], index: 9, kind: input, shape index: {}]
  %s10 = inlined_call_operand.vmem [shape: f32[1,1024], index: 10, kind: input, shape index: {}]
  %s11 = inlined_call_operand.vmem [shape: f32[4,8,768], index: 11, kind: output, shape index: {0}]
  %s12 = inlined_call_operand.vmem [shape: f32[4,8,128], index: 12, kind: output, shape index: {1}]
  %13 = xla_tuple %s11, %s12
  %s14 = sld [smem:[#allocation0]]
  $region89: #{scalor_forward.5} parent=0
    _
  %s16 = ssub.s32 1, %s14
  %s17 = scalar_select 0, %s16, %s14
  loop: start=0, step=1, limit=6
  $region2: #{scalor_forward.5} parent=0 // loop_pre_header
    _
  $region3: #{scalor_forward.5} parent=0 // loop_header
    %s19 = sphi 0, %s23
    %p20 = scmp.ge.s32.totalorder %s19, 6
    %s29 = sphi 0, %s31
    %s32 = sphi 0, %s29
    %s33 = sphi 0, %s32
    %s49 = sphi 0, %s33
    %s55 = sphi 0, %s57
    %s58 = sphi 0, %s55
    %s59 = sphi 0, %s58
    %s75 = sphi 0, %s59
    %s81 = sphi 0, %s83
    %s84 = sphi 0, %s81
    %s85 = sphi 0, %s84
    %s101 = sphi 0, %s85
    %s105 = sphi 0, %s105
    %s107 = sphi 0, %s105
    %s108 = sphi 0, %s107
    %s122 = sphi 0, %s108
    %s132 = sphi 0, %s134
    %s135 = sphi 0, %s132
    %s136 = sphi 0, %s135
    %s152 = sphi 0, %s136
    %s162 = sphi 0, %s164
    %s165 = sphi 0, %s162
    %s166 = sphi 0, %s165
    %s182 = sphi 0, %s166
    %s192 = sphi 0, %s194
    %s195 = sphi 0, %s192
    %s196 = sphi 0, %s195
    %s212 = sphi 0, %s196
    %s222 = sphi 0, %s224
    %s225 = sphi 0, %s222
    %s226 = sphi 0, %s225
    %s242 = sphi 0, %s226
    %s252 = sphi 0, %s254
    %s255 = sphi 0, %s252
    %s256 = sphi 0, %s255
    %s272 = sphi 0, %s256
    %s276 = sphi 0, %s276
    %s278 = sphi 0, %s276
    %s279 = sphi 0, %s278
    %s293 = sphi 0, %s279
    %s297 = sphi 0, %s297
    %s299 = sphi 0, %s297
    %s300 = sphi 0, %s299
    %s314 = sphi 0, %s300
    %s320 = sphi 0, %s322
    %s323 = sphi 0, %s320
    %s324 = sphi 0, %s323
    %s340 = sphi 0, %s324
    %s346 = sphi 0, %s348
    %s349 = sphi 0, %s346
    %s350 = sphi 0, %s349
    %s366 = sphi 0, %s350
  $region4: #{scalor_forward.5} parent=0 // loop_header_branch
    %22 = sbr.rel (%p20) target = $region8
  $region5: #{scalor_forward.5} parent=0 // loop_body
    %s24 = ssub.s32 %s19, 1
    %s25 = ssub.s32 %s19, 2
    %s26 = sadd.s32 %s19, 1
    %s27 = ssub.s32 %s19, %s26
    %p28 = scmp.eq.s32.totalorder %s27, 0
    %s30 = sadd.s32 %s29, 1
    %s31 = scalar_select %p28, %s29, %s30
    %p34 = pneg %p28
    %p35 = scmp.eq.s32.totalorder %s19, 3
    %p36 = por %p34, %p35
    %p37 = scmp.ne.s32.totalorder %s29, %s32
    %p38 = scmp.eq.s32.totalorder %s19, 0
    %p39 = por %p37, %p38
    %p40 = scmp.ne.s32.totalorder %s29, %s32
    %p41 = scmp.eq.s32.totalorder %s24, 3
    %p42 = por %p40, %p41
    %p43 = scmp.ne.s32.totalorder %s32, %s33
    %p44 = scmp.eq.s32.totalorder %s24, 0
    %p45 = por %p43, %p44
    %p46 = scmp.ne.s32.totalorder %s32, %s33
    %p47 = scmp.eq.s32.totalorder %s25, 3
    %p48 = por %p46, %p47
    %p50 = scmp.ne.s32.totalorder %s33, %s49
    %p51 = scmp.eq.s32.totalorder %s25, 0
    %p52 = por %p50, %p51
    %s53 = ssub.s32 %s19, %s26
    %p54 = scmp.eq.s32.totalorder %s53, 0
    %s56 = sadd.s32 %s55, 1
    %s57 = scalar_select %p54, %s55, %s56
    %p60 = pneg %p54
    %p61 = scmp.eq.s32.totalorder %s19, 3
    %p62 = por %p60, %p61
    %p63 = scmp.ne.s32.totalorder %s55, %s58
    %p64 = scmp.eq.s32.totalorder %s19, 0
    %p65 = por %p63, %p64
    %p66 = scmp.ne.s32.totalorder %s55, %s58
    %p67 = scmp.eq.s32.totalorder %s24, 3
    %p68 = por %p66, %p67
    %p69 = scmp.ne.s32.totalorder %s58, %s59
    %p70 = scmp.eq.s32.totalorder %s24, 0
    %p71 = por %p69, %p70
    %p72 = scmp.ne.s32.totalorder %s58, %s59
    %p73 = scmp.eq.s32.totalorder %s25, 3
    %p74 = por %p72, %p73
    %p76 = scmp.ne.s32.totalorder %s59, %s75
    %p77 = scmp.eq.s32.totalorder %s25, 0
    %p78 = por %p76, %p77
    %s79 = ssub.s32 %s19, %s26
    %p80 = scmp.eq.s32.totalorder %s79, 0
    %s82 = sadd.s32 %s81, 1
    %s83 = scalar_select %p80, %s81, %s82
    %p86 = pneg %p80
    %p87 = scmp.eq.s32.totalorder %s19, 3
    %p88 = por %p86, %p87
    %p89 = scmp.ne.s32.totalorder %s81, %s84
    %p90 = scmp.eq.s32.totalorder %s19, 0
    %p91 = por %p89, %p90
    %p92 = scmp.ne.s32.totalorder %s81, %s84
    %p93 = scmp.eq.s32.totalorder %s24, 3
    %p94 = por %p92, %p93
    %p95 = scmp.ne.s32.totalorder %s84, %s85
    %p96 = scmp.eq.s32.totalorder %s24, 0
    %p97 = por %p95, %p96
    %p98 = scmp.ne.s32.totalorder %s84, %s85
    %p99 = scmp.eq.s32.totalorder %s25, 3
    %p100 = por %p98, %p99
    %p102 = scmp.ne.s32.totalorder %s85, %s101
    %p103 = scmp.eq.s32.totalorder %s25, 0
    %p104 = por %p102, %p103
    %s106 = sadd.s32 %s105, 1
    %p109 = scmp.eq.s32.totalorder %s19, 3
    %p110 = scmp.ne.s32.totalorder %s105, %s107
    %p111 = scmp.eq.s32.totalorder %s19, 0
    %p112 = por %p110, %p111
    %p113 = scmp.ne.s32.totalorder %s105, %s107
    %p114 = scmp.eq.s32.totalorder %s24, 3
    %p115 = por %p113, %p114
    %p116 = scmp.ne.s32.totalorder %s107, %s108
    %p117 = scmp.eq.s32.totalorder %s24, 0
    %p118 = por %p116, %p117
    %p119 = scmp.ne.s32.totalorder %s107, %s108
    %p120 = scmp.eq.s32.totalorder %s25, 3
    %p121 = por %p119, %p120
    %p123 = scmp.ne.s32.totalorder %s108, %s122
    %p124 = scmp.eq.s32.totalorder %s25, 0
    %p125 = por %p123, %p124
    %p126 = scmp.lt.s32.totalorder %s19, 1
    %s127 = scalar_select %p126, %s19, 1
    %p128 = scmp.lt.s32.totalorder %s26, 1
    %s129 = scalar_select %p128, %s26, 1
    %s130 = ssub.s32 %s127, %s129
    %p131 = scmp.eq.s32.totalorder %s130, 0
    %s133 = sadd.s32 %s132, 1
    %s134 = scalar_select %p131, %s132, %s133
    %p137 = pneg %p131
    %p138 = scmp.eq.s32.totalorder %s19, 3
    %p139 = por %p137, %p138
    %p140 = scmp.ne.s32.totalorder %s132, %s135
    %p141 = scmp.eq.s32.totalorder %s19, 0
    %p142 = por %p140, %p141
    %p143 = scmp.ne.s32.totalorder %s132, %s135
    %p144 = scmp.eq.s32.totalorder %s24, 3
    %p145 = por %p143, %p144
    %p146 = scmp.ne.s32.totalorder %s135, %s136
    %p147 = scmp.eq.s32.totalorder %s24, 0
    %p148 = por %p146, %p147
    %p149 = scmp.ne.s32.totalorder %s135, %s136
    %p150 = scmp.eq.s32.totalorder %s25, 3
    %p151 = por %p149, %p150
    %p153 = scmp.ne.s32.totalorder %s136, %s152
    %p154 = scmp.eq.s32.totalorder %s25, 0
    %p155 = por %p153, %p154
    %p156 = scmp.lt.s32.totalorder %s19, 1
    %s157 = scalar_select %p156, %s19, 1
    %p158 = scmp.lt.s32.totalorder %s26, 1
    %s159 = scalar_select %p158, %s26, 1
    %s160 = ssub.s32 %s157, %s159
    %p161 = scmp.eq.s32.totalorder %s160, 0
    %s163 = sadd.s32 %s162, 1
    %s164 = scalar_select %p161, %s162, %s163
    %p167 = pneg %p161
    %p168 = scmp.eq.s32.totalorder %s19, 3
    %p169 = por %p167, %p168
    %p170 = scmp.ne.s32.totalorder %s162, %s165
    %p171 = scmp.eq.s32.totalorder %s19, 0
    %p172 = por %p170, %p171
    %p173 = scmp.ne.s32.totalorder %s162, %s165
    %p174 = scmp.eq.s32.totalorder %s24, 3
    %p175 = por %p173, %p174
    %p176 = scmp.ne.s32.totalorder %s165, %s166
    %p177 = scmp.eq.s32.totalorder %s24, 0
    %p178 = por %p176, %p177
    %p179 = scmp.ne.s32.totalorder %s165, %s166
    %p180 = scmp.eq.s32.totalorder %s25, 3
    %p181 = por %p179, %p180
    %p183 = scmp.ne.s32.totalorder %s166, %s182
    %p184 = scmp.eq.s32.totalorder %s25, 0
    %p185 = por %p183, %p184
    %p186 = scmp.lt.s32.totalorder %s19, 1
    %s187 = scalar_select %p186, %s19, 1
    %p188 = scmp.lt.s32.totalorder %s26, 1
    %s189 = scalar_select %p188, %s26, 1
    %s190 = ssub.s32 %s187, %s189
    %p191 = scmp.eq.s32.totalorder %s190, 0
    %s193 = sadd.s32 %s192, 1
    %s194 = scalar_select %p191, %s192, %s193
    %p197 = pneg %p191
    %p198 = scmp.eq.s32.totalorder %s19, 3
    %p199 = por %p197, %p198
    %p200 = scmp.ne.s32.totalorder %s192, %s195
    %p201 = scmp.eq.s32.totalorder %s19, 0
    %p202 = por %p200, %p201
    %p203 = scmp.ne.s32.totalorder %s192, %s195
    %p204 = scmp.eq.s32.totalorder %s24, 3
    %p205 = por %p203, %p204
    %p206 = scmp.ne.s32.totalorder %s195, %s196
    %p207 = scmp.eq.s32.totalorder %s24, 0
    %p208 = por %p206, %p207
    %p209 = scmp.ne.s32.totalorder %s195, %s196
    %p210 = scmp.eq.s32.totalorder %s25, 3
    %p211 = por %p209, %p210
    %p213 = scmp.ne.s32.totalorder %s196, %s212
    %p214 = scmp.eq.s32.totalorder %s25, 0
    %p215 = por %p213, %p214
    %p216 = scmp.lt.s32.totalorder %s19, 1
    %s217 = scalar_select %p216, %s19, 1
    %p218 = scmp.lt.s32.totalorder %s26, 1
    %s219 = scalar_select %p218, %s26, 1
    %s220 = ssub.s32 %s217, %s219
    %p221 = scmp.eq.s32.totalorder %s220, 0
    %s223 = sadd.s32 %s222, 1
    %s224 = scalar_select %p221, %s222, %s223
    %p227 = pneg %p221
    %p228 = scmp.eq.s32.totalorder %s19, 3
    %p229 = por %p227, %p228
    %p230 = scmp.ne.s32.totalorder %s222, %s225
    %p231 = scmp.eq.s32.totalorder %s19, 0
    %p232 = por %p230, %p231
    %p233 = scmp.ne.s32.totalorder %s222, %s225
    %p234 = scmp.eq.s32.totalorder %s24, 3
    %p235 = por %p233, %p234
    %p236 = scmp.ne.s32.totalorder %s225, %s226
    %p237 = scmp.eq.s32.totalorder %s24, 0
    %p238 = por %p236, %p237
    %p239 = scmp.ne.s32.totalorder %s225, %s226
    %p240 = scmp.eq.s32.totalorder %s25, 3
    %p241 = por %p239, %p240
    %p243 = scmp.ne.s32.totalorder %s226, %s242
    %p244 = scmp.eq.s32.totalorder %s25, 0
    %p245 = por %p243, %p244
    %p246 = scmp.lt.s32.totalorder %s19, 1
    %s247 = scalar_select %p246, %s19, 1
    %p248 = scmp.lt.s32.totalorder %s26, 1
    %s249 = scalar_select %p248, %s26, 1
    %s250 = ssub.s32 %s247, %s249
    %p251 = scmp.eq.s32.totalorder %s250, 0
    %s253 = sadd.s32 %s252, 1
    %s254 = scalar_select %p251, %s252, %s253
    %p257 = pneg %p251
    %p258 = scmp.eq.s32.totalorder %s19, 3
    %p259 = por %p257, %p258
    %p260 = scmp.ne.s32.totalorder %s252, %s255
    %p261 = scmp.eq.s32.totalorder %s19, 0
    %p262 = por %p260, %p261
    %p263 = scmp.ne.s32.totalorder %s252, %s255
    %p264 = scmp.eq.s32.totalorder %s24, 3
    %p265 = por %p263, %p264
    %p266 = scmp.ne.s32.totalorder %s255, %s256
    %p267 = scmp.eq.s32.totalorder %s24, 0
    %p268 = por %p266, %p267
    %p269 = scmp.ne.s32.totalorder %s255, %s256
    %p270 = scmp.eq.s32.totalorder %s25, 3
    %p271 = por %p269, %p270
    %p273 = scmp.ne.s32.totalorder %s256, %s272
    %p274 = scmp.eq.s32.totalorder %s25, 0
    %p275 = por %p273, %p274
    %s277 = sadd.s32 %s276, 1
    %p280 = scmp.eq.s32.totalorder %s19, 3
    %p281 = scmp.ne.s32.totalorder %s276, %s278
    %p282 = scmp.eq.s32.totalorder %s19, 0
    %p283 = por %p281, %p282
    %p284 = scmp.ne.s32.totalorder %s276, %s278
    %p285 = scmp.eq.s32.totalorder %s24, 3
    %p286 = por %p284, %p285
    %p287 = scmp.ne.s32.totalorder %s278, %s279
    %p288 = scmp.eq.s32.totalorder %s24, 0
    %p289 = por %p287, %p288
    %p290 = scmp.ne.s32.totalorder %s278, %s279
    %p291 = scmp.eq.s32.totalorder %s25, 3
    %p292 = por %p290, %p291
    %p294 = scmp.ne.s32.totalorder %s279, %s293
    %p295 = scmp.eq.s32.totalorder %s25, 0
    %p296 = por %p294, %p295
    %s298 = sadd.s32 %s297, 1
    %p301 = scmp.eq.s32.totalorder %s19, 3
    %p302 = scmp.ne.s32.totalorder %s297, %s299
    %p303 = scmp.eq.s32.totalorder %s19, 0
    %p304 = por %p302, %p303
    %p305 = scmp.ne.s32.totalorder %s297, %s299
    %p306 = scmp.eq.s32.totalorder %s24, 3
    %p307 = por %p305, %p306
    %p308 = scmp.ne.s32.totalorder %s299, %s300
    %p309 = scmp.eq.s32.totalorder %s24, 0
    %p310 = por %p308, %p309
    %p311 = scmp.ne.s32.totalorder %s299, %s300
    %p312 = scmp.eq.s32.totalorder %s25, 3
    %p313 = por %p311, %p312
    %p315 = scmp.ne.s32.totalorder %s300, %s314
    %p316 = scmp.eq.s32.totalorder %s25, 0
    %p317 = por %p315, %p316
    %s318 = ssub.s32 %s19, %s26
    %p319 = scmp.eq.s32.totalorder %s318, 0
    %s321 = sadd.s32 %s320, 1
    %s322 = scalar_select %p319, %s320, %s321
    %p325 = pneg %p319
    %p326 = scmp.eq.s32.totalorder %s19, 3
    %p327 = por %p325, %p326
    %p328 = scmp.ne.s32.totalorder %s320, %s323
    %p329 = scmp.eq.s32.totalorder %s19, 0
    %p330 = por %p328, %p329
    %p331 = scmp.ne.s32.totalorder %s320, %s323
    %p332 = scmp.eq.s32.totalorder %s24, 3
    %p333 = por %p331, %p332
    %p334 = scmp.ne.s32.totalorder %s323, %s324
    %p335 = scmp.eq.s32.totalorder %s24, 0
    %p336 = por %p334, %p335
    %p337 = scmp.ne.s32.totalorder %s323, %s324
    %p338 = scmp.eq.s32.totalorder %s25, 3
    %p339 = por %p337, %p338
    %p341 = scmp.ne.s32.totalorder %s324, %s340
    %p342 = scmp.eq.s32.totalorder %s25, 0
    %p343 = por %p341, %p342
    %s344 = ssub.s32 %s19, %s26
    %p345 = scmp.eq.s32.totalorder %s344, 0
    %s347 = sadd.s32 %s346, 1
    %s348 = scalar_select %p345, %s346, %s347
    %p351 = pneg %p345
    %p352 = scmp.eq.s32.totalorder %s19, 3
    %p353 = por %p351, %p352
    %p354 = scmp.ne.s32.totalorder %s346, %s349
    %p355 = scmp.eq.s32.totalorder %s19, 0
    %p356 = por %p354, %p355
    %p357 = scmp.ne.s32.totalorder %s346, %s349
    %p358 = scmp.eq.s32.totalorder %s24, 3
    %p359 = por %p357, %p358
    %p360 = scmp.ne.s32.totalorder %s349, %s350
    %p361 = scmp.eq.s32.totalorder %s24, 0
    %p362 = por %p360, %p361
    %p363 = scmp.ne.s32.totalorder %s349, %s350
    %p364 = scmp.eq.s32.totalorder %s25, 3
    %p365 = por %p363, %p364
    %p367 = scmp.ne.s32.totalorder %s350, %s366
    %p368 = scmp.eq.s32.totalorder %s25, 0
    %p369 = por %p367, %p368
    %p370 = scmp.le.s32.totalorder 1, %s19
    %p371 = scmp.lt.s32.totalorder %s19, 5
    %p372 = pnand %p370, %p371
    %p373 = pneg %p372
    // Predicated region
    $region9: #{scalor_forward.5} parent=5 // pred_check
      _
    $region10: #{scalor_forward.5} parent=5 // pred_check_branch
      %375 = sbr.rel (%p372) target = $region12
    $region11: #{scalor_forward.5} parent=5 // pred_region
      %s376 = ssub.s32 %s19, 1
      // Predicated region
      $region13: #{scalor_forward.5} parent=11 // pred_check
        %p377 = pneg %p118
      $region14: #{scalor_forward.5} parent=11 // pred_check_branch
        %379 = sbr.rel (%p377) target = $region16
      $region15: #{scalor_forward.5} parent=11 // pred_region
        _
      $region16: #{scalor_forward.5} parent=11 // pred_fallthru
        _
      // Predicated region
      $region17: #{scalor_forward.5} parent=11 // pred_check
        %p380 = pneg %p289
      $region18: #{scalor_forward.5} parent=11 // pred_check_branch
        %382 = sbr.rel (%p380) target = $region20
      $region19: #{scalor_forward.5} parent=11 // pred_region
        _
      $region20: #{scalor_forward.5} parent=11 // pred_fallthru
        _
      // Predicated region
      $region21: #{scalor_forward.5} parent=11 // pred_check
        %p383 = pneg %p310
      $region22: #{scalor_forward.5} parent=11 // pred_check_branch
        %385 = sbr.rel (%p383) target = $region24
      $region23: #{scalor_forward.5} parent=11 // pred_region
        _
      $region24: #{scalor_forward.5} parent=11 // pred_fallthru
        _
    $region12: #{scalor_forward.5} parent=5 // pred_fallthru
      _
    %p386 = scmp.lt.s32.totalorder %s19, 4
    // Predicated region
    $region25: #{scalor_forward.5} parent=5 // pred_check
      %p387 = pneg %p386
    $region26: #{scalor_forward.5} parent=5 // pred_check_branch
      %389 = sbr.rel (%p387) target = $region28
    $region27: #{scalor_forward.5} parent=5 // pred_region
      // Predicated region
      $region29: #{scalor_forward.5} parent=27 // pred_check
        %p390 = pneg %p39
      $region30: #{scalor_forward.5} parent=27 // pred_check_branch
        %392 = sbr.rel (%p390) target = $region32
      $region31: #{scalor_forward.5} parent=27 // pred_region
        %p393 = scmp.lt.s32.totalorder %s19, 3
        %s394 = scalar_select %p393, %s19, 3
        %s395 = smul.addr %s394, 6
        %s396 = smul.addr %s395, 8
        %s397 = scalar_lea.vmem %s0, %s396
      $region32: #{scalor_forward.5} parent=27 // pred_fallthru
        _
      // Predicated region
      $region33: #{scalor_forward.5} parent=27 // pred_check
        %p398 = pneg %p65
      $region34: #{scalor_forward.5} parent=27 // pred_check_branch
        %400 = sbr.rel (%p398) target = $region36
      $region35: #{scalor_forward.5} parent=27 // pred_region
        %p401 = scmp.lt.s32.totalorder %s19, 3
        %s402 = scalar_select %p401, %s19, 3
        %s403 = smul.addr %s402, 8
        %s404 = scalar_lea.vmem %s1, %s403
      $region36: #{scalor_forward.5} parent=27 // pred_fallthru
        _
      // Predicated region
      $region37: #{scalor_forward.5} parent=27 // pred_check
        %p405 = pneg %p91
      $region38: #{scalor_forward.5} parent=27 // pred_check_branch
        %407 = sbr.rel (%p405) target = $region40
      $region39: #{scalor_forward.5} parent=27 // pred_region
        %p408 = scmp.lt.s32.totalorder %s19, 3
        %s409 = scalar_select %p408, %s19, 3
        %s410 = smul.addr %s409, 8
        %s411 = scalar_lea.vmem %s2, %s410
      $region40: #{scalor_forward.5} parent=27 // pred_fallthru
        _
      // Predicated region
      $region41: #{scalor_forward.5} parent=27 // pred_check
        %p412 = pneg %p142
      $region42: #{scalor_forward.5} parent=27 // pred_check_branch
        %414 = sbr.rel (%p412) target = $region44
      $region43: #{scalor_forward.5} parent=27 // pred_region
        %p415 = scmp.lt.s32.totalorder %s19, 1
        %s416 = scalar_select %p415, %s19, 1
        %p417 = scmp.lt.s32.totalorder %s416, 1
        %s418 = scalar_select %p417, %s416, 1
        %s419 = smul.addr %s418, 96
        %s420 = smul.addr %s419, 4
        %s421 = scalar_lea.vmem %s4, %s420
        %p422 = scmp.lt.s32.totalorder %s19, 1
        %s423 = scalar_select %p422, %s19, 1
      $region44: #{scalor_forward.5} parent=27 // pred_fallthru
        _
      // Predicated region
      $region45: #{scalor_forward.5} parent=27 // pred_check
        %p424 = pneg %p172
      $region46: #{scalor_forward.5} parent=27 // pred_check_branch
        %426 = sbr.rel (%p424) target = $region48
      $region47: #{scalor_forward.5} parent=27 // pred_region
        %p427 = scmp.lt.s32.totalorder %s19, 1
        %s428 = scalar_select %p427, %s19, 1
        %p429 = scmp.lt.s32.totalorder %s428, 1
        %s430 = scalar_select %p429, %s428, 1
        %s431 = smul.addr %s430, 4
        %s432 = smul.addr %s431, 4
        %s433 = scalar_lea.vmem %s5, %s432
        %p434 = scmp.lt.s32.totalorder %s19, 1
        %s435 = scalar_select %p434, %s19, 1
      $region48: #{scalor_forward.5} parent=27 // pred_fallthru
        _
      // Predicated region
      $region49: #{scalor_forward.5} parent=27 // pred_check
        %p436 = pneg %p202
      $region50: #{scalor_forward.5} parent=27 // pred_check_branch
        %438 = sbr.rel (%p436) target = $region52
      $region51: #{scalor_forward.5} parent=27 // pred_region
        %p439 = scmp.lt.s32.totalorder %s19, 1
        %s440 = scalar_select %p439, %s19, 1
        %p441 = scmp.lt.s32.totalorder %s440, 1
        %s442 = scalar_select %p441, %s440, 1
        %s443 = scalar_lea.vmem %s6, %s442
        %p444 = scmp.lt.s32.totalorder %s19, 1
        %s445 = scalar_select %p444, %s19, 1
      $region52: #{scalor_forward.5} parent=27 // pred_fallthru
        _
      // Predicated region
      $region53: #{scalor_forward.5} parent=27 // pred_check
        %p446 = pneg %p232
      $region54: #{scalor_forward.5} parent=27 // pred_check_branch
        %448 = sbr.rel (%p446) target = $region56
      $region55: #{scalor_forward.5} parent=27 // pred_region
        %p449 = scmp.lt.s32.totalorder %s19, 1
        %s450 = scalar_select %p449, %s19, 1
        %p451 = scmp.lt.s32.totalorder %s450, 1
        %s452 = scalar_select %p451, %s450, 1
        %s453 = smul.addr %s452, 8
        %s454 = smul.addr %s453, 4
        %s455 = scalar_lea.vmem %s7, %s454
        %p456 = scmp.lt.s32.totalorder %s19, 1
        %s457 = scalar_select %p456, %s19, 1
      $region56: #{scalor_forward.5} parent=27 // pred_fallthru
        _
      // Predicated region
      $region57: #{scalor_forward.5} parent=27 // pred_check
        %p458 = pneg %p262
      $region58: #{scalor_forward.5} parent=27 // pred_check_branch
        %460 = sbr.rel (%p458) target = $region60
      $region59: #{scalor_forward.5} parent=27 // pred_region
        %p461 = scmp.lt.s32.totalorder %s19, 1
        %s462 = scalar_select %p461, %s19, 1
        %p463 = scmp.lt.s32.totalorder %s462, 1
        %s464 = scalar_select %p463, %s462, 1
        %s465 = scalar_lea.vmem %s8, %s464
        %p466 = scmp.lt.s32.totalorder %s19, 1
        %s467 = scalar_select %p466, %s19, 1
      $region60: #{scalor_forward.5} parent=27 // pred_fallthru
        _
    $region28: #{scalor_forward.5} parent=5 // pred_fallthru
      _
    %p468 = scmp.le.s32.totalorder 1, %s19
    %p469 = scmp.lt.s32.totalorder %s19, 5
    %p470 = pnand %p468, %p469
    %p471 = pneg %p470
    // Predicated region
    $region61: #{scalor_forward.5} parent=5 // pred_check
      _
    $region62: #{scalor_forward.5} parent=5 // pred_check_branch
      %473 = sbr.rel (%p470) target = $region64
    $region63: #{scalor_forward.5} parent=5 // pred_region
      %s474 = ssub.s32 %s19, 1
      %p475 = scmp.lt.s32.totalorder %s24, 3
      %s476 = scalar_select %p475, %s24, 3
      %s477 = smul.addr %s476, 6
      %s478 = smul.addr %s477, 8
      %s479 = scalar_lea.vmem %s0, %s478
      %p480 = pneg %p45
      %p481 = pneg %p42
      %p482 = scmp.lt.s32.totalorder %s24, 3
      %s483 = scalar_select %p482, %s24, 3
      %s484 = smul.addr %s483, 8
      %s485 = scalar_lea.vmem %s1, %s484
      %p486 = pneg %p71
      %p487 = pneg %p68
      %p488 = scmp.lt.s32.totalorder %s24, 3
      %s489 = scalar_select %p488, %s24, 3
      %s490 = smul.addr %s489, 8
      %s491 = scalar_lea.vmem %s2, %s490
      %p492 = pneg %p97
      %p493 = pneg %p94
      %p494 = pneg %p118
      %p495 = pneg %p115
      %p496 = scmp.lt.s32.totalorder %s24, 1
      %s497 = scalar_select %p496, %s24, 1
      %p498 = scmp.lt.s32.totalorder %s497, 1
      %s499 = scalar_select %p498, %s497, 1
      %s500 = smul.addr %s499, 96
      %s501 = smul.addr %s500, 4
      %s502 = scalar_lea.vmem %s4, %s501
      %p503 = pneg %p148
      %p504 = pneg %p145
      %p505 = scmp.lt.s32.totalorder %s24, 1
      %s506 = scalar_select %p505, %s24, 1
      %p507 = scmp.lt.s32.totalorder %s506, 1
      %s508 = scalar_select %p507, %s506, 1
      %s509 = smul.addr %s508, 4
      %s510 = smul.addr %s509, 4
      %s511 = scalar_lea.vmem %s5, %s510
      %p512 = pneg %p178
      %p513 = pneg %p175
      %p514 = scmp.lt.s32.totalorder %s24, 1
      %s515 = scalar_select %p514, %s24, 1
      %p516 = scmp.lt.s32.totalorder %s515, 1
      %s517 = scalar_select %p516, %s515, 1
      %s518 = scalar_lea.vmem %s6, %s517
      %p519 = pneg %p208
      %p520 = pneg %p205
      %p521 = scmp.lt.s32.totalorder %s24, 1
      %s522 = scalar_select %p521, %s24, 1
      %p523 = scmp.lt.s32.totalorder %s522, 1
      %s524 = scalar_select %p523, %s522, 1
      %s525 = smul.addr %s524, 8
      %s526 = smul.addr %s525, 4
      %s527 = scalar_lea.vmem %s7, %s526
      %p528 = pneg %p238
      %p529 = pneg %p235
      %p530 = scmp.lt.s32.totalorder %s24, 1
      %s531 = scalar_select %p530, %s24, 1
      %p532 = scmp.lt.s32.totalorder %s531, 1
      %s533 = scalar_select %p532, %s531, 1
      %s534 = scalar_lea.vmem %s8, %s533
      %p535 = pneg %p268
      %p536 = pneg %p265
      %p537 = pneg %p289
      %p538 = pneg %p286
      %p539 = pneg %p310
      %p540 = pneg %p307
      %p541 = pneg %p336
      %p542 = pneg %p333
      %p543 = scmp.lt.s32.totalorder %s24, 3
      %s544 = scalar_select %p543, %s24, 3
      %s545 = smul.addr %s544, 6
      %s546 = smul.addr %s545, 8
      %s547 = scalar_lea.vmem %s11, %s546
      %p548 = pneg %p362
      %p549 = pneg %p359
      %p550 = scmp.lt.s32.totalorder %s24, 3
      %s551 = scalar_select %p550, %s24, 3
      %s552 = smul.addr %s551, 8
      %s553 = scalar_lea.vmem %s12, %s552
      %p554 = scmp.lt.s32.totalorder %s24, 3
      %s555 = scalar_select %p554, %s24, 3
      %s556 = smul.addr %s555, 6
      %s557 = smul.addr %s556, 8
      %s558 = scalar_lea.vmem %s0, %s557
      %p559 = scmp.lt.s32.totalorder %s24, 3
      %s560 = scalar_select %p559, %s24, 3
      %s561 = smul.addr %s560, 8
      %s562 = scalar_lea.vmem %s1, %s561
      %p563 = scmp.lt.s32.totalorder %s24, 3
      %s564 = scalar_select %p563, %s24, 3
      %s565 = smul.addr %s564, 8
      %s566 = scalar_lea.vmem %s2, %s565
      %p567 = scmp.lt.s32.totalorder %s24, 1
      %s568 = scalar_select %p567, %s24, 1
      %p569 = scmp.lt.s32.totalorder %s568, 1
      %s570 = scalar_select %p569, %s568, 1
      %s571 = smul.addr %s570, 96
      %s572 = smul.addr %s571, 4
      %s573 = scalar_lea.vmem %s4, %s572
      %p574 = scmp.lt.s32.totalorder %s24, 1
      %s575 = scalar_select %p574, %s24, 1
      %p576 = scmp.lt.s32.totalorder %s24, 1
      %s577 = scalar_select %p576, %s24, 1
      %p578 = scmp.lt.s32.totalorder %s577, 1
      %s579 = scalar_select %p578, %s577, 1
      %s580 = smul.addr %s579, 4
      %s581 = smul.addr %s580, 4
      %s582 = scalar_lea.vmem %s5, %s581
      %p583 = scmp.lt.s32.totalorder %s24, 1
      %s584 = scalar_select %p583, %s24, 1
      %p585 = scmp.lt.s32.totalorder %s24, 1
      %s586 = scalar_select %p585, %s24, 1
      %p587 = scmp.lt.s32.totalorder %s586, 1
      %s588 = scalar_select %p587, %s586, 1
      %s589 = scalar_lea.vmem %s6, %s588
      %p590 = scmp.lt.s32.totalorder %s24, 1
      %s591 = scalar_select %p590, %s24, 1
      %p592 = scmp.lt.s32.totalorder %s24, 1
      %s593 = scalar_select %p592, %s24, 1
      %p594 = scmp.lt.s32.totalorder %s593, 1
      %s595 = scalar_select %p594, %s593, 1
      %s596 = smul.addr %s595, 8
      %s597 = smul.addr %s596, 4
      %s598 = scalar_lea.vmem %s7, %s597
      %p599 = scmp.lt.s32.totalorder %s24, 1
      %s600 = scalar_select %p599, %s24, 1
      %p601 = scmp.lt.s32.totalorder %s24, 1
      %s602 = scalar_select %p601, %s24, 1
      %p603 = scmp.lt.s32.totalorder %s602, 1
      %s604 = scalar_select %p603, %s602, 1
      %s605 = scalar_lea.vmem %s8, %s604
      %p606 = scmp.lt.s32.totalorder %s24, 1
      %s607 = scalar_select %p606, %s24, 1
      %p608 = scmp.lt.s32.totalorder %s24, 3
      %s609 = scalar_select %p608, %s24, 3
      %s610 = smul.addr %s609, 6
      %s611 = smul.addr %s610, 8
      %s612 = scalar_lea.vmem %s11, %s611
      %p613 = scmp.lt.s32.totalorder %s24, 3
      %s614 = scalar_select %p613, %s24, 3
      %s615 = smul.addr %s614, 8
      %s616 = scalar_lea.vmem %s12, %s615
      %p618 = scmp.eq.s32.totalorder %s24, 0
      // Predicated region
      $region65: #{scalor_forward.5} parent=63 // pred_check
        %p619 = pneg %p618
      $region66: #{scalor_forward.5} parent=63 // pred_check_branch
        %621 = sbr.rel (%p619) target = $region68
      $region67: #{scalor_forward.5} parent=63 // pred_region
        %vm622 = vcmask 261120
        %623 = vst.msk [vmem:[#allocation2] sm:$0xff] %vm622, 0.0
      $region68: #{scalor_forward.5} parent=63 // pred_fallthru
        _
      %v624 = vld [vmem:[%s562] sm:$0xff]
      %626 = vrot.lane.b32.xlu0 %v624, 16
      %v627 = vpop.permute.xlu0 %626
      %vm629 = vcmask 162944
      %630 = vst.msk [vmem:[#allocation2] sm:$0xff] %vm629, %v627
      %v631 = vld [vmem:[%s558] sm:$0xff]
      %v632 = vld [vmem:[%s558 + $0x8] sm:$0xff]
      %v633 = vld [vmem:[%s558 + $0x10] sm:$0xff]
      %v634 = vld [vmem:[%s558 + $0x18] sm:$0xff]
      %v635 = vld [vmem:[%s558 + $0x20] sm:$0xff]
      %v636 = vld [vmem:[%s558 + $0x28] sm:$0xff]
      %v637 = vld [vmem:[#allocation2] sm:$0xff]
      %v638 = vld [vmem:[%s566] sm:$0xff]
      %v639 = vld [vmem:[%s3] sm:$0xff]
      %v640 = vld [vmem:[%s3 + $0x8] sm:$0xff]
      %v641 = vld [vmem:[%s3 + $0x10] sm:$0xff]
      %v642 = vld [vmem:[%s3 + $0x18] sm:$0xff]
      %v643 = vld [vmem:[%s3 + $0x20] sm:$0xff]
      %v644 = vld [vmem:[%s3 + $0x28] sm:$0xff]
      %v645 = vpack.c.bf16 %v631, %v631
      %v646 = vpack.c.bf16 %v632, %v632
      %v647 = vpack.c.bf16 %v633, %v633
      %v648 = vpack.c.bf16 %v634, %v634
      %v649 = vpack.c.bf16 %v635, %v635
      %v650 = vpack.c.bf16 %v636, %v636
      %v651 = vld [vmem:[%s573] sm:$0xf]
      %v652 = vld [vmem:[%s573 + $0x4] sm:$0xf]
      %v653 = vld [vmem:[%s573 + $0x8] sm:$0xf]
      %v654 = vld [vmem:[%s573 + $0xc] sm:$0xf]
      %v655 = vld [vmem:[%s573 + $0x10] sm:$0xf]
      %v656 = vld [vmem:[%s573 + $0x14] sm:$0xf]
      %v657 = vld [vmem:[%s573 + $0x18] sm:$0xf]
      %v658 = vld [vmem:[%s573 + $0x1c] sm:$0xf]
      %v659 = vld [vmem:[%s573 + $0x20] sm:$0xf]
      %v660 = vld [vmem:[%s573 + $0x24] sm:$0xf]
      %v661 = vld [vmem:[%s573 + $0x28] sm:$0xf]
      %v662 = vld [vmem:[%s573 + $0x2c] sm:$0xf]
      %v663 = vld [vmem:[%s573 + $0x30] sm:$0xf]
      %v664 = vld [vmem:[%s573 + $0x34] sm:$0xf]
      %v665 = vld [vmem:[%s573 + $0x38] sm:$0xf]
      %v666 = vld [vmem:[%s573 + $0x3c] sm:$0xf]
      %v667 = vld [vmem:[%s573 + $0x40] sm:$0xf]
      %v668 = vld [vmem:[%s573 + $0x44] sm:$0xf]
      %v669 = vld [vmem:[%s573 + $0x48] sm:$0xf]
      %v670 = vld [vmem:[%s573 + $0x4c] sm:$0xf]
      %v671 = vld [vmem:[%s573 + $0x50] sm:$0xf]
      %v672 = vld [vmem:[%s573 + $0x54] sm:$0xf]
      %v673 = vld [vmem:[%s573 + $0x58] sm:$0xf]
      %v674 = vld [vmem:[%s573 + $0x5c] sm:$0xf]
      %v675 = vld [vmem:[%s573 + $0x60] sm:$0xf]
      %v676 = vld [vmem:[%s573 + $0x64] sm:$0xf]
      %v677 = vld [vmem:[%s573 + $0x68] sm:$0xf]
      %v678 = vld [vmem:[%s573 + $0x6c] sm:$0xf]
      %v679 = vld [vmem:[%s573 + $0x70] sm:$0xf]
      %v680 = vld [vmem:[%s573 + $0x74] sm:$0xf]
      %v681 = vld [vmem:[%s573 + $0x78] sm:$0xf]
      %v682 = vld [vmem:[%s573 + $0x7c] sm:$0xf]
      %v683 = vld [vmem:[%s573 + $0x80] sm:$0xf]
      %v684 = vld [vmem:[%s573 + $0x84] sm:$0xf]
      %v685 = vld [vmem:[%s573 + $0x88] sm:$0xf]
      %v686 = vld [vmem:[%s573 + $0x8c] sm:$0xf]
      %v687 = vld [vmem:[%s573 + $0x90] sm:$0xf]
      %v688 = vld [vmem:[%s573 + $0x94] sm:$0xf]
      %v689 = vld [vmem:[%s573 + $0x98] sm:$0xf]
      %v690 = vld [vmem:[%s573 + $0x9c] sm:$0xf]
      %v691 = vld [vmem:[%s573 + $0xa0] sm:$0xf]
      %v692 = vld [vmem:[%s573 + $0xa4] sm:$0xf]
      %v693 = vld [vmem:[%s573 + $0xa8] sm:$0xf]
      %v694 = vld [vmem:[%s573 + $0xac] sm:$0xf]
      %v695 = vld [vmem:[%s573 + $0xb0] sm:$0xf]
      %v696 = vld [vmem:[%s573 + $0xb4] sm:$0xf]
      %v697 = vld [vmem:[%s573 + $0xb8] sm:$0xf]
      %v698 = vld [vmem:[%s573 + $0xbc] sm:$0xf]
      %v699 = vld [vmem:[%s573 + $0xc0] sm:$0xf]
      %v700 = vld [vmem:[%s573 + $0xc4] sm:$0xf]
      %v701 = vld [vmem:[%s573 + $0xc8] sm:$0xf]
      %v702 = vld [vmem:[%s573 + $0xcc] sm:$0xf]
      %v703 = vld [vmem:[%s573 + $0xd0] sm:$0xf]
      %v704 = vld [vmem:[%s573 + $0xd4] sm:$0xf]
      %v705 = vld [vmem:[%s573 + $0xd8] sm:$0xf]
      %v706 = vld [vmem:[%s573 + $0xdc] sm:$0xf]
      %v707 = vld [vmem:[%s573 + $0xe0] sm:$0xf]
      %v708 = vld [vmem:[%s573 + $0xe4] sm:$0xf]
      %v709 = vld [vmem:[%s573 + $0xe8] sm:$0xf]
      %v710 = vld [vmem:[%s573 + $0xec] sm:$0xf]
      %v711 = vld [vmem:[%s573 + $0xf0] sm:$0xf]
      %v712 = vld [vmem:[%s573 + $0xf4] sm:$0xf]
      %v713 = vld [vmem:[%s573 + $0xf8] sm:$0xf]
      %v714 = vld [vmem:[%s573 + $0xfc] sm:$0xf]
      %v715 = vld [vmem:[%s573 + $0x100] sm:$0xf]
      %v716 = vld [vmem:[%s573 + $0x104] sm:$0xf]
      %v717 = vld [vmem:[%s573 + $0x108] sm:$0xf]
      %v718 = vld [vmem:[%s573 + $0x10c] sm:$0xf]
      %v719 = vld [vmem:[%s573 + $0x110] sm:$0xf]
      %v720 = vld [vmem:[%s573 + $0x114] sm:$0xf]
      %v721 = vld [vmem:[%s573 + $0x118] sm:$0xf]
      %v722 = vld [vmem:[%s573 + $0x11c] sm:$0xf]
      %v723 = vld [vmem:[%s573 + $0x120] sm:$0xf]
      %v724 = vld [vmem:[%s573 + $0x124] sm:$0xf]
      %v725 = vld [vmem:[%s573 + $0x128] sm:$0xf]
      %v726 = vld [vmem:[%s573 + $0x12c] sm:$0xf]
      %v727 = vld [vmem:[%s573 + $0x130] sm:$0xf]
      %v728 = vld [vmem:[%s573 + $0x134] sm:$0xf]
      %v729 = vld [vmem:[%s573 + $0x138] sm:$0xf]
      %v730 = vld [vmem:[%s573 + $0x13c] sm:$0xf]
      %v731 = vld [vmem:[%s573 + $0x140] sm:$0xf]
      %v732 = vld [vmem:[%s573 + $0x144] sm:$0xf]
      %v733 = vld [vmem:[%s573 + $0x148] sm:$0xf]
      %v734 = vld [vmem:[%s573 + $0x14c] sm:$0xf]
      %v735 = vld [vmem:[%s573 + $0x150] sm:$0xf]
      %v736 = vld [vmem:[%s573 + $0x154] sm:$0xf]
      %v737 = vld [vmem:[%s573 + $0x158] sm:$0xf]
      %v738 = vld [vmem:[%s573 + $0x15c] sm:$0xf]
      %v739 = vld [vmem:[%s573 + $0x160] sm:$0xf]
      %v740 = vld [vmem:[%s573 + $0x164] sm:$0xf]
      %v741 = vld [vmem:[%s573 + $0x168] sm:$0xf]
      %v742 = vld [vmem:[%s573 + $0x16c] sm:$0xf]
      %v743 = vld [vmem:[%s573 + $0x170] sm:$0xf]
      %v744 = vld [vmem:[%s573 + $0x174] sm:$0xf]
      %v745 = vld [vmem:[%s573 + $0x178] sm:$0xf]
      %v746 = vld [vmem:[%s573 + $0x17c] sm:$0xf]
      %v747 = vpack.c.bf16 %v637, %v637
      %v748 = vld [vmem:[%s582] sm:$0xf]
      %v749 = vld [vmem:[%s582 + $0x4] sm:$0xf]
      %v750 = vld [vmem:[%s582 + $0x8] sm:$0xf]
      %v751 = vld [vmem:[%s582 + $0xc] sm:$0xf]
      %v756 = vunpack.c.l.b16 %v748
      %v757 = vunpack.c.l.b16 %v749
      %v758 = vunpack.c.l.b16 %v750
      %v759 = vunpack.c.l.b16 %v751
      %v760 = vpack.c.b16 %v757, %v756
      %v761 = vpack.c.b16 %v759, %v758
      %vm764 = vcmask 261120
      %v766 = vsel %vm764, %v747, 0
      %768 = vmatprep.subr.bf16.mxu0 0
      %769 = vmatpush1.bf16.msra.mxu0 %v760
      %770 = vmatprep.subr.bf16.mxu0 0
      %771 = vmatpush1.bf16.msra.mxu0 %v761
      %772 = vmatprep.subr.bf16.mxu0 0
      %773 = vmatpush1.bf16.msra.mxu0 0
      %774 = vmatprep.subr.bf16.mxu0 0
      %775 = vmatpush1.bf16.msra.mxu0 0
      %776 = vmatprep.subr.bf16.mxu0 0
      %777 = vmatpush1.bf16.msra.mxu0 0
      %778 = vmatprep.subr.bf16.mxu0 0
      %779 = vmatpush1.bf16.msra.mxu0 0
      %780 = vmatprep.subr.bf16.mxu0 0
      %781 = vmatpush1.bf16.msra.mxu0 0
      %782 = vmatprep.subr.bf16.mxu0 0
      %783 = vmatpush1.bf16.msra.mxu0 0
      %784 = vmatprep.subr.bf16.mxu0 0
      %785 = vmatpush1.bf16.msra.mxu0 0
      %786 = vmatprep.subr.bf16.mxu0 0
      %787 = vmatpush1.bf16.msra.mxu0 0
      %788 = vmatprep.subr.bf16.mxu0 0
      %789 = vmatpush1.bf16.msra.mxu0 0
      %790 = vmatprep.subr.bf16.mxu0 0
      %791 = vmatpush1.bf16.msra.mxu0 0
      %792 = vmatprep.subr.bf16.mxu0 0
      %793 = vmatpush1.bf16.msra.mxu0 0
      %794 = vmatprep.subr.bf16.mxu0 0
      %795 = vmatpush1.bf16.msra.mxu0 0
      %796 = vmatprep.subr.bf16.mxu0 0
      %797 = vmatpush1.bf16.msra.mxu0 0
      %798 = vmatprep.subr.bf16.mxu0 0
      %799 = vmatpush1.bf16.msra.mxu0 0
      %800 = vmatprep.mubr.bf16.mxu0 0
      %801 = vmatmul.mubr.bf16.gmra.mrb[0].mxu0 %v766
      %v802 = vpop.f32.mrb[0].mxu0
      %v803 = vadd.f32 0.0, %v802
      %v804 = vpop.f32.mrb[0].mxu0
      %v805 = vpop.f32.mrb[0].mxu0
      %v806 = vpop.f32.mrb[0].mxu0
      %807 = vdwg.mxu0
      %v904 = vunpack.c.l.b16 %v651
      %v905 = vunpack.c.l.b16 %v652
      %v906 = vunpack.c.l.b16 %v653
      %v907 = vunpack.c.l.b16 %v654
      %v908 = vunpack.c.l.b16 %v655
      %v909 = vunpack.c.l.b16 %v656
      %v910 = vunpack.c.l.b16 %v657
      %v911 = vunpack.c.l.b16 %v658
      %v912 = vunpack.c.l.b16 %v659
      %v913 = vunpack.c.l.b16 %v660
      %v914 = vunpack.c.l.b16 %v661
      %v915 = vunpack.c.l.b16 %v662
      %v916 = vunpack.c.l.b16 %v663
      %v917 = vunpack.c.l.b16 %v664
      %v918 = vunpack.c.l.b16 %v665
      %v919 = vunpack.c.l.b16 %v666
      %v920 = vunpack.c.l.b16 %v667
      %v921 = vunpack.c.l.b16 %v668
      %v922 = vunpack.c.l.b16 %v669
      %v923 = vunpack.c.l.b16 %v670
      %v924 = vunpack.c.l.b16 %v671
      %v925 = vunpack.c.l.b16 %v672
      %v926 = vunpack.c.l.b16 %v673
      %v927 = vunpack.c.l.b16 %v674
      %v928 = vunpack.c.l.b16 %v675
      %v929 = vunpack.c.l.b16 %v676
      %v930 = vunpack.c.l.b16 %v677
      %v931 = vunpack.c.l.b16 %v678
      %v932 = vunpack.c.l.b16 %v679
      %v933 = vunpack.c.l.b16 %v680
      %v934 = vunpack.c.l.b16 %v681
      %v935 = vunpack.c.l.b16 %v682
      %v936 = vunpack.c.l.b16 %v683
      %v937 = vunpack.c.l.b16 %v684
      %v938 = vunpack.c.l.b16 %v685
      %v939 = vunpack.c.l.b16 %v686
      %v940 = vunpack.c.l.b16 %v687
      %v941 = vunpack.c.l.b16 %v688
      %v942 = vunpack.c.l.b16 %v689
      %v943 = vunpack.c.l.b16 %v690
      %v944 = vunpack.c.l.b16 %v691
      %v945 = vunpack.c.l.b16 %v692
      %v946 = vunpack.c.l.b16 %v693
      %v947 = vunpack.c.l.b16 %v694
      %v948 = vunpack.c.l.b16 %v695
      %v949 = vunpack.c.l.b16 %v696
      %v950 = vunpack.c.l.b16 %v697
      %v951 = vunpack.c.l.b16 %v698
      %v952 = vunpack.c.l.b16 %v699
      %v953 = vunpack.c.l.b16 %v700
      %v954 = vunpack.c.l.b16 %v701
      %v955 = vunpack.c.l.b16 %v702
      %v956 = vunpack.c.l.b16 %v703
      %v957 = vunpack.c.l.b16 %v704
      %v958 = vunpack.c.l.b16 %v705
      %v959 = vunpack.c.l.b16 %v706
      %v960 = vunpack.c.l.b16 %v707
      %v961 = vunpack.c.l.b16 %v708
      %v962 = vunpack.c.l.b16 %v709
      %v963 = vunpack.c.l.b16 %v710
      %v964 = vunpack.c.l.b16 %v711
      %v965 = vunpack.c.l.b16 %v712
      %v966 = vunpack.c.l.b16 %v713
      %v967 = vunpack.c.l.b16 %v714
      %v968 = vunpack.c.l.b16 %v715
      %v969 = vunpack.c.l.b16 %v716
      %v970 = vunpack.c.l.b16 %v717
      %v971 = vunpack.c.l.b16 %v718
      %v972 = vunpack.c.l.b16 %v719
      %v973 = vunpack.c.l.b16 %v720
      %v974 = vunpack.c.l.b16 %v721
      %v975 = vunpack.c.l.b16 %v722
      %v976 = vunpack.c.l.b16 %v723
      %v977 = vunpack.c.l.b16 %v724
      %v978 = vunpack.c.l.b16 %v725
      %v979 = vunpack.c.l.b16 %v726
      %v980 = vunpack.c.l.b16 %v727
      %v981 = vunpack.c.l.b16 %v728
      %v982 = vunpack.c.l.b16 %v729
      %v983 = vunpack.c.l.b16 %v730
      %v984 = vunpack.c.l.b16 %v731
      %v985 = vunpack.c.l.b16 %v732
      %v986 = vunpack.c.l.b16 %v733
      %v987 = vunpack.c.l.b16 %v734
      %v988 = vunpack.c.l.b16 %v735
      %v989 = vunpack.c.l.b16 %v736
      %v990 = vunpack.c.l.b16 %v737
      %v991 = vunpack.c.l.b16 %v738
      %v992 = vunpack.c.l.b16 %v739
      %v993 = vunpack.c.l.b16 %v740
      %v994 = vunpack.c.l.b16 %v741
      %v995 = vunpack.c.l.b16 %v742
      %v996 = vunpack.c.l.b16 %v743
      %v997 = vunpack.c.l.b16 %v744
      %v998 = vunpack.c.l.b16 %v745
      %v999 = vunpack.c.l.b16 %v746
      %v1000 = vpack.c.b16 %v905, %v904
      %v1001 = vpack.c.b16 %v907, %v906
      %v1002 = vpack.c.b16 %v909, %v908
      %v1003 = vpack.c.b16 %v911, %v910
      %v1004 = vpack.c.b16 %v913, %v912
      %v1005 = vpack.c.b16 %v915, %v914
      %v1006 = vpack.c.b16 %v917, %v916
      %v1007 = vpack.c.b16 %v919, %v918
      %v1008 = vpack.c.b16 %v921, %v920
      %v1009 = vpack.c.b16 %v923, %v922
      %v1010 = vpack.c.b16 %v925, %v924
      %v1011 = vpack.c.b16 %v927, %v926
      %v1012 = vpack.c.b16 %v929, %v928
      %v1013 = vpack.c.b16 %v931, %v930
      %v1014 = vpack.c.b16 %v933, %v932
      %v1015 = vpack.c.b16 %v935, %v934
      %v1016 = vpack.c.b16 %v937, %v936
      %v1017 = vpack.c.b16 %v939, %v938
      %v1018 = vpack.c.b16 %v941, %v940
      %v1019 = vpack.c.b16 %v943, %v942
      %v1020 = vpack.c.b16 %v945, %v944
      %v1021 = vpack.c.b16 %v947, %v946
      %v1022 = vpack.c.b16 %v949, %v948
      %v1023 = vpack.c.b16 %v951, %v950
      %v1024 = vpack.c.b16 %v953, %v952
      %v1025 = vpack.c.b16 %v955, %v954
      %v1026 = vpack.c.b16 %v957, %v956
      %v1027 = vpack.c.b16 %v959, %v958
      %v1028 = vpack.c.b16 %v961, %v960
      %v1029 = vpack.c.b16 %v963, %v962
      %v1030 = vpack.c.b16 %v965, %v964
      %v1031 = vpack.c.b16 %v967, %v966
      %v1032 = vpack.c.b16 %v969, %v968
      %v1033 = vpack.c.b16 %v971, %v970
      %v1034 = vpack.c.b16 %v973, %v972
      %v1035 = vpack.c.b16 %v975, %v974
      %v1036 = vpack.c.b16 %v977, %v976
      %v1037 = vpack.c.b16 %v979, %v978
      %v1038 = vpack.c.b16 %v981, %v980
      %v1039 = vpack.c.b16 %v983, %v982
      %v1040 = vpack.c.b16 %v985, %v984
      %v1041 = vpack.c.b16 %v987, %v986
      %v1042 = vpack.c.b16 %v989, %v988
      %v1043 = vpack.c.b16 %v991, %v990
      %v1044 = vpack.c.b16 %v993, %v992
      %v1045 = vpack.c.b16 %v995, %v994
      %v1046 = vpack.c.b16 %v997, %v996
      %v1047 = vpack.c.b16 %v999, %v998
      %1096 = vmatprep.subr.bf16.mxu0 0
      %1097 = vmatpush1.bf16.msra.mxu0 %v1000
      %1098 = vmatprep.subr.bf16.mxu0 0
      %1099 = vmatpush1.bf16.msra.mxu0 %v1001
      %1100 = vmatprep.subr.bf16.mxu0 0
      %1101 = vmatpush1.bf16.msra.mxu0 %v1002
      %1102 = vmatprep.subr.bf16.mxu0 0
      %1103 = vmatpush1.bf16.msra.mxu0 %v1003
      %1104 = vmatprep.subr.bf16.mxu0 0
      %1105 = vmatpush1.bf16.msra.mxu0 %v1004
      %1106 = vmatprep.subr.bf16.mxu0 0
      %1107 = vmatpush1.bf16.msra.mxu0 %v1005
      %1108 = vmatprep.subr.bf16.mxu0 0
      %1109 = vmatpush1.bf16.msra.mxu0 %v1006
      %1110 = vmatprep.subr.bf16.mxu0 0
      %1111 = vmatpush1.bf16.msra.mxu0 %v1007
      %1112 = vmatprep.subr.bf16.mxu0 0
      %1113 = vmatpush1.bf16.msra.mxu0 %v1008
      %1114 = vmatprep.subr.bf16.mxu0 0
      %1115 = vmatpush1.bf16.msra.mxu0 %v1009
      %1116 = vmatprep.subr.bf16.mxu0 0
      %1117 = vmatpush1.bf16.msra.mxu0 %v1010
      %1118 = vmatprep.subr.bf16.mxu0 0
      %1119 = vmatpush1.bf16.msra.mxu0 %v1011
      %1120 = vmatprep.subr.bf16.mxu0 0
      %1121 = vmatpush1.bf16.msra.mxu0 %v1012
      %1122 = vmatprep.subr.bf16.mxu0 0
      %1123 = vmatpush1.bf16.msra.mxu0 %v1013
      %1124 = vmatprep.subr.bf16.mxu0 0
      %1125 = vmatpush1.bf16.msra.mxu0 %v1014
      %1126 = vmatprep.subr.bf16.mxu0 0
      %1127 = vmatpush1.bf16.msra.mxu0 %v1015
      %1128 = vmatprep.mubr.bf16.mxu0 %v646
      %1129 = vmatmul.mubr.bf16.gmra.mrb[0].mxu0 %v645
      %v1130 = vpop.f32.mrb[0].mxu0
      %v1131 = vadd.f32 %v803, %v1130
      %v1132 = vpop.f32.mrb[0].mxu0
      %v1133 = vpop.f32.mrb[0].mxu0
      %v1134 = vpop.f32.mrb[0].mxu0
      %1135 = vdwg.mxu0
      %1136 = vmatprep.subr.bf16.mxu0 0
      %1137 = vmatpush1.bf16.msra.mxu0 %v1016
      %1138 = vmatprep.subr.bf16.mxu0 0
      %1139 = vmatpush1.bf16.msra.mxu0 %v1017
      %1140 = vmatprep.subr.bf16.mxu0 0
      %1141 = vmatpush1.bf16.msra.mxu0 %v1018
      %1142 = vmatprep.subr.bf16.mxu0 0
      %1143 = vmatpush1.bf16.msra.mxu0 %v1019
      %1144 = vmatprep.subr.bf16.mxu0 0
      %1145 = vmatpush1.bf16.msra.mxu0 %v1020
      %1146 = vmatprep.subr.bf16.mxu0 0
      %1147 = vmatpush1.bf16.msra.mxu0 %v1021
      %1148 = vmatprep.subr.bf16.mxu0 0
      %1149 = vmatpush1.bf16.msra.mxu0 %v1022
      %1150 = vmatprep.subr.bf16.mxu0 0
      %1151 = vmatpush1.bf16.msra.mxu0 %v1023
      %1152 = vmatprep.subr.bf16.mxu0 0
      %1153 = vmatpush1.bf16.msra.mxu0 %v1024
      %1154 = vmatprep.subr.bf16.mxu0 0
      %1155 = vmatpush1.bf16.msra.mxu0 %v1025
      %1156 = vmatprep.subr.bf16.mxu0 0
      %1157 = vmatpush1.bf16.msra.mxu0 %v1026
      %1158 = vmatprep.subr.bf16.mxu0 0
      %1159 = vmatpush1.bf16.msra.mxu0 %v1027
      %1160 = vmatprep.subr.bf16.mxu0 0
      %1161 = vmatpush1.bf16.msra.mxu0 %v1028
      %1162 = vmatprep.subr.bf16.mxu0 0
      %1163 = vmatpush1.bf16.msra.mxu0 %v1029
      %1164 = vmatprep.subr.bf16.mxu0 0
      %1165 = vmatpush1.bf16.msra.mxu0 %v1030
      %1166 = vmatprep.subr.bf16.mxu0 0
      %1167 = vmatpush1.bf16.msra.mxu0 %v1031
      %1168 = vmatprep.mubr.bf16.mxu0 %v648
      %1169 = vmatmul.mubr.bf16.gmra.mrb[0].mxu0 %v647
      %v1170 = vpop.f32.mrb[0].mxu0
      %v1171 = vadd.f32 %v1131, %v1170
      %v1172 = vpop.f32.mrb[0].mxu0
      %v1173 = vpop.f32.mrb[0].mxu0
      %v1174 = vpop.f32.mrb[0].mxu0
      %1175 = vdwg.mxu0
      %1176 = vmatprep.subr.bf16.mxu0 0
      %1177 = vmatpush1.bf16.msra.mxu0 %v1032
      %1178 = vmatprep.subr.bf16.mxu0 0
      %1179 = vmatpush1.bf16.msra.mxu0 %v1033
      %1180 = vmatprep.subr.bf16.mxu0 0
      %1181 = vmatpush1.bf16.msra.mxu0 %v1034
      %1182 = vmatprep.subr.bf16.mxu0 0
      %1183 = vmatpush1.bf16.msra.mxu0 %v1035
      %1184 = vmatprep.subr.bf16.mxu0 0
      %1185 = vmatpush1.bf16.msra.mxu0 %v1036
      %1186 = vmatprep.subr.bf16.mxu0 0
      %1187 = vmatpush1.bf16.msra.mxu0 %v1037
      %1188 = vmatprep.subr.bf16.mxu0 0
      %1189 = vmatpush1.bf16.msra.mxu0 %v1038
      %1190 = vmatprep.subr.bf16.mxu0 0
      %1191 = vmatpush1.bf16.msra.mxu0 %v1039
      %1192 = vmatprep.subr.bf16.mxu0 0
      %1193 = vmatpush1.bf16.msra.mxu0 %v1040
      %1194 = vmatprep.subr.bf16.mxu0 0
      %1195 = vmatpush1.bf16.msra.mxu0 %v1041
      %1196 = vmatprep.subr.bf16.mxu0 0
      %1197 = vmatpush1.bf16.msra.mxu0 %v1042
      %1198 = vmatprep.subr.bf16.mxu0 0
      %1199 = vmatpush1.bf16.msra.mxu0 %v1043
      %1200 = vmatprep.subr.bf16.mxu0 0
      %1201 = vmatpush1.bf16.msra.mxu0 %v1044
      %1202 = vmatprep.subr.bf16.mxu0 0
      %1203 = vmatpush1.bf16.msra.mxu0 %v1045
      %1204 = vmatprep.subr.bf16.mxu0 0
      %1205 = vmatpush1.bf16.msra.mxu0 %v1046
      %1206 = vmatprep.subr.bf16.mxu0 0
      %1207 = vmatpush1.bf16.msra.mxu0 %v1047
      %1208 = vmatprep.mubr.bf16.mxu0 %v650
      %1209 = vmatmul.mubr.bf16.gmra.mrb[0].mxu0 %v649
      %v1210 = vpop.f32.mrb[0].mxu0
      %v1211 = vadd.f32 %v1171, %v1210
      %v1212 = vpop.f32.mrb[0].mxu0
      %v1213 = vpop.f32.mrb[0].mxu0
      %v1214 = vpop.f32.mrb[0].mxu0
      %1215 = vdwg.mxu0
      %v1216 = vld [vmem:[%s589] sm:$0x1]
      %v1218 = vlaneseq
      %v1219 = vshrl.u32 %v1218, 7
      %v1220 = vsub.s32 0, %v1219
      %v1221 = vrot.slane %v1216, %v1220
      %v1223 = vadd.f32 %v1211, %v1221
      %v1224 = vmax.f32 %v1223, 0.0
      %v1225 = vpack.c.bf16 %v1224, %v1224
      %v1226 = vld [vmem:[%s598] sm:$0xf]
      %v1227 = vld [vmem:[%s598 + $0x4] sm:$0xf]
      %v1228 = vld [vmem:[%s598 + $0x8] sm:$0xf]
      %v1229 = vld [vmem:[%s598 + $0xc] sm:$0xf]
      %v1230 = vld [vmem:[%s598 + $0x10] sm:$0xf]
      %v1231 = vld [vmem:[%s598 + $0x14] sm:$0xf]
      %v1232 = vld [vmem:[%s598 + $0x18] sm:$0xf]
      %v1233 = vld [vmem:[%s598 + $0x1c] sm:$0xf]
      %v1234 = vld [vmem:[%s605] sm:$0x1]
      %v1236 = vlaneseq
      %v1237 = vshrl.u32 %v1236, 7
      %v1238 = vsub.s32 0, %v1237
      %v1239 = vrot.slane %v1234, %v1238
      %v1249 = vunpack.c.l.b16 %v1226
      %v1250 = vunpack.c.l.b16 %v1227
      %v1251 = vunpack.c.l.b16 %v1228
      %v1252 = vunpack.c.l.b16 %v1229
      %v1253 = vunpack.c.l.b16 %v1230
      %v1254 = vunpack.c.l.b16 %v1231
      %v1255 = vunpack.c.l.b16 %v1232
      %v1256 = vunpack.c.l.b16 %v1233
      %v1257 = vpack.c.b16 %v1250, %v1249
      %v1258 = vpack.c.b16 %v1252, %v1251
      %v1259 = vpack.c.b16 %v1254, %v1253
      %v1260 = vpack.c.b16 %v1256, %v1255
      %vm1265 = vcmask 523264
      %v1267 = vsel %vm1265, %v1225, 0
      %1269 = vmatprep.subr.bf16.mxu0 0
      %1270 = vmatpush1.bf16.msra.mxu0 %v1257
      %1271 = vmatprep.subr.bf16.mxu0 0
      %1272 = vmatpush1.bf16.msra.mxu0 %v1258
      %1273 = vmatprep.subr.bf16.mxu0 0
      %1274 = vmatpush1.bf16.msra.mxu0 %v1259
      %1275 = vmatprep.subr.bf16.mxu0 0
      %1276 = vmatpush1.bf16.msra.mxu0 %v1260
      %1277 = vmatprep.subr.bf16.mxu0 0
      %1278 = vmatpush1.bf16.msra.mxu0 0
      %1279 = vmatprep.subr.bf16.mxu0 0
      %1280 = vmatpush1.bf16.msra.mxu0 0
      %1281 = vmatprep.subr.bf16.mxu0 0
      %1282 = vmatpush1.bf16.msra.mxu0 0
      %1283 = vmatprep.subr.bf16.mxu0 0
      %1284 = vmatpush1.bf16.msra.mxu0 0
      %1285 = vmatprep.subr.bf16.mxu0 0
      %1286 = vmatpush1.bf16.msra.mxu0 0
      %1287 = vmatprep.subr.bf16.mxu0 0
      %1288 = vmatpush1.bf16.msra.mxu0 0
      %1289 = vmatprep.subr.bf16.mxu0 0
      %1290 = vmatpush1.bf16.msra.mxu0 0
      %1291 = vmatprep.subr.bf16.mxu0 0
      %1292 = vmatpush1.bf16.msra.mxu0 0
      %1293 = vmatprep.subr.bf16.mxu0 0
      %1294 = vmatpush1.bf16.msra.mxu0 0
      %1295 = vmatprep.subr.bf16.mxu0 0
      %1296 = vmatpush1.bf16.msra.mxu0 0
      %1297 = vmatprep.subr.bf16.mxu0 0
      %1298 = vmatpush1.bf16.msra.mxu0 0
      %1299 = vmatprep.subr.bf16.mxu0 0
      %1300 = vmatpush1.bf16.msra.mxu0 0
      %1301 = vmatprep.mubr.bf16.mxu0 0
      %1302 = vmatmul.mubr.bf16.gmra.mrb[0].mxu0 %v1267
      %v1303 = vpop.f32.mrb[0].mxu0
      %v1304 = vadd.f32 %v1239, %v1303
      %v1305 = vpop.f32.mrb[0].mxu0
      %v1306 = vpop.f32.mrb[0].mxu0
      %v1307 = vpop.f32.mrb[0].mxu0
      %1308 = vdwg.mxu0
      %vm1309 = vcmp.gt.f32.partialorder %v1304, 20.0
      %v1310 = vmin.f32 %v1304, 20.0
      %v1311 = vmul.f32 %v1310, 1.442695
      %v1312 = vpow.pop %v1311
      %v1313 = vadd.f32 %v1312, 1.0
      %v1314 = vlog2.pop %v1313
      %v1315 = vmul.f32 %v1314, 0.6931472
      %v1316 = vsel %vm1309, %v1304, %v1315
      %v1317 = vadd.f32 %v1316, 0.0001
      %v1318 = vlog2.pop %v1317
      %v1319 = vmul.f32 %v1318, 0.6931472
      %1321 = vrot.lane.b32.xlu0 %v638, 8
      %v1322 = vpop.permute.xlu0 %1321
      %v1324 = vmul.f32 %v1317, %v1322
      %1326 = vrot.lane.b32.xlu0 %v1324, 120
      %v1327 = vpop.permute.xlu0 %1326
      %v1329 = vadd.f32 %v1304, %v1327
      %1330 = vrot.lane.b32.xlu0 %v638, 12
      %v1331 = vpop.permute.xlu0 %1330
      %v1333 = vmul.f32 %v1317, %v1331
      %1335 = vrot.lane.b32.xlu0 %v1333, 124
      %v1336 = vpop.permute.xlu0 %1335
      %v1338 = vadd.f32 %v1304, %v1336
      %1339 = vrot.lane.b32.xlu0 %v638, 13
      %v1340 = vpop.permute.xlu0 %1339
      %v1342 = vmul.f32 %v1317, %v1340
      %1344 = vrot.lane.b32.xlu0 %v1342, 127
      %v1345 = vpop.permute.xlu0 %1344
      %v1347 = vadd.f32 %v1304, %v1345
      %v1348 = vxor.u32 %v1304, 2147483648
      %v1349 = vmul.f32 %v1348, 1.442695
      %v1350 = vpow.pop %v1349
      %v1351 = vadd.f32 %v1350, 1.0
      %v1352 = vrcp.pop %v1351
      %v1353 = vmul.f32 1.0, %v1352
      %v1354 = vsub.f32 0.0, %v1319
      %v1355 = vmul.f32 %v1317, %v1317
      %v1356 = vmul.f32 %v1304, %v1304
      %1358 = vrot.lane.b32.xlu0 %v1356, 8
      %v1359 = vpop.permute.xlu0 %1358
      %v1361 = vadd.f32 %v1355, %v1359
      %v1362 = vmul.f32 %v1361, 0.5
      %v1363 = vadd.f32 %v1354, %v1362
      %v1364 = vsub.f32 %v1363, 0.5
      %1366 = vrot.lane.b32.xlu0 %v1364, 120
      %v1367 = vpop.permute.xlu0 %1366
      %vm1369 = vcmask 64512
      %v1370 = vsel %vm1369, %v1367, 0.0
      %1371 = vadd.xlane.f32.xlu0 %v1370
      %v1372 = vpop.xlane.xlu0 %1371
      %v1373 = vadd.f32 %v1372, 0.0
      %1374 = vrot.lane.b32.xlu0 %v1356, 4
      %v1375 = vpop.permute.xlu0 %1374
      %v1377 = vadd.f32 %v1355, %v1375
      %v1378 = vmul.f32 %v1377, 0.5
      %v1379 = vadd.f32 %v1354, %v1378
      %v1380 = vsub.f32 %v1379, 0.5
      %1382 = vrot.lane.b32.xlu0 %v1380, 108
      %v1383 = vpop.permute.xlu0 %1382
      %vm1385 = vcmask 31744
      %v1386 = vsel %vm1385, %v1383, 0.0
      %1387 = vadd.xlane.f32.xlu0 %v1386
      %v1388 = vpop.xlane.xlu0 %1387
      %v1389 = vadd.f32 %v1388, 0.0
      %1390 = vrot.lane.b32.xlu0 %v1356, 1
      %v1391 = vpop.permute.xlu0 %1390
      %v1393 = vadd.f32 %v1355, %v1391
      %v1394 = vmul.f32 %v1393, 0.5
      %v1395 = vadd.f32 %v1354, %v1394
      %v1396 = vsub.f32 %v1395, 0.5
      %v1397 = vadd.f32 %v1396, 0.0
      %v1398 = vadd.f32 %v1397, 0.0
      %v1399 = vadd.f32 %v1353, 1e-15
      %v1400 = vlog2.pop %v1399
      %v1401 = vmul.f32 %v1400, 0.6931472
      %v1402 = vsub.f32 %v1401, -4.6051702
      %v1403 = vmul.f32 %v1353, %v1402
      %v1404 = vsub.f32 1.0, %v1353
      %v1405 = vadd.f32 %v1404, 1e-15
      %v1406 = vlog2.pop %v1405
      %v1407 = vmul.f32 %v1406, 0.6931472
      %v1408 = vsub.f32 %v1407, -0.010050336
      %v1409 = vmul.f32 %v1404, %v1408
      %v1410 = vadd.f32 %v1403, %v1409
      %v1411 = vadd.f32 %v1410, 0.0
      %vm1412 = vcmp.gt.f32.partialorder %v1353, 0.7
      %v1413 = vsel %vm1412, 1, 0
      %v1414 = vcvt.s32.f32 %v1413
      %v1415 = vadd.f32 %v1414, 0.0
      %1417 = vset.pattern.permute.xlu0 26
      %1418 = vperm.xlu0 %1417, %v1414
      %v1419 = vpop.permute.xlu0 %1418
      %v1421 = vmul.f32 %v1329, %v1419
      %v1422 = vadd.f32 %v1421, 0.0
      %v1423 = vmul.f32 %v1338, %v1419
      %v1424 = vadd.f32 %v1423, 0.0
      %1425 = vrot.lane.b32.xlu0 %v1414, 126
      %v1426 = vpop.permute.xlu0 %1425
      %v1428 = vmul.f32 %v1347, %v1426
      %v1429 = vadd.f32 %v1428, 0.0
      %v1430 = vmul.f32 %v1353, %v1414
      %v1431 = vadd.f32 %v1430, 0.0
      %1432 = vrot.lane.b32.xlu0 %v638, 27
      %v1433 = vpop.permute.xlu0 %1432
      %v1435 = vmul.f32 %v1317, %v1433
      %1437 = vrot.lane.b32.xlu0 %v1435, 120
      %v1438 = vpop.permute.xlu0 %1437
      %v1440 = vadd.f32 %v1304, %v1438
      %1441 = vrot.lane.b32.xlu0 %v638, 31
      %v1442 = vpop.permute.xlu0 %1441
      %v1444 = vmul.f32 %v1317, %v1442
      %1446 = vrot.lane.b32.xlu0 %v1444, 124
      %v1447 = vpop.permute.xlu0 %1446
      %v1449 = vadd.f32 %v1304, %v1447
      %1450 = vrot.lane.b32.xlu0 %v638, 32
      %v1451 = vpop.permute.xlu0 %1450
      %v1453 = vmul.f32 %v1317, %v1451
      %1455 = vrot.lane.b32.xlu0 %v1453, 127
      %v1456 = vpop.permute.xlu0 %1455
      %v1458 = vadd.f32 %v1304, %v1456
      %1459 = vrot.lane.b32.xlu0 %v1364, 88
      %v1460 = vpop.permute.xlu0 %1459
      %v1462 = vsel %vm1369, %v1460, 0.0
      %1463 = vadd.xlane.f32.xlu0 %v1462
      %v1464 = vpop.xlane.xlu0 %1463
      %v1465 = vadd.f32 %v1373, %v1464
      %1466 = vrot.lane.b32.xlu0 %v1380, 76
      %v1467 = vpop.permute.xlu0 %1466
      %v1469 = vsel %vm1385, %v1467, 0.0
      %1470 = vadd.xlane.f32.xlu0 %v1469
      %v1471 = vpop.xlane.xlu0 %1470
      %v1472 = vadd.f32 %v1389, %v1471
      %1474 = vrot.lane.b32.xlu0 %v1397, 96
      %v1475 = vpop.permute.xlu0 %1474
      %v1477 = vadd.f32 %v1398, %v1475
      %1479 = vrot.lane.b32.xlu0 %v1410, 96
      %v1480 = vpop.permute.xlu0 %1479
      %v1482 = vadd.f32 %v1411, %v1480
      %1483 = vrot.lane.b32.xlu0 %v1414, 96
      %v1484 = vpop.permute.xlu0 %1483
      %v1486 = vadd.f32 %v1415, %v1484
      %1487 = vset.pattern.permute.xlu0 58
      %1488 = vperm.xlu0 %1487, %v1414
      %v1489 = vpop.permute.xlu0 %1488
      %v1491 = vmul.f32 %v1440, %v1489
      %1493 = vrot.lane.b32.xlu0 %v1491, 96
      %v1494 = vpop.permute.xlu0 %1493
      %v1496 = vadd.f32 %v1422, %v1494
      %v1497 = vmul.f32 %v1449, %v1489
      %1499 = vrot.lane.b32.xlu0 %v1497, 96
      %v1500 = vpop.permute.xlu0 %1499
      %v1502 = vadd.f32 %v1424, %v1500
      %v1503 = vmul.f32 %v1458, %v1426
      %1505 = vrot.lane.b32.xlu0 %v1503, 96
      %v1506 = vpop.permute.xlu0 %1505
      %v1508 = vadd.f32 %v1429, %v1506
      %1510 = vrot.lane.b32.xlu0 %v1430, 96
      %v1511 = vpop.permute.xlu0 %1510
      %v1513 = vadd.f32 %v1431, %v1511
      %1514 = vrot.lane.b32.xlu0 %v638, 46
      %v1515 = vpop.permute.xlu0 %1514
      %v1517 = vmul.f32 %v1317, %v1515
      %1519 = vrot.lane.b32.xlu0 %v1517, 120
      %v1520 = vpop.permute.xlu0 %1519
      %v1522 = vadd.f32 %v1304, %v1520
      %1523 = vrot.lane.b32.xlu0 %v638, 50
      %v1524 = vpop.permute.xlu0 %1523
      %v1526 = vmul.f32 %v1317, %v1524
      %1528 = vrot.lane.b32.xlu0 %v1526, 124
      %v1529 = vpop.permute.xlu0 %1528
      %v1531 = vadd.f32 %v1304, %v1529
      %1532 = vrot.lane.b32.xlu0 %v638, 51
      %v1533 = vpop.permute.xlu0 %1532
      %v1535 = vmul.f32 %v1317, %v1533
      %1537 = vrot.lane.b32.xlu0 %v1535, 127
      %v1538 = vpop.permute.xlu0 %1537
      %v1540 = vadd.f32 %v1304, %v1538
      %1541 = vrot.lane.b32.xlu0 %v1364, 56
      %v1542 = vpop.permute.xlu0 %1541
      %v1544 = vsel %vm1369, %v1542, 0.0
      %1545 = vadd.xlane.f32.xlu0 %v1544
      %v1546 = vpop.xlane.xlu0 %1545
      %v1547 = vadd.f32 %v1465, %v1546
      %1548 = vrot.lane.b32.xlu0 %v1380, 44
      %v1549 = vpop.permute.xlu0 %1548
      %v1551 = vsel %vm1385, %v1549, 0.0
      %1552 = vadd.xlane.f32.xlu0 %v1551
      %v1553 = vpop.xlane.xlu0 %1552
      %v1554 = vadd.f32 %v1472, %v1553
      %1555 = vrot.lane.b32.xlu0 %v1397, 64
      %v1556 = vpop.permute.xlu0 %1555
      %v1558 = vadd.f32 %v1477, %v1556
      %1559 = vrot.lane.b32.xlu0 %v1410, 64
      %v1560 = vpop.permute.xlu0 %1559
      %v1562 = vadd.f32 %v1482, %v1560
      %1563 = vrot.lane.b32.xlu0 %v1414, 64
      %v1564 = vpop.permute.xlu0 %1563
      %v1566 = vadd.f32 %v1486, %v1564
      %1567 = vset.pattern.permute.xlu0 90
      %1568 = vperm.xlu0 %1567, %v1414
      %v1569 = vpop.permute.xlu0 %1568
      %v1571 = vmul.f32 %v1522, %v1569
      %1573 = vrot.lane.b32.xlu0 %v1571, 64
      %v1574 = vpop.permute.xlu0 %1573
      %v1576 = vadd.f32 %v1496, %v1574
      %v1577 = vmul.f32 %v1531, %v1569
      %1579 = vrot.lane.b32.xlu0 %v1577, 64
      %v1580 = vpop.permute.xlu0 %1579
      %v1582 = vadd.f32 %v1502, %v1580
      %v1583 = vmul.f32 %v1540, %v1426
      %1585 = vrot.lane.b32.xlu0 %v1583, 64
      %v1586 = vpop.permute.xlu0 %1585
      %v1588 = vadd.f32 %v1508, %v1586
      %1589 = vrot.lane.b32.xlu0 %v1430, 64
      %v1590 = vpop.permute.xlu0 %1589
      %v1592 = vadd.f32 %v1513, %v1590
      %1593 = vrot.lane.b32.xlu0 %v638, 65
      %v1594 = vpop.permute.xlu0 %1593
      %v1596 = vmul.f32 %v1317, %v1594
      %1598 = vrot.lane.b32.xlu0 %v1596, 120
      %v1599 = vpop.permute.xlu0 %1598
      %v1601 = vadd.f32 %v1304, %v1599
      %1602 = vrot.lane.b32.xlu0 %v638, 69
      %v1603 = vpop.permute.xlu0 %1602
      %v1605 = vmul.f32 %v1317, %v1603
      %1607 = vrot.lane.b32.xlu0 %v1605, 124
      %v1608 = vpop.permute.xlu0 %1607
      %v1610 = vadd.f32 %v1304, %v1608
      %1611 = vrot.lane.b32.xlu0 %v638, 70
      %v1612 = vpop.permute.xlu0 %1611
      %v1614 = vmul.f32 %v1317, %v1612
      %1616 = vrot.lane.b32.xlu0 %v1614, 127
      %v1617 = vpop.permute.xlu0 %1616
      %v1619 = vadd.f32 %v1304, %v1617
      %1620 = vrot.lane.b32.xlu0 %v1364, 24
      %v1621 = vpop.permute.xlu0 %1620
      %v1623 = vsel %vm1369, %v1621, 0.0
      %1624 = vadd.xlane.f32.xlu0 %v1623
      %v1625 = vpop.xlane.xlu0 %1624
      %v1626 = vadd.f32 %v1547, %v1625
      %1627 = vrot.lane.b32.xlu0 %v1380, 12
      %v1628 = vpop.permute.xlu0 %1627
      %v1630 = vsel %vm1385, %v1628, 0.0
      %1631 = vadd.xlane.f32.xlu0 %v1630
      %v1632 = vpop.xlane.xlu0 %1631
      %v1633 = vadd.f32 %v1554, %v1632
      %1634 = vrot.lane.b32.xlu0 %v1397, 32
      %v1635 = vpop.permute.xlu0 %1634
      %v1637 = vadd.f32 %v1558, %v1635
      %1638 = vrot.lane.b32.xlu0 %v1410, 32
      %v1639 = vpop.permute.xlu0 %1638
      %v1641 = vadd.f32 %v1562, %v1639
      %1642 = vrot.lane.b32.xlu0 %v1414, 32
      %v1643 = vpop.permute.xlu0 %1642
      %v1645 = vadd.f32 %v1566, %v1643
      %1646 = vset.pattern.permute.xlu0 122
      %1647 = vperm.xlu0 %1646, %v1414
      %v1648 = vpop.permute.xlu0 %1647
      %v1650 = vmul.f32 %v1601, %v1648
      %1652 = vrot.lane.b32.xlu0 %v1650, 32
      %v1653 = vpop.permute.xlu0 %1652
      %v1655 = vadd.f32 %v1576, %v1653
      %v1656 = vmul.f32 %v1610, %v1648
      %1658 = vrot.lane.b32.xlu0 %v1656, 32
      %v1659 = vpop.permute.xlu0 %1658
      %v1661 = vadd.f32 %v1582, %v1659
      %v1662 = vmul.f32 %v1619, %v1426
      %1664 = vrot.lane.b32.xlu0 %v1662, 32
      %v1665 = vpop.permute.xlu0 %1664
      %v1667 = vadd.f32 %v1588, %v1665
      %1668 = vrot.lane.b32.xlu0 %v1430, 32
      %v1669 = vpop.permute.xlu0 %1668
      %v1671 = vadd.f32 %v1592, %v1669
      %1672 = vst.msk [vmem:[#allocation2] sm:$0xff] %vm1369, %v1655
      %1674 = vrot.lane.b32.xlu0 %v1661, 120
      %v1675 = vpop.permute.xlu0 %1674
      %vm1677 = vcmask 97344
      %1678 = vst.msk [vmem:[#allocation2] sm:$0xff] %vm1677, %v1675
      %1680 = vrot.lane.b32.xlu0 %v1667, 116
      %v1681 = vpop.permute.xlu0 %1680
      %vm1683 = vcmask 105568
      %1684 = vst.msk [vmem:[#allocation2] sm:$0xff] %vm1683, %v1681
      %1686 = vrot.lane.b32.xlu0 %v1671, 115
      %v1687 = vpop.permute.xlu0 %1686
      %vm1689 = vcmask 113768
      %1690 = vst.msk [vmem:[#allocation2] sm:$0xff] %vm1689, %v1687
      %1691 = vrot.lane.b32.xlu0 %v1661, 126
      %v1692 = vpop.permute.xlu0 %1691
      %vm1694 = vcmask 130160
      %1695 = vst.msk [vmem:[#allocation2] sm:$0xff] %vm1694, %v1692
      %1697 = vrot.lane.b32.xlu0 %v1440, 96
      %v1698 = vpop.permute.xlu0 %1697
      %1701 = vrot.lane.b32.xlu0 %v1522, 64
      %v1702 = vpop.permute.xlu0 %1701
      %1705 = vrot.lane.b32.xlu0 %v1601, 32
      %v1706 = vpop.permute.xlu0 %1705
      %v1708 = vpack.c.bf16 %v1698, %v1329
      %v1709 = vpack.c.bf16 %v1706, %v1702
      %v1710 = vld [vmem:[%s9] sm:$0xff]
      %v1711 = vld [vmem:[%s9 + $0x8] sm:$0xff]
      %v1712 = vld [vmem:[%s9 + $0x10] sm:$0xff]
      %v1713 = vld [vmem:[%s9 + $0x18] sm:$0xff]
      %v1714 = vld [vmem:[%s10] sm:$0xff]
      %v1716 = vlaneseq
      %v1717 = vshrl.u32 %v1716, 7
      %v1718 = vsub.s32 0, %v1717
      %v1719 = vrot.slane %v1714, %v1718
      %v1720 = vlaneseq
      %v1721 = vshrl.u32 %v1720, 7
      %v1722 = vsub.s32 1, %v1721
      %v1723 = vrot.slane %v1714, %v1722
      %v1724 = vlaneseq
      %v1725 = vshrl.u32 %v1724, 7
      %v1726 = vsub.s32 2, %v1725
      %v1727 = vrot.slane %v1714, %v1726
      %v1728 = vlaneseq
      %v1729 = vshrl.u32 %v1728, 7
      %v1730 = vsub.s32 3, %v1729
      %v1731 = vrot.slane %v1714, %v1730
      %v1732 = vlaneseq
      %v1733 = vshrl.u32 %v1732, 7
      %v1734 = vsub.s32 4, %v1733
      %v1735 = vrot.slane %v1714, %v1734
      %v1736 = vlaneseq
      %v1737 = vshrl.u32 %v1736, 7
      %v1738 = vsub.s32 5, %v1737
      %v1739 = vrot.slane %v1714, %v1738
      %v1740 = vlaneseq
      %v1741 = vshrl.u32 %v1740, 7
      %v1742 = vsub.s32 6, %v1741
      %v1743 = vrot.slane %v1714, %v1742
      %v1744 = vlaneseq
      %v1745 = vshrl.u32 %v1744, 7
      %v1746 = vsub.s32 7, %v1745
      %v1747 = vrot.slane %v1714, %v1746
      %v1760 = vunpack.c.l.b16 %v1710
      %v1761 = vunpack.c.h.b16 %v1710
      %v1762 = vunpack.c.l.b16 %v1711
      %v1763 = vunpack.c.h.b16 %v1711
      %v1764 = vunpack.c.l.b16 %v1712
      %v1765 = vunpack.c.h.b16 %v1712
      %v1766 = vunpack.c.l.b16 %v1713
      %v1767 = vunpack.c.h.b16 %v1713
      %v1768 = vpack.c.b16 %v1760, %v1760
      %v1769 = vpack.c.b16 %v1761, %v1761
      %v1770 = vpack.c.b16 %v1762, %v1762
      %v1771 = vpack.c.b16 %v1763, %v1763
      %v1772 = vpack.c.b16 %v1764, %v1764
      %v1773 = vpack.c.b16 %v1765, %v1765
      %v1774 = vpack.c.b16 %v1766, %v1766
      %v1775 = vpack.c.b16 %v1767, %v1767
      %v1777 = vsel %vm1369, %v1708, 0
      %v1780 = vsel %vm1369, %v1709, 0
      %vm1782 = vcmask 1043456
      %v1784 = vsel %vm1782, %v1768, 0
      %v1787 = vsel %vm1782, %v1769, 0
      %v1790 = vsel %vm1782, %v1770, 0
      %v1793 = vsel %vm1782, %v1771, 0
      %v1796 = vsel %vm1782, %v1772, 0
      %v1799 = vsel %vm1782, %v1773, 0
      %v1802 = vsel %vm1782, %v1774, 0
      %v1805 = vsel %vm1782, %v1775, 0
      %1807 = vmatprep.subr.bf16.mxu0 %v1787
      %1808 = vmatpush1.bf16.msra.mxu0 %v1784
      %1809 = vmatprep.subr.bf16.mxu0 0
      %1810 = vmatpush1.bf16.msra.mxu0 0
      %1811 = vmatprep.subr.bf16.mxu0 0
      %1812 = vmatpush1.bf16.msra.mxu0 0
      %1813 = vmatprep.subr.bf16.mxu0 0
      %1814 = vmatpush1.bf16.msra.mxu0 0
      %1815 = vmatprep.subr.bf16.mxu0 0
      %1816 = vmatpush1.bf16.msra.mxu0 0
      %1817 = vmatprep.subr.bf16.mxu0 0
      %1818 = vmatpush1.bf16.msra.mxu0 0
      %1819 = vmatprep.subr.bf16.mxu0 0
      %1820 = vmatpush1.bf16.msra.mxu0 0
      %1821 = vmatprep.subr.bf16.mxu0 0
      %1822 = vmatpush1.bf16.msra.mxu0 0
      %1823 = vmatprep.subr.bf16.mxu0 0
      %1824 = vmatpush1.bf16.msra.mxu0 0
      %1825 = vmatprep.subr.bf16.mxu0 0
      %1826 = vmatpush1.bf16.msra.mxu0 0
      %1827 = vmatprep.subr.bf16.mxu0 0
      %1828 = vmatpush1.bf16.msra.mxu0 0
      %1829 = vmatprep.subr.bf16.mxu0 0
      %1830 = vmatpush1.bf16.msra.mxu0 0
      %1831 = vmatprep.subr.bf16.mxu0 0
      %1832 = vmatpush1.bf16.msra.mxu0 0
      %1833 = vmatprep.subr.bf16.mxu0 0
      %1834 = vmatpush1.bf16.msra.mxu0 0
      %1835 = vmatprep.subr.bf16.mxu0 0
      %1836 = vmatpush1.bf16.msra.mxu0 0
      %1837 = vmatprep.subr.bf16.mxu0 0
      %1838 = vmatpush1.bf16.msra.mxu0 0
      %1839 = vmatprep.mubr.bf16.mxu0 0
      %1840 = vmatmul.mubr.bf16.gmra.mrb[0].mxu0 %v1777
      %v1841 = vpop.f32.mrb[0].mxu0
      %v1842 = vadd.f32 %v1719, %v1841
      %v1843 = vpop.f32.mrb[0].mxu0
      %v1844 = vadd.f32 %v1723, %v1843
      %v1845 = vpop.f32.mrb[0].mxu0
      %v1846 = vadd.f32 %v1719, %v1845
      %v1847 = vpop.f32.mrb[0].mxu0
      %v1848 = vadd.f32 %v1723, %v1847
      %1849 = vmatprep.mubr.bf16.mxu0 0
      %1850 = vmatmul.mubr.bf16.gmra.mrb[0].mxu0 %v1780
      %v1851 = vpop.f32.mrb[0].mxu0
      %v1852 = vadd.f32 %v1719, %v1851
      %v1853 = vpop.f32.mrb[0].mxu0
      %v1854 = vadd.f32 %v1723, %v1853
      %v1855 = vpop.f32.mrb[0].mxu0
      %v1856 = vadd.f32 %v1719, %v1855
      %v1857 = vpop.f32.mrb[0].mxu0
      %v1858 = vadd.f32 %v1723, %v1857
      %1859 = vdwg.mxu0
      %1860 = vmatprep.subr.bf16.mxu0 %v1793
      %1861 = vmatpush1.bf16.msra.mxu0 %v1790
      %1862 = vmatprep.subr.bf16.mxu0 0
      %1863 = vmatpush1.bf16.msra.mxu0 0
      %1864 = vmatprep.subr.bf16.mxu0 0
      %1865 = vmatpush1.bf16.msra.mxu0 0
      %1866 = vmatprep.subr.bf16.mxu0 0
      %1867 = vmatpush1.bf16.msra.mxu0 0
      %1868 = vmatprep.subr.bf16.mxu0 0
      %1869 = vmatpush1.bf16.msra.mxu0 0
      %1870 = vmatprep.subr.bf16.mxu0 0
      %1871 = vmatpush1.bf16.msra.mxu0 0
      %1872 = vmatprep.subr.bf16.mxu0 0
      %1873 = vmatpush1.bf16.msra.mxu0 0
      %1874 = vmatprep.subr.bf16.mxu0 0
      %1875 = vmatpush1.bf16.msra.mxu0 0
      %1876 = vmatprep.subr.bf16.mxu0 0
      %1877 = vmatpush1.bf16.msra.mxu0 0
      %1878 = vmatprep.subr.bf16.mxu0 0
      %1879 = vmatpush1.bf16.msra.mxu0 0
      %1880 = vmatprep.subr.bf16.mxu0 0
      %1881 = vmatpush1.bf16.msra.mxu0 0
      %1882 = vmatprep.subr.bf16.mxu0 0
      %1883 = vmatpush1.bf16.msra.mxu0 0
      %1884 = vmatprep.subr.bf16.mxu0 0
      %1885 = vmatpush1.bf16.msra.mxu0 0
      %1886 = vmatprep.subr.bf16.mxu0 0
      %1887 = vmatpush1.bf16.msra.mxu0 0
      %1888 = vmatprep.subr.bf16.mxu0 0
      %1889 = vmatpush1.bf16.msra.mxu0 0
      %1890 = vmatprep.subr.bf16.mxu0 0
      %1891 = vmatpush1.bf16.msra.mxu0 0
      %1892 = vmatprep.mubr.bf16.mxu0 0
      %1893 = vmatmul.mubr.bf16.gmra.mrb[0].mxu0 %v1777
      %v1894 = vpop.f32.mrb[0].mxu0
      %v1895 = vadd.f32 %v1727, %v1894
      %v1896 = vpop.f32.mrb[0].mxu0
      %v1897 = vadd.f32 %v1731, %v1896
      %v1898 = vpop.f32.mrb[0].mxu0
      %v1899 = vadd.f32 %v1727, %v1898
      %v1900 = vpop.f32.mrb[0].mxu0
      %v1901 = vadd.f32 %v1731, %v1900
      %1902 = vmatprep.mubr.bf16.mxu0 0
      %1903 = vmatmul.mubr.bf16.gmra.mrb[0].mxu0 %v1780
      %v1904 = vpop.f32.mrb[0].mxu0
      %v1905 = vadd.f32 %v1727, %v1904
      %v1906 = vpop.f32.mrb[0].mxu0
      %v1907 = vadd.f32 %v1731, %v1906
      %v1908 = vpop.f32.mrb[0].mxu0
      %v1909 = vadd.f32 %v1727, %v1908
      %v1910 = vpop.f32.mrb[0].mxu0
      %v1911 = vadd.f32 %v1731, %v1910
      %1912 = vdwg.mxu0
      %1913 = vmatprep.subr.bf16.mxu0 %v1799
      %1914 = vmatpush1.bf16.msra.mxu0 %v1796
      %1915 = vmatprep.subr.bf16.mxu0 0
      %1916 = vmatpush1.bf16.msra.mxu0 0
      %1917 = vmatprep.subr.bf16.mxu0 0
      %1918 = vmatpush1.bf16.msra.mxu0 0
      %1919 = vmatprep.subr.bf16.mxu0 0
      %1920 = vmatpush1.bf16.msra.mxu0 0
      %1921 = vmatprep.subr.bf16.mxu0 0
      %1922 = vmatpush1.bf16.msra.mxu0 0
      %1923 = vmatprep.subr.bf16.mxu0 0
      %1924 = vmatpush1.bf16.msra.mxu0 0
      %1925 = vmatprep.subr.bf16.mxu0 0
      %1926 = vmatpush1.bf16.msra.mxu0 0
      %1927 = vmatprep.subr.bf16.mxu0 0
      %1928 = vmatpush1.bf16.msra.mxu0 0
      %1929 = vmatprep.subr.bf16.mxu0 0
      %1930 = vmatpush1.bf16.msra.mxu0 0
      %1931 = vmatprep.subr.bf16.mxu0 0
      %1932 = vmatpush1.bf16.msra.mxu0 0
      %1933 = vmatprep.subr.bf16.mxu0 0
      %1934 = vmatpush1.bf16.msra.mxu0 0
      %1935 = vmatprep.subr.bf16.mxu0 0
      %1936 = vmatpush1.bf16.msra.mxu0 0
      %1937 = vmatprep.subr.bf16.mxu0 0
      %1938 = vmatpush1.bf16.msra.mxu0 0
      %1939 = vmatprep.subr.bf16.mxu0 0
      %1940 = vmatpush1.bf16.msra.mxu0 0
      %1941 = vmatprep.subr.bf16.mxu0 0
      %1942 = vmatpush1.bf16.msra.mxu0 0
      %1943 = vmatprep.subr.bf16.mxu0 0
      %1944 = vmatpush1.bf16.msra.mxu0 0
      %1945 = vmatprep.mubr.bf16.mxu0 0
      %1946 = vmatmul.mubr.bf16.gmra.mrb[0].mxu0 %v1777
      %v1947 = vpop.f32.mrb[0].mxu0
      %v1948 = vadd.f32 %v1735, %v1947
      %v1949 = vpop.f32.mrb[0].mxu0
      %v1950 = vadd.f32 %v1739, %v1949
      %v1951 = vpop.f32.mrb[0].mxu0
      %v1952 = vadd.f32 %v1735, %v1951
      %v1953 = vpop.f32.mrb[0].mxu0
      %v1954 = vadd.f32 %v1739, %v1953
      %1955 = vmatprep.mubr.bf16.mxu0 0
      %1956 = vmatmul.mubr.bf16.gmra.mrb[0].mxu0 %v1780
      %v1957 = vpop.f32.mrb[0].mxu0
      %v1958 = vadd.f32 %v1735, %v1957
      %v1959 = vpop.f32.mrb[0].mxu0
      %v1960 = vadd.f32 %v1739, %v1959
      %v1961 = vpop.f32.mrb[0].mxu0
      %v1962 = vadd.f32 %v1735, %v1961
      %v1963 = vpop.f32.mrb[0].mxu0
      %v1964 = vadd.f32 %v1739, %v1963
      %1965 = vdwg.mxu0
      %1966 = vmatprep.subr.bf16.mxu0 %v1805
      %1967 = vmatpush1.bf16.msra.mxu0 %v1802
      %1968 = vmatprep.subr.bf16.mxu0 0
      %1969 = vmatpush1.bf16.msra.mxu0 0
      %1970 = vmatprep.subr.bf16.mxu0 0
      %1971 = vmatpush1.bf16.msra.mxu0 0
      %1972 = vmatprep.subr.bf16.mxu0 0
      %1973 = vmatpush1.bf16.msra.mxu0 0
      %1974 = vmatprep.subr.bf16.mxu0 0
      %1975 = vmatpush1.bf16.msra.mxu0 0
      %1976 = vmatprep.subr.bf16.mxu0 0
      %1977 = vmatpush1.bf16.msra.mxu0 0
      %1978 = vmatprep.subr.bf16.mxu0 0
      %1979 = vmatpush1.bf16.msra.mxu0 0
      %1980 = vmatprep.subr.bf16.mxu0 0
      %1981 = vmatpush1.bf16.msra.mxu0 0
      %1982 = vmatprep.subr.bf16.mxu0 0
      %1983 = vmatpush1.bf16.msra.mxu0 0
      %1984 = vmatprep.subr.bf16.mxu0 0
      %1985 = vmatpush1.bf16.msra.mxu0 0
      %1986 = vmatprep.subr.bf16.mxu0 0
      %1987 = vmatpush1.bf16.msra.mxu0 0
      %1988 = vmatprep.subr.bf16.mxu0 0
      %1989 = vmatpush1.bf16.msra.mxu0 0
      %1990 = vmatprep.subr.bf16.mxu0 0
      %1991 = vmatpush1.bf16.msra.mxu0 0
      %1992 = vmatprep.subr.bf16.mxu0 0
      %1993 = vmatpush1.bf16.msra.mxu0 0
      %1994 = vmatprep.subr.bf16.mxu0 0
      %1995 = vmatpush1.bf16.msra.mxu0 0
      %1996 = vmatprep.subr.bf16.mxu0 0
      %1997 = vmatpush1.bf16.msra.mxu0 0
      %1998 = vmatprep.mubr.bf16.mxu0 0
      %1999 = vmatmul.mubr.bf16.gmra.mrb[0].mxu0 %v1777
      %v2000 = vpop.f32.mrb[0].mxu0
      %v2001 = vadd.f32 %v1743, %v2000
      %v2002 = vpop.f32.mrb[0].mxu0
      %v2003 = vadd.f32 %v1747, %v2002
      %v2004 = vpop.f32.mrb[0].mxu0
      %v2005 = vadd.f32 %v1743, %v2004
      %v2006 = vpop.f32.mrb[0].mxu0
      %v2007 = vadd.f32 %v1747, %v2006
      %2008 = vmatprep.mubr.bf16.mxu0 0
      %2009 = vmatmul.mubr.bf16.gmra.mrb[0].mxu0 %v1780
      %v2010 = vpop.f32.mrb[0].mxu0
      %v2011 = vadd.f32 %v1743, %v2010
      %v2012 = vpop.f32.mrb[0].mxu0
      %v2013 = vadd.f32 %v1747, %v2012
      %v2014 = vpop.f32.mrb[0].mxu0
      %v2015 = vadd.f32 %v1743, %v2014
      %v2016 = vpop.f32.mrb[0].mxu0
      %v2017 = vadd.f32 %v1747, %v2016
      %2018 = vdwg.mxu0
      %v2019 = vxor.u32 %v1842, 2147483648
      %v2020 = vxor.u32 %v1844, 2147483648
      %v2021 = vxor.u32 %v1895, 2147483648
      %v2022 = vxor.u32 %v1897, 2147483648
      %v2023 = vxor.u32 %v1948, 2147483648
      %v2024 = vxor.u32 %v1950, 2147483648
      %v2025 = vxor.u32 %v2001, 2147483648
      %v2026 = vxor.u32 %v2003, 2147483648
      %v2027 = vxor.u32 %v1846, 2147483648
      %v2028 = vxor.u32 %v1848, 2147483648
      %v2029 = vxor.u32 %v1899, 2147483648
      %v2030 = vxor.u32 %v1901, 2147483648
      %v2031 = vxor.u32 %v1952, 2147483648
      %v2032 = vxor.u32 %v1954, 2147483648
      %v2033 = vxor.u32 %v2005, 2147483648
      %v2034 = vxor.u32 %v2007, 2147483648
      %v2035 = vxor.u32 %v1852, 2147483648
      %v2036 = vxor.u32 %v1854, 2147483648
      %v2037 = vxor.u32 %v1905, 2147483648
      %v2038 = vxor.u32 %v1907, 2147483648
      %v2039 = vxor.u32 %v1958, 2147483648
      %v2040 = vxor.u32 %v1960, 2147483648
      %v2041 = vxor.u32 %v2011, 2147483648
      %v2042 = vxor.u32 %v2013, 2147483648
      %v2043 = vxor.u32 %v1856, 2147483648
      %v2044 = vxor.u32 %v1858, 2147483648
      %v2045 = vxor.u32 %v1909, 2147483648
      %v2046 = vxor.u32 %v1911, 2147483648
      %v2047 = vxor.u32 %v1962, 2147483648
      %v2048 = vxor.u32 %v1964, 2147483648
      %v2049 = vxor.u32 %v2015, 2147483648
      %v2050 = vxor.u32 %v2017, 2147483648
      %v2051 = vmul.f32 %v2019, 1.442695
      %v2052 = vpow.pop %v2051
      %v2053 = vmul.f32 %v2020, 1.442695
      %v2054 = vpow.pop %v2053
      %v2055 = vmul.f32 %v2021, 1.442695
      %v2056 = vpow.pop %v2055
      %v2057 = vmul.f32 %v2022, 1.442695
      %v2058 = vpow.pop %v2057
      %v2059 = vmul.f32 %v2023, 1.442695
      %v2060 = vpow.pop %v2059
      %v2061 = vmul.f32 %v2024, 1.442695
      %v2062 = vpow.pop %v2061
      %v2063 = vmul.f32 %v2025, 1.442695
      %v2064 = vpow.pop %v2063
      %v2065 = vmul.f32 %v2026, 1.442695
      %v2066 = vpow.pop %v2065
      %v2067 = vmul.f32 %v2027, 1.442695
      %v2068 = vpow.pop %v2067
      %v2069 = vmul.f32 %v2028, 1.442695
      %v2070 = vpow.pop %v2069
      %v2071 = vmul.f32 %v2029, 1.442695
      %v2072 = vpow.pop %v2071
      %v2073 = vmul.f32 %v2030, 1.442695
      %v2074 = vpow.pop %v2073
      %v2075 = vmul.f32 %v2031, 1.442695
      %v2076 = vpow.pop %v2075
      %v2077 = vmul.f32 %v2032, 1.442695
      %v2078 = vpow.pop %v2077
      %v2079 = vmul.f32 %v2033, 1.442695
      %v2080 = vpow.pop %v2079
      %v2081 = vmul.f32 %v2034, 1.442695
      %v2082 = vpow.pop %v2081
      %v2083 = vmul.f32 %v2035, 1.442695
      %v2084 = vpow.pop %v2083
      %v2085 = vmul.f32 %v2036, 1.442695
      %v2086 = vpow.pop %v2085
      %v2087 = vmul.f32 %v2037, 1.442695
      %v2088 = vpow.pop %v2087
      %v2089 = vmul.f32 %v2038, 1.442695
      %v2090 = vpow.pop %v2089
      %v2091 = vmul.f32 %v2039, 1.442695
      %v2092 = vpow.pop %v2091
      %v2093 = vmul.f32 %v2040, 1.442695
      %v2094 = vpow.pop %v2093
      %v2095 = vmul.f32 %v2041, 1.442695
      %v2096 = vpow.pop %v2095
      %v2097 = vmul.f32 %v2042, 1.442695
      %v2098 = vpow.pop %v2097
      %v2099 = vmul.f32 %v2043, 1.442695
      %v2100 = vpow.pop %v2099
      %v2101 = vmul.f32 %v2044, 1.442695
      %v2102 = vpow.pop %v2101
      %v2103 = vmul.f32 %v2045, 1.442695
      %v2104 = vpow.pop %v2103
      %v2105 = vmul.f32 %v2046, 1.442695
      %v2106 = vpow.pop %v2105
      %v2107 = vmul.f32 %v2047, 1.442695
      %v2108 = vpow.pop %v2107
      %v2109 = vmul.f32 %v2048, 1.442695
      %v2110 = vpow.pop %v2109
      %v2111 = vmul.f32 %v2049, 1.442695
      %v2112 = vpow.pop %v2111
      %v2113 = vmul.f32 %v2050, 1.442695
      %v2114 = vpow.pop %v2113
      %v2115 = vadd.f32 %v2052, 1.0
      %v2116 = vadd.f32 %v2054, 1.0
      %v2117 = vadd.f32 %v2056, 1.0
      %v2118 = vadd.f32 %v2058, 1.0
      %v2119 = vadd.f32 %v2060, 1.0
      %v2120 = vadd.f32 %v2062, 1.0
      %v2121 = vadd.f32 %v2064, 1.0
      %v2122 = vadd.f32 %v2066, 1.0
      %v2123 = vadd.f32 %v2068, 1.0
      %v2124 = vadd.f32 %v2070, 1.0
      %v2125 = vadd.f32 %v2072, 1.0
      %v2126 = vadd.f32 %v2074, 1.0
      %v2127 = vadd.f32 %v2076, 1.0
      %v2128 = vadd.f32 %v2078, 1.0
      %v2129 = vadd.f32 %v2080, 1.0
      %v2130 = vadd.f32 %v2082, 1.0
      %v2131 = vadd.f32 %v2084, 1.0
      %v2132 = vadd.f32 %v2086, 1.0
      %v2133 = vadd.f32 %v2088, 1.0
      %v2134 = vadd.f32 %v2090, 1.0
      %v2135 = vadd.f32 %v2092, 1.0
      %v2136 = vadd.f32 %v2094, 1.0
      %v2137 = vadd.f32 %v2096, 1.0
      %v2138 = vadd.f32 %v2098, 1.0
      %v2139 = vadd.f32 %v2100, 1.0
      %v2140 = vadd.f32 %v2102, 1.0
      %v2141 = vadd.f32 %v2104, 1.0
      %v2142 = vadd.f32 %v2106, 1.0
      %v2143 = vadd.f32 %v2108, 1.0
      %v2144 = vadd.f32 %v2110, 1.0
      %v2145 = vadd.f32 %v2112, 1.0
      %v2146 = vadd.f32 %v2114, 1.0
      %v2147 = vrcp.pop %v2115
      %v2148 = vmul.f32 1.0, %v2147
      %v2149 = vrcp.pop %v2116
      %v2150 = vmul.f32 1.0, %v2149
      %v2151 = vrcp.pop %v2117
      %v2152 = vmul.f32 1.0, %v2151
      %v2153 = vrcp.pop %v2118
      %v2154 = vmul.f32 1.0, %v2153
      %v2155 = vrcp.pop %v2119
      %v2156 = vmul.f32 1.0, %v2155
      %v2157 = vrcp.pop %v2120
      %v2158 = vmul.f32 1.0, %v2157
      %v2159 = vrcp.pop %v2121
      %v2160 = vmul.f32 1.0, %v2159
      %v2161 = vrcp.pop %v2122
      %v2162 = vmul.f32 1.0, %v2161
      %v2163 = vrcp.pop %v2123
      %v2164 = vmul.f32 1.0, %v2163
      %v2165 = vrcp.pop %v2124
      %v2166 = vmul.f32 1.0, %v2165
      %v2167 = vrcp.pop %v2125
      %v2168 = vmul.f32 1.0, %v2167
      %v2169 = vrcp.pop %v2126
      %v2170 = vmul.f32 1.0, %v2169
      %v2171 = vrcp.pop %v2127
      %v2172 = vmul.f32 1.0, %v2171
      %v2173 = vrcp.pop %v2128
      %v2174 = vmul.f32 1.0, %v2173
      %v2175 = vrcp.pop %v2129
      %v2176 = vmul.f32 1.0, %v2175
      %v2177 = vrcp.pop %v2130
      %v2178 = vmul.f32 1.0, %v2177
      %v2179 = vrcp.pop %v2131
      %v2180 = vmul.f32 1.0, %v2179
      %v2181 = vrcp.pop %v2132
      %v2182 = vmul.f32 1.0, %v2181
      %v2183 = vrcp.pop %v2133
      %v2184 = vmul.f32 1.0, %v2183
      %v2185 = vrcp.pop %v2134
      %v2186 = vmul.f32 1.0, %v2185
      %v2187 = vrcp.pop %v2135
      %v2188 = vmul.f32 1.0, %v2187
      %v2189 = vrcp.pop %v2136
      %v2190 = vmul.f32 1.0, %v2189
      %v2191 = vrcp.pop %v2137
      %v2192 = vmul.f32 1.0, %v2191
      %v2193 = vrcp.pop %v2138
      %v2194 = vmul.f32 1.0, %v2193
      %v2195 = vrcp.pop %v2139
      %v2196 = vmul.f32 1.0, %v2195
      %v2197 = vrcp.pop %v2140
      %v2198 = vmul.f32 1.0, %v2197
      %v2199 = vrcp.pop %v2141
      %v2200 = vmul.f32 1.0, %v2199
      %v2201 = vrcp.pop %v2142
      %v2202 = vmul.f32 1.0, %v2201
      %v2203 = vrcp.pop %v2143
      %v2204 = vmul.f32 1.0, %v2203
      %v2205 = vrcp.pop %v2144
      %v2206 = vmul.f32 1.0, %v2205
      %v2207 = vrcp.pop %v2145
      %v2208 = vmul.f32 1.0, %v2207
      %v2209 = vrcp.pop %v2146
      %v2210 = vmul.f32 1.0, %v2209
      %2212 = vset.pattern.permute.xlu0 26
      %2213 = vperm.xlu0 %2212, %v1353
      %v2214 = vpop.permute.xlu0 %2213
      %v2216 = vmul.f32 %v2160, %v2214
      %v2217 = vmul.f32 %v2162, %v2214
      %v2218 = vsub.f32 0.0, %v1347
      %v2219 = vxor.u32 %v2218, 2147483648
      %v2220 = vmul.f32 %v2219, 1.442695
      %v2221 = vpow.pop %v2220
      %v2222 = vadd.f32 %v2221, 1.0
      %v2223 = vrcp.pop %v2222
      %v2224 = vmul.f32 1.0, %v2223
      %2226 = vset.pattern.permute.xlu0 24
      %2227 = vperm.xlu0 %2226, %v2224
      %v2228 = vpop.permute.xlu0 %2227
      %v2230 = vmul.f32 %v2216, %v2228
      %v2231 = vmul.f32 %v2217, %v2228
      %v2232 = vadd.f32 %v2230, 0.0
      %v2233 = vadd.f32 %v2231, 0.0
      %v2234 = vadd.f32 %v2216, 0.0
      %v2235 = vadd.f32 %v2217, 0.0
      %v2236 = vmul.f32 %v2148, %v2230
      %v2237 = vmul.f32 %v2150, %v2231
      %v2238 = vadd.f32 %v2236, 0.0
      %v2239 = vadd.f32 %v2237, 0.0
      %v2240 = vmul.f32 %v2152, %v2230
      %v2241 = vmul.f32 %v2154, %v2231
      %v2242 = vadd.f32 %v2240, 0.0
      %v2243 = vadd.f32 %v2241, 0.0
      %v2244 = vmul.f32 %v2156, %v2230
      %v2245 = vmul.f32 %v2158, %v2231
      %v2246 = vadd.f32 %v2244, 0.0
      %v2247 = vadd.f32 %v2245, 0.0
      %2248 = vset.pattern.permute.xlu0 58
      %2249 = vperm.xlu0 %2248, %v1353
      %v2250 = vpop.permute.xlu0 %2249
      %v2252 = vmul.f32 %v2176, %v2250
      %v2253 = vmul.f32 %v2178, %v2250
      %v2254 = vsub.f32 0.0, %v1458
      %v2255 = vxor.u32 %v2254, 2147483648
      %v2256 = vmul.f32 %v2255, 1.442695
      %v2257 = vpow.pop %v2256
      %v2258 = vadd.f32 %v2257, 1.0
      %v2259 = vrcp.pop %v2258
      %v2260 = vmul.f32 1.0, %v2259
      %2262 = vset.pattern.permute.xlu0 56
      %2263 = vperm.xlu0 %2262, %v2260
      %v2264 = vpop.permute.xlu0 %2263
      %v2266 = vmul.f32 %v2252, %v2264
      %v2267 = vmul.f32 %v2253, %v2264
      %v2268 = vadd.f32 %v2232, %v2266
      %v2269 = vadd.f32 %v2233, %v2267
      %v2270 = vadd.f32 %v2234, %v2252
      %v2271 = vadd.f32 %v2235, %v2253
      %v2272 = vmul.f32 %v2164, %v2266
      %v2273 = vmul.f32 %v2166, %v2267
      %v2274 = vadd.f32 %v2238, %v2272
      %v2275 = vadd.f32 %v2239, %v2273
      %v2276 = vmul.f32 %v2168, %v2266
      %v2277 = vmul.f32 %v2170, %v2267
      %v2278 = vadd.f32 %v2242, %v2276
      %v2279 = vadd.f32 %v2243, %v2277
      %v2280 = vmul.f32 %v2172, %v2266
      %v2281 = vmul.f32 %v2174, %v2267
      %v2282 = vadd.f32 %v2246, %v2280
      %v2283 = vadd.f32 %v2247, %v2281
      %2284 = vset.pattern.permute.xlu0 90
      %2285 = vperm.xlu0 %2284, %v1353
      %v2286 = vpop.permute.xlu0 %2285
      %v2288 = vmul.f32 %v2192, %v2286
      %v2289 = vmul.f32 %v2194, %v2286
      %v2290 = vsub.f32 0.0, %v1540
      %v2291 = vxor.u32 %v2290, 2147483648
      %v2292 = vmul.f32 %v2291, 1.442695
      %v2293 = vpow.pop %v2292
      %v2294 = vadd.f32 %v2293, 1.0
      %v2295 = vrcp.pop %v2294
      %v2296 = vmul.f32 1.0, %v2295
      %2298 = vset.pattern.permute.xlu0 88
      %2299 = vperm.xlu0 %2298, %v2296
      %v2300 = vpop.permute.xlu0 %2299
      %v2302 = vmul.f32 %v2288, %v2300
      %v2303 = vmul.f32 %v2289, %v2300
      %v2304 = vadd.f32 %v2268, %v2302
      %v2305 = vadd.f32 %v2269, %v2303
      %v2306 = vadd.f32 %v2270, %v2288
      %v2307 = vadd.f32 %v2271, %v2289
      %v2308 = vmul.f32 %v2180, %v2302
      %v2309 = vmul.f32 %v2182, %v2303
      %v2310 = vadd.f32 %v2274, %v2308
      %v2311 = vadd.f32 %v2275, %v2309
      %v2312 = vmul.f32 %v2184, %v2302
      %v2313 = vmul.f32 %v2186, %v2303
      %v2314 = vadd.f32 %v2278, %v2312
      %v2315 = vadd.f32 %v2279, %v2313
      %v2316 = vmul.f32 %v2188, %v2302
      %v2317 = vmul.f32 %v2190, %v2303
      %v2318 = vadd.f32 %v2282, %v2316
      %v2319 = vadd.f32 %v2283, %v2317
      %2320 = vset.pattern.permute.xlu0 122
      %2321 = vperm.xlu0 %2320, %v1353
      %v2322 = vpop.permute.xlu0 %2321
      %v2324 = vmul.f32 %v2208, %v2322
      %v2325 = vmul.f32 %v2210, %v2322
      %v2326 = vsub.f32 0.0, %v1619
      %v2327 = vxor.u32 %v2326, 2147483648
      %v2328 = vmul.f32 %v2327, 1.442695
      %v2329 = vpow.pop %v2328
      %v2330 = vadd.f32 %v2329, 1.0
      %v2331 = vrcp.pop %v2330
      %v2332 = vmul.f32 1.0, %v2331
      %2334 = vset.pattern.permute.xlu0 120
      %2335 = vperm.xlu0 %2334, %v2332
      %v2336 = vpop.permute.xlu0 %2335
      %v2338 = vmul.f32 %v2324, %v2336
      %v2339 = vmul.f32 %v2325, %v2336
      %v2340 = vadd.f32 %v2304, %v2338
      %v2341 = vadd.f32 %v2305, %v2339
      %v2342 = vadd.f32 %v2306, %v2324
      %v2343 = vadd.f32 %v2307, %v2325
      %v2344 = vmul.f32 %v2196, %v2338
      %v2345 = vmul.f32 %v2198, %v2339
      %v2346 = vadd.f32 %v2310, %v2344
      %v2347 = vadd.f32 %v2311, %v2345
      %v2348 = vmul.f32 %v2200, %v2338
      %v2349 = vmul.f32 %v2202, %v2339
      %v2350 = vadd.f32 %v2314, %v2348
      %v2351 = vadd.f32 %v2315, %v2349
      %v2352 = vmul.f32 %v2204, %v2338
      %v2353 = vmul.f32 %v2206, %v2339
      %v2354 = vadd.f32 %v2318, %v2352
      %v2355 = vadd.f32 %v2319, %v2353
      %v2356 = vadd.f32 %v2340, 1e-15
      %v2357 = vadd.f32 %v2341, 1e-15
      %v2358 = vrcp.pop %v2356
      %v2359 = vrcp.pop %v2357
      %v2360 = vmin.f32 %v2342, 1.0
      %v2361 = vmin.f32 %v2343, 1.0
      %v2362 = vsub.f32 1.0, %v2360
      %v2363 = vsub.f32 1.0, %v2361
      %v2364 = vmul.f32 %v2346, %v2358
      %v2365 = vmul.f32 %v2347, %v2359
      %v2366 = vmul.f32 %v2362, %v639
      %v2367 = vmul.f32 %v2363, %v640
      %v2368 = vadd.f32 %v2364, %v2366
      %v2369 = vadd.f32 %v2365, %v2367
      %2370 = vst [vmem:[%s612] sm:$0xff] %v2368
      %2371 = vst [vmem:[%s612 + $0x8] sm:$0xff] %v2369
      %v2372 = vsub.f32 %v631, %v2368
      %v2373 = vsub.f32 %v632, %v2369
      %v2374 = vmul.f32 %v2372, %v2372
      %v2375 = vmul.f32 %v2373, %v2373
      %v2376 = vadd.f32 %v2374, %v2375
      %2377 = vadd.xlane.f32.xlu0 %v2376
      %v2378 = vpop.xlane.xlu0 %2377
      %v2379 = vadd.f32 %v2378, 0.0
      %v2380 = vmul.f32 %v2350, %v2358
      %v2381 = vmul.f32 %v2351, %v2359
      %v2382 = vmul.f32 %v2362, %v641
      %v2383 = vmul.f32 %v2363, %v642
      %v2384 = vadd.f32 %v2380, %v2382
      %v2385 = vadd.f32 %v2381, %v2383
      %2386 = vst [vmem:[%s612 + $0x10] sm:$0xff] %v2384
      %2387 = vst [vmem:[%s612 + $0x18] sm:$0xff] %v2385
      %v2388 = vsub.f32 %v633, %v2384
      %v2389 = vsub.f32 %v634, %v2385
      %v2390 = vmul.f32 %v2388, %v2388
      %v2391 = vmul.f32 %v2389, %v2389
      %v2392 = vadd.f32 %v2390, %v2391
      %2393 = vadd.xlane.f32.xlu0 %v2392
      %v2394 = vpop.xlane.xlu0 %2393
      %v2395 = vadd.f32 %v2379, %v2394
      %v2396 = vmul.f32 %v2354, %v2358
      %v2397 = vmul.f32 %v2355, %v2359
      %v2398 = vmul.f32 %v2362, %v643
      %v2399 = vmul.f32 %v2363, %v644
      %v2400 = vadd.f32 %v2396, %v2398
      %v2401 = vadd.f32 %v2397, %v2399
      %2402 = vst [vmem:[%s612 + $0x20] sm:$0xff] %v2400
      %2403 = vst [vmem:[%s612 + $0x28] sm:$0xff] %v2401
      %v2404 = vsub.f32 %v635, %v2400
      %v2405 = vsub.f32 %v636, %v2401
      %v2406 = vmul.f32 %v2404, %v2404
      %v2407 = vmul.f32 %v2405, %v2405
      %v2408 = vadd.f32 %v2406, %v2407
      %2409 = vadd.xlane.f32.xlu0 %v2408
      %v2410 = vpop.xlane.xlu0 %2409
      %v2411 = vadd.f32 %v2395, %v2410
      %v2412 = vmul.f32 %v2411, -50.0
      %v2413 = vadd.f32 %v2412, 1062.6405
      %v2414 = vlaneseq
      %v2415 = vand.u32 %v2414, 127
      %vm2416 = vcmp.eq.s32.totalorder %v2415, 0
      %v2417 = vsel %vm2416, %v1626, 0.0
      %vm2418 = vcmp.eq.s32.totalorder %v2415, 1
      %v2419 = vsel %vm2418, %v1633, 0.0
      %v2420 = vadd.f32 %v2417, %v2419
      %vm2421 = vcmp.eq.s32.totalorder %v2415, 2
      %2423 = vset.pattern.permute.xlu0 25
      %2424 = vperm.xlu0 %2423, %v1637
      %v2425 = vpop.permute.xlu0 %2424
      %v2427 = vsel %vm2421, %v2425, 0.0
      %v2428 = vadd.f32 %v2420, %v2427
      %vm2429 = vcmp.eq.s32.totalorder %v2415, 3
      %2431 = vset.pattern.permute.xlu0 26
      %2432 = vperm.xlu0 %2431, %v1641
      %v2433 = vpop.permute.xlu0 %2432
      %v2435 = vsel %vm2429, %v2433, 0.0
      %v2436 = vadd.f32 %v2428, %v2435
      %vm2437 = vcmp.eq.s32.totalorder %v2415, 4
      %v2438 = vsel %vm2437, %v2413, 0.0
      %v2439 = vadd.f32 %v2436, %v2438
      %vm2440 = vcmp.eq.s32.totalorder %v2415, 5
      %2442 = vset.pattern.permute.xlu0 26
      %2443 = vperm.xlu0 %2442, %v1645
      %v2444 = vpop.permute.xlu0 %2443
      %v2446 = vsel %vm2440, %v2444, 0.0
      %v2447 = vadd.f32 %v2439, %v2446
      %2448 = vst [vmem:[%s616] sm:$0xff] %v2447
      %p2449 = scmp.lt.s32.totalorder %s24, 3
      %s2450 = scalar_select %p2449, %s24, 3
      %s2451 = smul.addr %s2450, 6
      %s2452 = smul.addr %s2451, 8
      %s2453 = scalar_lea.vmem %s11, %s2452
      %p2454 = scmp.lt.s32.totalorder %s24, 3
      %s2455 = scalar_select %p2454, %s24, 3
      %s2456 = smul.addr %s2455, 8
      %s2457 = scalar_lea.vmem %s12, %s2456
      // Predicated region
      $region69: #{scalor_forward.5} parent=63 // pred_check
        %p2458 = pneg %p333
      $region70: #{scalor_forward.5} parent=63 // pred_check_branch
        %2460 = sbr.rel (%p2458) target = $region72
      $region71: #{scalor_forward.5} parent=63 // pred_region
        _
      $region72: #{scalor_forward.5} parent=63 // pred_fallthru
        _
      // Predicated region
      $region73: #{scalor_forward.5} parent=63 // pred_check
        %p2461 = pneg %p359
      $region74: #{scalor_forward.5} parent=63 // pred_check_branch
        %2463 = sbr.rel (%p2461) target = $region76
      $region75: #{scalor_forward.5} parent=63 // pred_region
        _
      $region76: #{scalor_forward.5} parent=63 // pred_fallthru
        _
    $region64: #{scalor_forward.5} parent=5 // pred_fallthru
      _
    %p2464 = scmp.le.s32.totalorder 2, %s19
    // Predicated region
    $region77: #{scalor_forward.5} parent=5 // pred_check
      %p2465 = pneg %p2464
    $region78: #{scalor_forward.5} parent=5 // pred_check_branch
      %2467 = sbr.rel (%p2465) target = $region80
    $region79: #{scalor_forward.5} parent=5 // pred_region
      %s2468 = ssub.s32 %s19, 2
      // Predicated region
      $region81: #{scalor_forward.5} parent=79 // pred_check
        %p2469 = pneg %p339
      $region82: #{scalor_forward.5} parent=79 // pred_check_branch
        %2471 = sbr.rel (%p2469) target = $region84
      $region83: #{scalor_forward.5} parent=79 // pred_region
        %p2472 = scmp.lt.s32.totalorder %s25, 3
        %s2473 = scalar_select %p2472, %s25, 3
        %s2474 = smul.addr %s2473, 6
        %s2475 = smul.addr %s2474, 8
        %s2476 = scalar_lea.vmem %s11, %s2475
      $region84: #{scalor_forward.5} parent=79 // pred_fallthru
        _
      // Predicated region
      $region85: #{scalor_forward.5} parent=79 // pred_check
        %p2477 = pneg %p365
      $region86: #{scalor_forward.5} parent=79 // pred_check_branch
        %2479 = sbr.rel (%p2477) target = $region88
      $region87: #{scalor_forward.5} parent=79 // pred_region
        %p2480 = scmp.lt.s32.totalorder %s25, 3
        %s2481 = scalar_select %p2480, %s25, 3
        %s2482 = smul.addr %s2481, 8
        %s2483 = scalar_lea.vmem %s12, %s2482
      $region88: #{scalor_forward.5} parent=79 // pred_fallthru
        _
    $region80: #{scalor_forward.5} parent=5 // pred_fallthru
      _
  $region6: #{scalor_forward.5} parent=0 // loop_footer
    %s23 = sadd.s32 1, %s19
  $region7: #{scalor_forward.5} parent=0 // loop_footer_branch
    %18 = sbr.rel target = $region3
  $region8: #{scalor_forward.5} parent=0 // loop_exit
    _

</llo_original>
